<compile_context>
chip_gen: v7x
topology: tpu7x:2x2x1
jax: 0.10.0
libtpu: 0.0.40
codegen_flags: <defaults>
</compile_context>

<pallas_src>
import functools

import jax
import jax.numpy as jnp
from jax.experimental import pallas as pl
from jax.experimental.pallas import tpu as pltpu


# ----------------------------------------------------------------------------
# Fused residual-group kernel (one batch element per grid step)
# ----------------------------------------------------------------------------
def _residual_group_kernel(x_ref,
                           w1_ref, b1_ref, w2_ref, b2_ref,
                           cw1_ref, cb1_ref, cw2_ref, cb2_ref,
                           tw_ref, tb_ref,
                           out_ref,
                           pad_a, pad_b,
                           *, H, W, C, n_blocks):
    Wp = W + 2
    M = H * Wp                       # rows of the "wide" conv-output layout
    inv_hw = 1.0 / float(H * W)

    # Validity mask for the wide layout: columns x == W, W+1 of every row are
    # wrap-around garbage; force them to zero so they (a) never pollute the
    # channel-attention mean and (b) land as zeros on the halo when stored.
    col = jax.lax.broadcasted_iota(jnp.int32, (M, 1), 0) % Wp
    valid = col < W

    def conv3x3(pad_ref, w9, bias):
        # 9 contiguous row-window taps (pl.ds views into the flat padded image)
        # -> one lane-dense K=9C contraction on the MXU.
        taps = [pad_ref[pl.ds(dy * Wp + dx, M), :]
                for dy in range(3) for dx in range(3)]
        patches = jnp.concatenate(taps, axis=-1)                     # [M, 9C]
        acc = jnp.dot(patches, w9, preferred_element_type=jnp.float32)
        return acc + bias                                            # [M, C]

    def store_interior(pad_ref, val):
        # val is [M, C] with zeros in the garbage columns, so this single write
        # covers exactly the interior and re-writes zeros onto the few halo
        # positions it touches -> the zero-halo invariant is preserved.
        pad_ref[pl.ds(Wp + 1, M), :] = val

    # ---- stage the input into the zero-halo padded buffer A -----------------
    pad_a[...] = jnp.zeros_like(pad_a)
    pad_b[...] = jnp.zeros_like(pad_b)
    x = x_ref[...].astype(jnp.float32)                               # [H, W, C]
    x_wide = jnp.concatenate(
        [x, jnp.zeros((H, 2, C), jnp.float32)], axis=1).reshape(M, C)
    store_interior(pad_a, x_wide)

    # ---- RCAB blocks, entirely in VMEM ---------------------------------------
    for blk in range(n_blocks):
        t = conv3x3(pad_a, w1_ref[blk], b1_ref[blk])                 # conv1
        t = jnp.where(valid, jnp.maximum(t, 0.0), 0.0)               # ReLU+mask
        store_interior(pad_b, t)

        r = conv3x3(pad_b, w2_ref[blk], b2_ref[blk])                 # conv2
        r = jnp.where(valid, r, 0.0)

        # channel-attention epilogue on the f32 accumulator
        y = jnp.sum(r, axis=0, keepdims=True) * inv_hw               # [1, C]
        z = jnp.dot(y, cw1_ref[blk], preferred_element_type=jnp.float32)
        z = jnp.maximum(z + cb1_ref[blk], 0.0)                       # [1, C//r]
        s = jnp.dot(z, cw2_ref[blk], preferred_element_type=jnp.float32)
        s = jax.nn.sigmoid(s + cb2_ref[blk])                         # [1, C]

        skip = pad_a[pl.ds(Wp + 1, M), :]                            # current res
        store_interior(pad_a, r * s + skip)                          # RCAB skip

    # ---- group tail conv + long skip ------------------------------------------
    tail = conv3x3(pad_a, tw_ref[...], tb_ref[...])                  # [M, C]
    tail = tail.reshape(H, Wp, C)[:, :W, :]                          # drop garbage
    out_ref[...] = (tail + x).astype(out_ref.dtype)


# ----------------------------------------------------------------------------
# Wrapper (pallas_call plumbing)
# ----------------------------------------------------------------------------
def residual_group_forward(x, params):
    """x: [N, H, W, C] f32; params from make_params (stacked per-block)."""
    N, H, W, C = x.shape
    nb = params["w1"].shape[0]
    Cr = params["ca_w1"].shape[-1]
    rows = (H + 2) * (W + 2) + 2     # +2 keeps the last tap window in bounds

    # [3,3,Cin,Cout] -> [9*Cin, Cout] contraction layout; biases -> [1, C].
    w1 = params["w1"].reshape(nb, 9 * C, C)
    w2 = params["w2"].reshape(nb, 9 * C, C)
    b1 = params["b1"].reshape(nb, 1, C)
    b2 = params["b2"].reshape(nb, 1, C)
    cb1 = params["ca_b1"].reshape(nb, 1, Cr)
    cb2 = params["ca_b2"].reshape(nb, 1, C)
    tw = params["tail_w"].reshape(9 * C, C)
    tb = params["tail_b"].reshape(1, C)

    kernel = functools.partial(_residual_group_kernel,
                               H=H, W=W, C=C, n_blocks=nb)

    def full(shape):
        return pl.BlockSpec(shape, lambda n: (0,) * len(shape))

    img = pl.BlockSpec((None, H, W, C), lambda n: (n, 0, 0, 0))

    return pl.pallas_call(
        kernel,
        out_shape=jax.ShapeDtypeStruct((N, H, W, C), x.dtype),
        grid=(N,),
        in_specs=[
            img,
            full((nb, 9 * C, C)), full((nb, 1, C)),
            full((nb, 9 * C, C)), full((nb, 1, C)),
            full((nb, C, Cr)), full((nb, 1, Cr)),
            full((nb, Cr, C)), full((nb, 1, C)),
            full((9 * C, C)), full((1, C)),
        ],
        out_specs=img,
        scratch_shapes=[
            pltpu.VMEM((rows, C), jnp.float32),   # padded "res" buffer
            pltpu.VMEM((rows, C), jnp.float32),   # padded intermediate buffer
        ],
        compiler_params=pltpu.CompilerParams(
            dimension_semantics=("parallel",)),
    )(x, w1, b1, w2, b2,
      params["ca_w1"], cb1, params["ca_w2"], cb2, tw, tb)


# ----------------------------------------------------------------------------
# Pure-JAX reference (correctness check)
# ----------------------------------------------------------------------------
def _conv3x3_ref(x, w, b):
    y = jax.lax.conv_general_dilated(
        x, w, window_strides=(1, 1), padding="SAME",
        dimension_numbers=("NHWC", "HWIO", "NHWC"))
    return y + b


def residual_group_ref(x, p):
    nb = p["w1"].shape[0]
    res = x
    for i in range(nb):
        r = jnp.maximum(_conv3x3_ref(res, p["w1"][i], p["b1"][i]), 0.0)
        r = _conv3x3_ref(r, p["w2"][i], p["b2"][i])
        y = jnp.mean(r, axis=(1, 2), keepdims=True)
        z = jnp.maximum(
            jnp.einsum("nhwc,cd->nhwd", y, p["ca_w1"][i]) + p["ca_b1"][i], 0.0)
        s = jax.nn.sigmoid(
            jnp.einsum("nhwd,dc->nhwc", z, p["ca_w2"][i]) + p["ca_b2"][i])
        res = r * s + res
    return _conv3x3_ref(res, p["tail_w"], p["tail_b"]) + x


# ----------------------------------------------------------------------------
# Deterministic parameter construction
# ----------------------------------------------------------------------------
def make_params(key, n_feat, reduction, n_resblocks):
    cr = max(n_feat // reduction, 1)
    nb = n_resblocks
    ks = jax.random.split(key, 8)

    def rnd(k, shape, scale):
        return jax.random.normal(k, shape, jnp.float32) * scale

    return {
        "w1": rnd(ks[0], (nb, 3, 3, n_feat, n_feat), 0.05),
        "b1": rnd(ks[1], (nb, n_feat), 0.05),
        "w2": rnd(ks[2], (nb, 3, 3, n_feat, n_feat), 0.05),
        "b2": rnd(ks[3], (nb, n_feat), 0.05),
        "ca_w1": rnd(ks[4], (nb, n_feat, cr), 0.1),
        "ca_b1": jnp.zeros((nb, cr), jnp.float32),
        "ca_w2": rnd(ks[5], (nb, cr, n_feat), 0.1),
        "ca_b2": jnp.zeros((nb, n_feat), jnp.float32),
        "tail_w": rnd(ks[6], (3, 3, n_feat, n_feat), 0.05),
        "tail_b": rnd(ks[7], (n_feat,), 0.05),
    }


if __name__ == "__main__":
    N, H, W, C = 2, 8, 8, 16
    reduction = 4            # keep n_feat // reduction >= 1 at small C
    n_resblocks = 2

    key = jax.random.PRNGKey(0)
    kx, kp = jax.random.split(key)
    x = jax.random.normal(kx, (N, H, W, C), jnp.float32)   # NHWC
    params = make_params(kp, C, reduction, n_resblocks)

    out = jax.block_until_ready(jax.jit(residual_group_forward)(x, params))
    ref = jax.block_until_ready(residual_group_ref(x, params))

    assert out.shape == (N, H, W, C)
    max_err = float(jnp.max(jnp.abs(out - ref)))
    assert jnp.allclose(out, ref, rtol=1e-4, atol=1e-4), max_err
    print("KERNEL_OK")
</pallas_src>

<mosaic_0001>
module attributes {stable_mosaic.version = 11 : i64} {
  func.func @_residual_group_kernel(%arg0: i32, %arg1: memref<1x8x8x16xf32, #tpu.memory_space<vmem>>, %arg2: memref<2x144x16xf32, #tpu.memory_space<vmem>>, %arg3: memref<2x1x16xf32, #tpu.memory_space<vmem>>, %arg4: memref<2x144x16xf32, #tpu.memory_space<vmem>>, %arg5: memref<2x1x16xf32, #tpu.memory_space<vmem>>, %arg6: memref<2x16x4xf32, #tpu.memory_space<vmem>>, %arg7: memref<2x1x4xf32, #tpu.memory_space<vmem>>, %arg8: memref<2x4x16xf32, #tpu.memory_space<vmem>>, %arg9: memref<2x1x16xf32, #tpu.memory_space<vmem>>, %arg10: memref<144x16xf32, #tpu.memory_space<vmem>>, %arg11: memref<1x16xf32, #tpu.memory_space<vmem>>, %arg12: memref<1x8x8x16xf32, #tpu.memory_space<vmem>>, %arg13: memref<102x16xf32, #tpu.memory_space<vmem>>, %arg14: memref<102x16xf32, #tpu.memory_space<vmem>>) attributes {dimension_semantics = [#tpu.dimension_semantics<parallel>], iteration_bounds = array<i64: 2>, scalar_prefetch = 0 : i64, scratch_operands = 2 : i64, tpu.core_type = #tpu.core_type<tc>, window_params = [{transform_indices = @transform_0, window_bounds = array<i64: 1, 8, 8, 16>}, {pipeline_mode = #tpu.pipeline_mode<synchronous>, transform_indices = @transform_1, window_bounds = array<i64: 2, 144, 16>}, {pipeline_mode = #tpu.pipeline_mode<synchronous>, transform_indices = @transform_2, window_bounds = array<i64: 2, 1, 16>}, {pipeline_mode = #tpu.pipeline_mode<synchronous>, transform_indices = @transform_3, window_bounds = array<i64: 2, 144, 16>}, {pipeline_mode = #tpu.pipeline_mode<synchronous>, transform_indices = @transform_4, window_bounds = array<i64: 2, 1, 16>}, {pipeline_mode = #tpu.pipeline_mode<synchronous>, transform_indices = @transform_5, window_bounds = array<i64: 2, 16, 4>}, {pipeline_mode = #tpu.pipeline_mode<synchronous>, transform_indices = @transform_6, window_bounds = array<i64: 2, 1, 4>}, {pipeline_mode = #tpu.pipeline_mode<synchronous>, transform_indices = @transform_7, window_bounds = array<i64: 2, 4, 16>}, {pipeline_mode = #tpu.pipeline_mode<synchronous>, transform_indices = @transform_8, window_bounds = array<i64: 2, 1, 16>}, {pipeline_mode = #tpu.pipeline_mode<synchronous>, transform_indices = @transform_9, window_bounds = array<i64: 144, 16>}, {pipeline_mode = #tpu.pipeline_mode<synchronous>, transform_indices = @transform_10, window_bounds = array<i64: 1, 16>}, {transform_indices = @transform_11, window_bounds = array<i64: 1, 8, 8, 16>}]} {
    %0 = tpu.iota {dimensions = array<i32: 0>} : vector<80x1xi32>
    %c10_i32 = arith.constant 10 : i32
    %c0_i32 = arith.constant 0 : i32
    %1 = arith.cmpi eq, %c10_i32, %c0_i32 : i32
    %c1_i32 = arith.constant 1 : i32
    %2 = arith.select %1, %c1_i32, %c10_i32 : i32
    %3 = vector.broadcast %2 : i32 to vector<80x1xi32>
    %4 = arith.remsi %0, %3 : vector<80x1xi32>
    %c0_i32_0 = arith.constant 0 : i32
    %5 = vector.broadcast %c0_i32_0 : i32 to vector<80x1xi32>
    %6 = arith.cmpi ne, %4, %5 : vector<80x1xi32>
    %c0_i32_1 = arith.constant 0 : i32
    %7 = vector.broadcast %c0_i32_1 : i32 to vector<80x1xi32>
    %8 = arith.cmpi slt, %4, %7 : vector<80x1xi32>
    %c0_i32_2 = arith.constant 0 : i32
    %9 = arith.cmpi slt, %2, %c0_i32_2 : i32
    %10 = vector.broadcast %9 : i1 to vector<80x1xi1>
    %11 = vector.broadcast %10 : vector<80x1xi1> to vector<80x1xi1>
    %12 = arith.xori %8, %11 : vector<80x1xi1>
    %13 = arith.andi %12, %6 : vector<80x1xi1>
    %14 = vector.broadcast %2 : i32 to vector<80x1xi32>
    %15 = arith.addi %4, %14 : vector<80x1xi32>
    %16 = arith.select %13, %15, %4 : vector<80x1xi1>, vector<80x1xi32>
    %c8_i32 = arith.constant 8 : i32
    %17 = vector.broadcast %c8_i32 : i32 to vector<80x1xi32>
    %18 = arith.cmpi slt, %16, %17 : vector<80x1xi32>
    %cst = arith.constant 0.000000e+00 : f32
    %19 = vector.broadcast %cst : f32 to vector<102x16xf32>
    %c0 = arith.constant 0 : index
    %c0_3 = arith.constant 0 : index
    %20 = vector.load %arg13[%c0, %c0_3] : memref<102x16xf32, #tpu.memory_space<vmem>>, vector<102x16xf32>
    tpu.vector_store %arg13[%c0, %c0_3], %19 {strides = array<i32>} : memref<102x16xf32, #tpu.memory_space<vmem>>, vector<102x16xf32>,
    %cst_4 = arith.constant 0.000000e+00 : f32
    %21 = vector.broadcast %cst_4 : f32 to vector<102x16xf32>
    %c0_5 = arith.constant 0 : index
    %c0_6 = arith.constant 0 : index
    %22 = vector.load %arg14[%c0_5, %c0_6] : memref<102x16xf32, #tpu.memory_space<vmem>>, vector<102x16xf32>
    tpu.vector_store %arg14[%c0_5, %c0_6], %21 {strides = array<i32>} : memref<102x16xf32, #tpu.memory_space<vmem>>, vector<102x16xf32>,
    %c0_7 = arith.constant 0 : index
    %c0_8 = arith.constant 0 : index
    %c0_9 = arith.constant 0 : index
    %c0_10 = arith.constant 0 : index
    %23 = vector.load %arg1[%c0_7, %c0_8, %c0_9, %c0_10] : memref<1x8x8x16xf32, #tpu.memory_space<vmem>>, vector<1x8x8x16xf32>
    %24 = vector.shape_cast %23 : vector<1x8x8x16xf32> to vector<8x8x16xf32>
    %cst_11 = arith.constant 0.000000e+00 : f32
    %25 = vector.broadcast %cst_11 : f32 to vector<8x2x16xf32>
    %26 = tpu.concatenate %24, %25 in 1 : vector<8x8x16xf32>, vector<8x2x16xf32> -> vector<8x10x16xf32>
    %27 = vector.shape_cast %26 : vector<8x10x16xf32> to vector<80x16xf32>
    %c11 = arith.constant 11 : index
    %c0_12 = arith.constant 0 : index
    %28 = vector.load %arg13[%c11, %c0_12] : memref<102x16xf32, #tpu.memory_space<vmem>>, vector<80x16xf32>
    tpu.vector_store %arg13[%c11, %c0_12], %27 {strides = array<i32>} : memref<102x16xf32, #tpu.memory_space<vmem>>, vector<80x16xf32>,
    %c0_13 = arith.constant 0 : index
    %c0_14 = arith.constant 0 : index
    %c0_15 = arith.constant 0 : index
    %29 = vector.load %arg2[%c0_13, %c0_14, %c0_15] : memref<2x144x16xf32, #tpu.memory_space<vmem>>, vector<1x144x16xf32>
    %30 = vector.shape_cast %29 : vector<1x144x16xf32> to vector<144x16xf32>
    %c0_16 = arith.constant 0 : index
    %c0_17 = arith.constant 0 : index
    %c0_18 = arith.constant 0 : index
    %31 = vector.load %arg3[%c0_16, %c0_17, %c0_18] : memref<2x1x16xf32, #tpu.memory_space<vmem>>, vector<1x1x16xf32>
    %32 = vector.shape_cast %31 : vector<1x1x16xf32> to vector<1x16xf32>
    %c0_19 = arith.constant 0 : index
    %c0_20 = arith.constant 0 : index
    %33 = vector.load %arg13[%c0_19, %c0_20] : memref<102x16xf32, #tpu.memory_space<vmem>>, vector<80x16xf32>
    %c1 = arith.constant 1 : index
    %c0_21 = arith.constant 0 : index
    %34 = vector.load %arg13[%c1, %c0_21] : memref<102x16xf32, #tpu.memory_space<vmem>>, vector<80x16xf32>
    %c2 = arith.constant 2 : index
    %c0_22 = arith.constant 0 : index
    %35 = vector.load %arg13[%c2, %c0_22] : memref<102x16xf32, #tpu.memory_space<vmem>>, vector<80x16xf32>
    %c10 = arith.constant 10 : index
    %c0_23 = arith.constant 0 : index
    %36 = vector.load %arg13[%c10, %c0_23] : memref<102x16xf32, #tpu.memory_space<vmem>>, vector<80x16xf32>
    %c11_24 = arith.constant 11 : index
    %c0_25 = arith.constant 0 : index
    %37 = vector.load %arg13[%c11_24, %c0_25] : memref<102x16xf32, #tpu.memory_space<vmem>>, vector<80x16xf32>
    %c12 = arith.constant 12 : index
    %c0_26 = arith.constant 0 : index
    %38 = vector.load %arg13[%c12, %c0_26] : memref<102x16xf32, #tpu.memory_space<vmem>>, vector<80x16xf32>
    %c20 = arith.constant 20 : index
    %c0_27 = arith.constant 0 : index
    %39 = vector.load %arg13[%c20, %c0_27] : memref<102x16xf32, #tpu.memory_space<vmem>>, vector<80x16xf32>
    %c21 = arith.constant 21 : index
    %c0_28 = arith.constant 0 : index
    %40 = vector.load %arg13[%c21, %c0_28] : memref<102x16xf32, #tpu.memory_space<vmem>>, vector<80x16xf32>
    %c22 = arith.constant 22 : index
    %c0_29 = arith.constant 0 : index
    %41 = vector.load %arg13[%c22, %c0_29] : memref<102x16xf32, #tpu.memory_space<vmem>>, vector<80x16xf32>
    %42 = tpu.concatenate %33, %34, %35, %36, %37, %38, %39, %40, %41 in 1 : vector<80x16xf32>, vector<80x16xf32>, vector<80x16xf32>, vector<80x16xf32>, vector<80x16xf32>, vector<80x16xf32>, vector<80x16xf32>, vector<80x16xf32>, vector<80x16xf32> -> vector<80x144xf32>
    %cst_30 = arith.constant dense<0.000000e+00> : vector<80x16xf32>
    %43 = tpu.matmul %42, %30, %cst_30 {dimension_numbers = #tpu.dot_dimension_numbers<[1], [0], [0], [1], [0, 0, 1, 1], [], []>} : vector<80x144xf32>, vector<144x16xf32>, vector<80x16xf32> -> vector<80x16xf32>
    %44 = vector.broadcast %32 : vector<1x16xf32> to vector<80x16xf32>
    %45 = arith.addf %43, %44 : vector<80x16xf32>
    %cst_31 = arith.constant 0.000000e+00 : f32
    %46 = vector.broadcast %cst_31 : f32 to vector<80x16xf32>
    %47 = arith.maximumf %45, %46 : vector<80x16xf32>
    %cst_32 = arith.constant 0.000000e+00 : f32
    %48 = vector.shape_cast %18 : vector<80x1xi1> to vector<80x1xi1>
    %49 = vector.broadcast %48 : vector<80x1xi1> to vector<80x16xi1>
    %50 = vector.broadcast %cst_32 : f32 to vector<80x16xf32>
    %51 = arith.select %49, %47, %50 : vector<80x16xi1>, vector<80x16xf32>
    %c11_33 = arith.constant 11 : index
    %c0_34 = arith.constant 0 : index
    %52 = vector.load %arg14[%c11_33, %c0_34] : memref<102x16xf32, #tpu.memory_space<vmem>>, vector<80x16xf32>
    tpu.vector_store %arg14[%c11_33, %c0_34], %51 {strides = array<i32>} : memref<102x16xf32, #tpu.memory_space<vmem>>, vector<80x16xf32>,
    %c0_35 = arith.constant 0 : index
    %c0_36 = arith.constant 0 : index
    %c0_37 = arith.constant 0 : index
    %53 = vector.load %arg4[%c0_35, %c0_36, %c0_37] : memref<2x144x16xf32, #tpu.memory_space<vmem>>, vector<1x144x16xf32>
    %54 = vector.shape_cast %53 : vector<1x144x16xf32> to vector<144x16xf32>
    %c0_38 = arith.constant 0 : index
    %c0_39 = arith.constant 0 : index
    %c0_40 = arith.constant 0 : index
    %55 = vector.load %arg5[%c0_38, %c0_39, %c0_40] : memref<2x1x16xf32, #tpu.memory_space<vmem>>, vector<1x1x16xf32>
    %56 = vector.shape_cast %55 : vector<1x1x16xf32> to vector<1x16xf32>
    %c0_41 = arith.constant 0 : index
    %c0_42 = arith.constant 0 : index
    %57 = vector.load %arg14[%c0_41, %c0_42] : memref<102x16xf32, #tpu.memory_space<vmem>>, vector<80x16xf32>
    %c1_43 = arith.constant 1 : index
    %c0_44 = arith.constant 0 : index
    %58 = vector.load %arg14[%c1_43, %c0_44] : memref<102x16xf32, #tpu.memory_space<vmem>>, vector<80x16xf32>
    %c2_45 = arith.constant 2 : index
    %c0_46 = arith.constant 0 : index
    %59 = vector.load %arg14[%c2_45, %c0_46] : memref<102x16xf32, #tpu.memory_space<vmem>>, vector<80x16xf32>
    %c10_47 = arith.constant 10 : index
    %c0_48 = arith.constant 0 : index
    %60 = vector.load %arg14[%c10_47, %c0_48] : memref<102x16xf32, #tpu.memory_space<vmem>>, vector<80x16xf32>
    %c11_49 = arith.constant 11 : index
    %c0_50 = arith.constant 0 : index
    %61 = vector.load %arg14[%c11_49, %c0_50] : memref<102x16xf32, #tpu.memory_space<vmem>>, vector<80x16xf32>
    %c12_51 = arith.constant 12 : index
    %c0_52 = arith.constant 0 : index
    %62 = vector.load %arg14[%c12_51, %c0_52] : memref<102x16xf32, #tpu.memory_space<vmem>>, vector<80x16xf32>
    %c20_53 = arith.constant 20 : index
    %c0_54 = arith.constant 0 : index
    %63 = vector.load %arg14[%c20_53, %c0_54] : memref<102x16xf32, #tpu.memory_space<vmem>>, vector<80x16xf32>
    %c21_55 = arith.constant 21 : index
    %c0_56 = arith.constant 0 : index
    %64 = vector.load %arg14[%c21_55, %c0_56] : memref<102x16xf32, #tpu.memory_space<vmem>>, vector<80x16xf32>
    %c22_57 = arith.constant 22 : index
    %c0_58 = arith.constant 0 : index
    %65 = vector.load %arg14[%c22_57, %c0_58] : memref<102x16xf32, #tpu.memory_space<vmem>>, vector<80x16xf32>
    %66 = tpu.concatenate %57, %58, %59, %60, %61, %62, %63, %64, %65 in 1 : vector<80x16xf32>, vector<80x16xf32>, vector<80x16xf32>, vector<80x16xf32>, vector<80x16xf32>, vector<80x16xf32>, vector<80x16xf32>, vector<80x16xf32>, vector<80x16xf32> -> vector<80x144xf32>
    %cst_59 = arith.constant dense<0.000000e+00> : vector<80x16xf32>
    %67 = tpu.matmul %66, %54, %cst_59 {dimension_numbers = #tpu.dot_dimension_numbers<[1], [0], [0], [1], [0, 0, 1, 1], [], []>} : vector<80x144xf32>, vector<144x16xf32>, vector<80x16xf32> -> vector<80x16xf32>
    %68 = vector.broadcast %56 : vector<1x16xf32> to vector<80x16xf32>
    %69 = arith.addf %67, %68 : vector<80x16xf32>
    %cst_60 = arith.constant 0.000000e+00 : f32
    %70 = vector.shape_cast %18 : vector<80x1xi1> to vector<80x1xi1>
    %71 = vector.broadcast %70 : vector<80x1xi1> to vector<80x16xi1>
    %72 = vector.broadcast %cst_60 : f32 to vector<80x16xf32>
    %73 = arith.select %71, %69, %72 : vector<80x16xi1>, vector<80x16xf32>
    %cst_61 = arith.constant dense<0.000000e+00> : vector<16xf32>
    %74 = vector.multi_reduction <add>, %73, %cst_61 [0] : vector<80x16xf32> to vector<16xf32>
    %75 = vector.shape_cast %74 : vector<16xf32> to vector<1x16xf32>
    %cst_62 = arith.constant 1.562500e-02 : f32
    %76 = vector.broadcast %cst_62 : f32 to vector<1x16xf32>
    %77 = arith.mulf %75, %76 : vector<1x16xf32>
    %c0_63 = arith.constant 0 : index
    %c0_64 = arith.constant 0 : index
    %c0_65 = arith.constant 0 : index
    %78 = vector.load %arg6[%c0_63, %c0_64, %c0_65] : memref<2x16x4xf32, #tpu.memory_space<vmem>>, vector<1x16x4xf32>
    %79 = vector.shape_cast %78 : vector<1x16x4xf32> to vector<16x4xf32>
    %cst_66 = arith.constant dense<0.000000e+00> : vector<1x4xf32>
    %80 = tpu.matmul %77, %79, %cst_66 {dimension_numbers = #tpu.dot_dimension_numbers<[1], [0], [0], [1], [0, 0, 1, 1], [], []>} : vector<1x16xf32>, vector<16x4xf32>, vector<1x4xf32> -> vector<1x4xf32>
    %c0_67 = arith.constant 0 : index
    %c0_68 = arith.constant 0 : index
    %c0_69 = arith.constant 0 : index
    %81 = vector.load %arg7[%c0_67, %c0_68, %c0_69] : memref<2x1x4xf32, #tpu.memory_space<vmem>>, vector<1x1x4xf32>
    %82 = vector.shape_cast %81 : vector<1x1x4xf32> to vector<1x4xf32>
    %83 = arith.addf %80, %82 : vector<1x4xf32>
    %cst_70 = arith.constant 0.000000e+00 : f32
    %84 = vector.broadcast %cst_70 : f32 to vector<1x4xf32>
    %85 = arith.maximumf %83, %84 : vector<1x4xf32>
    %c0_71 = arith.constant 0 : index
    %c0_72 = arith.constant 0 : index
    %c0_73 = arith.constant 0 : index
    %86 = vector.load %arg8[%c0_71, %c0_72, %c0_73] : memref<2x4x16xf32, #tpu.memory_space<vmem>>, vector<1x4x16xf32>
    %87 = vector.shape_cast %86 : vector<1x4x16xf32> to vector<4x16xf32>
    %cst_74 = arith.constant dense<0.000000e+00> : vector<1x16xf32>
    %88 = tpu.matmul %85, %87, %cst_74 {dimension_numbers = #tpu.dot_dimension_numbers<[1], [0], [0], [1], [0, 0, 1, 1], [], []>} : vector<1x4xf32>, vector<4x16xf32>, vector<1x16xf32> -> vector<1x16xf32>
    %c0_75 = arith.constant 0 : index
    %c0_76 = arith.constant 0 : index
    %c0_77 = arith.constant 0 : index
    %89 = vector.load %arg9[%c0_75, %c0_76, %c0_77] : memref<2x1x16xf32, #tpu.memory_space<vmem>>, vector<1x1x16xf32>
    %90 = vector.shape_cast %89 : vector<1x1x16xf32> to vector<1x16xf32>
    %91 = arith.addf %88, %90 : vector<1x16xf32>
    %92 = arith.negf %91 : vector<1x16xf32>
    %93 = math.exp %92 : vector<1x16xf32>
    %cst_78 = arith.constant 1.000000e+00 : f32
    %94 = vector.broadcast %cst_78 : f32 to vector<1x16xf32>
    %95 = arith.addf %94, %93 : vector<1x16xf32>
    %96 = arith.divf %94, %95 : vector<1x16xf32>
    %c11_79 = arith.constant 11 : index
    %c0_80 = arith.constant 0 : index
    %97 = vector.load %arg13[%c11_79, %c0_80] : memref<102x16xf32, #tpu.memory_space<vmem>>, vector<80x16xf32>
    %98 = vector.broadcast %96 : vector<1x16xf32> to vector<80x16xf32>
    %99 = arith.mulf %73, %98 : vector<80x16xf32>
    %100 = arith.addf %99, %97 : vector<80x16xf32>
    %c11_81 = arith.constant 11 : index
    %c0_82 = arith.constant 0 : index
    %101 = vector.load %arg13[%c11_81, %c0_82] : memref<102x16xf32, #tpu.memory_space<vmem>>, vector<80x16xf32>
    tpu.vector_store %arg13[%c11_81, %c0_82], %100 {strides = array<i32>} : memref<102x16xf32, #tpu.memory_space<vmem>>, vector<80x16xf32>,
    %c1_83 = arith.constant 1 : index
    %c0_84 = arith.constant 0 : index
    %c0_85 = arith.constant 0 : index
    %102 = vector.load %arg2[%c1_83, %c0_84, %c0_85] : memref<2x144x16xf32, #tpu.memory_space<vmem>>, vector<1x144x16xf32>
    %103 = vector.shape_cast %102 : vector<1x144x16xf32> to vector<144x16xf32>
    %c1_86 = arith.constant 1 : index
    %c0_87 = arith.constant 0 : index
    %c0_88 = arith.constant 0 : index
    %104 = vector.load %arg3[%c1_86, %c0_87, %c0_88] : memref<2x1x16xf32, #tpu.memory_space<vmem>>, vector<1x1x16xf32>
    %105 = vector.shape_cast %104 : vector<1x1x16xf32> to vector<1x16xf32>
    %c0_89 = arith.constant 0 : index
    %c0_90 = arith.constant 0 : index
    %106 = vector.load %arg13[%c0_89, %c0_90] : memref<102x16xf32, #tpu.memory_space<vmem>>, vector<80x16xf32>
    %c1_91 = arith.constant 1 : index
    %c0_92 = arith.constant 0 : index
    %107 = vector.load %arg13[%c1_91, %c0_92] : memref<102x16xf32, #tpu.memory_space<vmem>>, vector<80x16xf32>
    %c2_93 = arith.constant 2 : index
    %c0_94 = arith.constant 0 : index
    %108 = vector.load %arg13[%c2_93, %c0_94] : memref<102x16xf32, #tpu.memory_space<vmem>>, vector<80x16xf32>
    %c10_95 = arith.constant 10 : index
    %c0_96 = arith.constant 0 : index
    %109 = vector.load %arg13[%c10_95, %c0_96] : memref<102x16xf32, #tpu.memory_space<vmem>>, vector<80x16xf32>
    %c11_97 = arith.constant 11 : index
    %c0_98 = arith.constant 0 : index
    %110 = vector.load %arg13[%c11_97, %c0_98] : memref<102x16xf32, #tpu.memory_space<vmem>>, vector<80x16xf32>
    %c12_99 = arith.constant 12 : index
    %c0_100 = arith.constant 0 : index
    %111 = vector.load %arg13[%c12_99, %c0_100] : memref<102x16xf32, #tpu.memory_space<vmem>>, vector<80x16xf32>
    %c20_101 = arith.constant 20 : index
    %c0_102 = arith.constant 0 : index
    %112 = vector.load %arg13[%c20_101, %c0_102] : memref<102x16xf32, #tpu.memory_space<vmem>>, vector<80x16xf32>
    %c21_103 = arith.constant 21 : index
    %c0_104 = arith.constant 0 : index
    %113 = vector.load %arg13[%c21_103, %c0_104] : memref<102x16xf32, #tpu.memory_space<vmem>>, vector<80x16xf32>
    %c22_105 = arith.constant 22 : index
    %c0_106 = arith.constant 0 : index
    %114 = vector.load %arg13[%c22_105, %c0_106] : memref<102x16xf32, #tpu.memory_space<vmem>>, vector<80x16xf32>
    %115 = tpu.concatenate %106, %107, %108, %109, %110, %111, %112, %113, %114 in 1 : vector<80x16xf32>, vector<80x16xf32>, vector<80x16xf32>, vector<80x16xf32>, vector<80x16xf32>, vector<80x16xf32>, vector<80x16xf32>, vector<80x16xf32>, vector<80x16xf32> -> vector<80x144xf32>
    %cst_107 = arith.constant dense<0.000000e+00> : vector<80x16xf32>
    %116 = tpu.matmul %115, %103, %cst_107 {dimension_numbers = #tpu.dot_dimension_numbers<[1], [0], [0], [1], [0, 0, 1, 1], [], []>} : vector<80x144xf32>, vector<144x16xf32>, vector<80x16xf32> -> vector<80x16xf32>
    %117 = vector.broadcast %105 : vector<1x16xf32> to vector<80x16xf32>
    %118 = arith.addf %116, %117 : vector<80x16xf32>
    %cst_108 = arith.constant 0.000000e+00 : f32
    %119 = vector.broadcast %cst_108 : f32 to vector<80x16xf32>
    %120 = arith.maximumf %118, %119 : vector<80x16xf32>
    %cst_109 = arith.constant 0.000000e+00 : f32
    %121 = vector.shape_cast %18 : vector<80x1xi1> to vector<80x1xi1>
    %122 = vector.broadcast %121 : vector<80x1xi1> to vector<80x16xi1>
    %123 = vector.broadcast %cst_109 : f32 to vector<80x16xf32>
    %124 = arith.select %122, %120, %123 : vector<80x16xi1>, vector<80x16xf32>
    %c11_110 = arith.constant 11 : index
    %c0_111 = arith.constant 0 : index
    %125 = vector.load %arg14[%c11_110, %c0_111] : memref<102x16xf32, #tpu.memory_space<vmem>>, vector<80x16xf32>
    tpu.vector_store %arg14[%c11_110, %c0_111], %124 {strides = array<i32>} : memref<102x16xf32, #tpu.memory_space<vmem>>, vector<80x16xf32>,
    %c1_112 = arith.constant 1 : index
    %c0_113 = arith.constant 0 : index
    %c0_114 = arith.constant 0 : index
    %126 = vector.load %arg4[%c1_112, %c0_113, %c0_114] : memref<2x144x16xf32, #tpu.memory_space<vmem>>, vector<1x144x16xf32>
    %127 = vector.shape_cast %126 : vector<1x144x16xf32> to vector<144x16xf32>
    %c1_115 = arith.constant 1 : index
    %c0_116 = arith.constant 0 : index
    %c0_117 = arith.constant 0 : index
    %128 = vector.load %arg5[%c1_115, %c0_116, %c0_117] : memref<2x1x16xf32, #tpu.memory_space<vmem>>, vector<1x1x16xf32>
    %129 = vector.shape_cast %128 : vector<1x1x16xf32> to vector<1x16xf32>
    %c0_118 = arith.constant 0 : index
    %c0_119 = arith.constant 0 : index
    %130 = vector.load %arg14[%c0_118, %c0_119] : memref<102x16xf32, #tpu.memory_space<vmem>>, vector<80x16xf32>
    %c1_120 = arith.constant 1 : index
    %c0_121 = arith.constant 0 : index
    %131 = vector.load %arg14[%c1_120, %c0_121] : memref<102x16xf32, #tpu.memory_space<vmem>>, vector<80x16xf32>
    %c2_122 = arith.constant 2 : index
    %c0_123 = arith.constant 0 : index
    %132 = vector.load %arg14[%c2_122, %c0_123] : memref<102x16xf32, #tpu.memory_space<vmem>>, vector<80x16xf32>
    %c10_124 = arith.constant 10 : index
    %c0_125 = arith.constant 0 : index
    %133 = vector.load %arg14[%c10_124, %c0_125] : memref<102x16xf32, #tpu.memory_space<vmem>>, vector<80x16xf32>
    %c11_126 = arith.constant 11 : index
    %c0_127 = arith.constant 0 : index
    %134 = vector.load %arg14[%c11_126, %c0_127] : memref<102x16xf32, #tpu.memory_space<vmem>>, vector<80x16xf32>
    %c12_128 = arith.constant 12 : index
    %c0_129 = arith.constant 0 : index
    %135 = vector.load %arg14[%c12_128, %c0_129] : memref<102x16xf32, #tpu.memory_space<vmem>>, vector<80x16xf32>
    %c20_130 = arith.constant 20 : index
    %c0_131 = arith.constant 0 : index
    %136 = vector.load %arg14[%c20_130, %c0_131] : memref<102x16xf32, #tpu.memory_space<vmem>>, vector<80x16xf32>
    %c21_132 = arith.constant 21 : index
    %c0_133 = arith.constant 0 : index
    %137 = vector.load %arg14[%c21_132, %c0_133] : memref<102x16xf32, #tpu.memory_space<vmem>>, vector<80x16xf32>
    %c22_134 = arith.constant 22 : index
    %c0_135 = arith.constant 0 : index
    %138 = vector.load %arg14[%c22_134, %c0_135] : memref<102x16xf32, #tpu.memory_space<vmem>>, vector<80x16xf32>
    %139 = tpu.concatenate %130, %131, %132, %133, %134, %135, %136, %137, %138 in 1 : vector<80x16xf32>, vector<80x16xf32>, vector<80x16xf32>, vector<80x16xf32>, vector<80x16xf32>, vector<80x16xf32>, vector<80x16xf32>, vector<80x16xf32>, vector<80x16xf32> -> vector<80x144xf32>
    %cst_136 = arith.constant dense<0.000000e+00> : vector<80x16xf32>
    %140 = tpu.matmul %139, %127, %cst_136 {dimension_numbers = #tpu.dot_dimension_numbers<[1], [0], [0], [1], [0, 0, 1, 1], [], []>} : vector<80x144xf32>, vector<144x16xf32>, vector<80x16xf32> -> vector<80x16xf32>
    %141 = vector.broadcast %129 : vector<1x16xf32> to vector<80x16xf32>
    %142 = arith.addf %140, %141 : vector<80x16xf32>
    %cst_137 = arith.constant 0.000000e+00 : f32
    %143 = vector.shape_cast %18 : vector<80x1xi1> to vector<80x1xi1>
    %144 = vector.broadcast %143 : vector<80x1xi1> to vector<80x16xi1>
    %145 = vector.broadcast %cst_137 : f32 to vector<80x16xf32>
    %146 = arith.select %144, %142, %145 : vector<80x16xi1>, vector<80x16xf32>
    %cst_138 = arith.constant dense<0.000000e+00> : vector<16xf32>
    %147 = vector.multi_reduction <add>, %146, %cst_138 [0] : vector<80x16xf32> to vector<16xf32>
    %148 = vector.shape_cast %147 : vector<16xf32> to vector<1x16xf32>
    %cst_139 = arith.constant 1.562500e-02 : f32
    %149 = vector.broadcast %cst_139 : f32 to vector<1x16xf32>
    %150 = arith.mulf %148, %149 : vector<1x16xf32>
    %c1_140 = arith.constant 1 : index
    %c0_141 = arith.constant 0 : index
    %c0_142 = arith.constant 0 : index
    %151 = vector.load %arg6[%c1_140, %c0_141, %c0_142] : memref<2x16x4xf32, #tpu.memory_space<vmem>>, vector<1x16x4xf32>
    %152 = vector.shape_cast %151 : vector<1x16x4xf32> to vector<16x4xf32>
    %cst_143 = arith.constant dense<0.000000e+00> : vector<1x4xf32>
    %153 = tpu.matmul %150, %152, %cst_143 {dimension_numbers = #tpu.dot_dimension_numbers<[1], [0], [0], [1], [0, 0, 1, 1], [], []>} : vector<1x16xf32>, vector<16x4xf32>, vector<1x4xf32> -> vector<1x4xf32>
    %c1_144 = arith.constant 1 : index
    %c0_145 = arith.constant 0 : index
    %c0_146 = arith.constant 0 : index
    %154 = vector.load %arg7[%c1_144, %c0_145, %c0_146] : memref<2x1x4xf32, #tpu.memory_space<vmem>>, vector<1x1x4xf32>
    %155 = vector.shape_cast %154 : vector<1x1x4xf32> to vector<1x4xf32>
    %156 = arith.addf %153, %155 : vector<1x4xf32>
    %cst_147 = arith.constant 0.000000e+00 : f32
    %157 = vector.broadcast %cst_147 : f32 to vector<1x4xf32>
    %158 = arith.maximumf %156, %157 : vector<1x4xf32>
    %c1_148 = arith.constant 1 : index
    %c0_149 = arith.constant 0 : index
    %c0_150 = arith.constant 0 : index
    %159 = vector.load %arg8[%c1_148, %c0_149, %c0_150] : memref<2x4x16xf32, #tpu.memory_space<vmem>>, vector<1x4x16xf32>
    %160 = vector.shape_cast %159 : vector<1x4x16xf32> to vector<4x16xf32>
    %cst_151 = arith.constant dense<0.000000e+00> : vector<1x16xf32>
    %161 = tpu.matmul %158, %160, %cst_151 {dimension_numbers = #tpu.dot_dimension_numbers<[1], [0], [0], [1], [0, 0, 1, 1], [], []>} : vector<1x4xf32>, vector<4x16xf32>, vector<1x16xf32> -> vector<1x16xf32>
    %c1_152 = arith.constant 1 : index
    %c0_153 = arith.constant 0 : index
    %c0_154 = arith.constant 0 : index
    %162 = vector.load %arg9[%c1_152, %c0_153, %c0_154] : memref<2x1x16xf32, #tpu.memory_space<vmem>>, vector<1x1x16xf32>
    %163 = vector.shape_cast %162 : vector<1x1x16xf32> to vector<1x16xf32>
    %164 = arith.addf %161, %163 : vector<1x16xf32>
    %165 = arith.negf %164 : vector<1x16xf32>
    %166 = math.exp %165 : vector<1x16xf32>
    %cst_155 = arith.constant 1.000000e+00 : f32
    %167 = vector.broadcast %cst_155 : f32 to vector<1x16xf32>
    %168 = arith.addf %167, %166 : vector<1x16xf32>
    %169 = arith.divf %167, %168 : vector<1x16xf32>
    %c11_156 = arith.constant 11 : index
    %c0_157 = arith.constant 0 : index
    %170 = vector.load %arg13[%c11_156, %c0_157] : memref<102x16xf32, #tpu.memory_space<vmem>>, vector<80x16xf32>
    %171 = vector.broadcast %169 : vector<1x16xf32> to vector<80x16xf32>
    %172 = arith.mulf %146, %171 : vector<80x16xf32>
    %173 = arith.addf %172, %170 : vector<80x16xf32>
    %c11_158 = arith.constant 11 : index
    %c0_159 = arith.constant 0 : index
    %174 = vector.load %arg13[%c11_158, %c0_159] : memref<102x16xf32, #tpu.memory_space<vmem>>, vector<80x16xf32>
    tpu.vector_store %arg13[%c11_158, %c0_159], %173 {strides = array<i32>} : memref<102x16xf32, #tpu.memory_space<vmem>>, vector<80x16xf32>,
    %c0_160 = arith.constant 0 : index
    %c0_161 = arith.constant 0 : index
    %175 = vector.load %arg10[%c0_160, %c0_161] : memref<144x16xf32, #tpu.memory_space<vmem>>, vector<144x16xf32>
    %c0_162 = arith.constant 0 : index
    %c0_163 = arith.constant 0 : index
    %176 = vector.load %arg11[%c0_162, %c0_163] : memref<1x16xf32, #tpu.memory_space<vmem>>, vector<1x16xf32>
    %c0_164 = arith.constant 0 : index
    %c0_165 = arith.constant 0 : index
    %177 = vector.load %arg13[%c0_164, %c0_165] : memref<102x16xf32, #tpu.memory_space<vmem>>, vector<80x16xf32>
    %c1_166 = arith.constant 1 : index
    %c0_167 = arith.constant 0 : index
    %178 = vector.load %arg13[%c1_166, %c0_167] : memref<102x16xf32, #tpu.memory_space<vmem>>, vector<80x16xf32>
    %c2_168 = arith.constant 2 : index
    %c0_169 = arith.constant 0 : index
    %179 = vector.load %arg13[%c2_168, %c0_169] : memref<102x16xf32, #tpu.memory_space<vmem>>, vector<80x16xf32>
    %c10_170 = arith.constant 10 : index
    %c0_171 = arith.constant 0 : index
    %180 = vector.load %arg13[%c10_170, %c0_171] : memref<102x16xf32, #tpu.memory_space<vmem>>, vector<80x16xf32>
    %c11_172 = arith.constant 11 : index
    %c0_173 = arith.constant 0 : index
    %181 = vector.load %arg13[%c11_172, %c0_173] : memref<102x16xf32, #tpu.memory_space<vmem>>, vector<80x16xf32>
    %c12_174 = arith.constant 12 : index
    %c0_175 = arith.constant 0 : index
    %182 = vector.load %arg13[%c12_174, %c0_175] : memref<102x16xf32, #tpu.memory_space<vmem>>, vector<80x16xf32>
    %c20_176 = arith.constant 20 : index
    %c0_177 = arith.constant 0 : index
    %183 = vector.load %arg13[%c20_176, %c0_177] : memref<102x16xf32, #tpu.memory_space<vmem>>, vector<80x16xf32>
    %c21_178 = arith.constant 21 : index
    %c0_179 = arith.constant 0 : index
    %184 = vector.load %arg13[%c21_178, %c0_179] : memref<102x16xf32, #tpu.memory_space<vmem>>, vector<80x16xf32>
    %c22_180 = arith.constant 22 : index
    %c0_181 = arith.constant 0 : index
    %185 = vector.load %arg13[%c22_180, %c0_181] : memref<102x16xf32, #tpu.memory_space<vmem>>, vector<80x16xf32>
    %186 = tpu.concatenate %177, %178, %179, %180, %181, %182, %183, %184, %185 in 1 : vector<80x16xf32>, vector<80x16xf32>, vector<80x16xf32>, vector<80x16xf32>, vector<80x16xf32>, vector<80x16xf32>, vector<80x16xf32>, vector<80x16xf32>, vector<80x16xf32> -> vector<80x144xf32>
    %cst_182 = arith.constant dense<0.000000e+00> : vector<80x16xf32>
    %187 = tpu.matmul %186, %175, %cst_182 {dimension_numbers = #tpu.dot_dimension_numbers<[1], [0], [0], [1], [0, 0, 1, 1], [], []>} : vector<80x144xf32>, vector<144x16xf32>, vector<80x16xf32> -> vector<80x16xf32>
    %188 = vector.broadcast %176 : vector<1x16xf32> to vector<80x16xf32>
    %189 = arith.addf %187, %188 : vector<80x16xf32>
    %190 = vector.shape_cast %189 : vector<80x16xf32> to vector<8x10x16xf32>
    %191 = vector.extract_strided_slice %190 {offsets = [0, 0, 0], sizes = [8, 8, 16], strides = [1, 1, 1]} : vector<8x10x16xf32> to vector<8x8x16xf32>
    %192 = arith.addf %191, %24 : vector<8x8x16xf32>
    %c0_183 = arith.constant 0 : index
    %c0_184 = arith.constant 0 : index
    %c0_185 = arith.constant 0 : index
    %c0_186 = arith.constant 0 : index
    %193 = vector.load %arg12[%c0_183, %c0_184, %c0_185, %c0_186] : memref<1x8x8x16xf32, #tpu.memory_space<vmem>>, vector<1x8x8x16xf32>
    %194 = vector.shape_cast %193 : vector<1x8x8x16xf32> to vector<8x8x16xf32>
    %195 = vector.shape_cast %192 : vector<8x8x16xf32> to vector<1x8x8x16xf32>
    tpu.vector_store %arg12[%c0_183, %c0_184, %c0_185, %c0_186], %195 {strides = array<i32>} : memref<1x8x8x16xf32, #tpu.memory_space<vmem>>, vector<1x8x8x16xf32>,
    return
  }
  func.func @transform_0(%arg0: i32) -> (i32, i32, i32, i32) {
    %c0_i32 = arith.constant 0 : i32
    %c0_i32_0 = arith.constant 0 : i32
    %c0_i32_1 = arith.constant 0 : i32
    %c0_i32_2 = arith.constant 0 : i32
    return %arg0, %c0_i32, %c0_i32_0, %c0_i32_1 : i32, i32, i32, i32
  }
  func.func @transform_1(%arg0: i32) -> (i32, i32, i32) {
    %c0_i32 = arith.constant 0 : i32
    %c0_i32_0 = arith.constant 0 : i32
    %c0_i32_1 = arith.constant 0 : i32
    %c0_i32_2 = arith.constant 0 : i32
    return %c0_i32, %c0_i32_0, %c0_i32_1 : i32, i32, i32
  }
  func.func @transform_2(%arg0: i32) -> (i32, i32, i32) {
    %c0_i32 = arith.constant 0 : i32
    %c0_i32_0 = arith.constant 0 : i32
    %c0_i32_1 = arith.constant 0 : i32
    %c0_i32_2 = arith.constant 0 : i32
    return %c0_i32, %c0_i32_0, %c0_i32_1 : i32, i32, i32
  }
  func.func @transform_3(%arg0: i32) -> (i32, i32, i32) {
    %c0_i32 = arith.constant 0 : i32
    %c0_i32_0 = arith.constant 0 : i32
    %c0_i32_1 = arith.constant 0 : i32
    %c0_i32_2 = arith.constant 0 : i32
    return %c0_i32, %c0_i32_0, %c0_i32_1 : i32, i32, i32
  }
  func.func @transform_4(%arg0: i32) -> (i32, i32, i32) {
    %c0_i32 = arith.constant 0 : i32
    %c0_i32_0 = arith.constant 0 : i32
    %c0_i32_1 = arith.constant 0 : i32
    %c0_i32_2 = arith.constant 0 : i32
    return %c0_i32, %c0_i32_0, %c0_i32_1 : i32, i32, i32
  }
  func.func @transform_5(%arg0: i32) -> (i32, i32, i32) {
    %c0_i32 = arith.constant 0 : i32
    %c0_i32_0 = arith.constant 0 : i32
    %c0_i32_1 = arith.constant 0 : i32
    %c0_i32_2 = arith.constant 0 : i32
    return %c0_i32, %c0_i32_0, %c0_i32_1 : i32, i32, i32
  }
  func.func @transform_6(%arg0: i32) -> (i32, i32, i32) {
    %c0_i32 = arith.constant 0 : i32
    %c0_i32_0 = arith.constant 0 : i32
    %c0_i32_1 = arith.constant 0 : i32
    %c0_i32_2 = arith.constant 0 : i32
    return %c0_i32, %c0_i32_0, %c0_i32_1 : i32, i32, i32
  }
  func.func @transform_7(%arg0: i32) -> (i32, i32, i32) {
    %c0_i32 = arith.constant 0 : i32
    %c0_i32_0 = arith.constant 0 : i32
    %c0_i32_1 = arith.constant 0 : i32
    %c0_i32_2 = arith.constant 0 : i32
    return %c0_i32, %c0_i32_0, %c0_i32_1 : i32, i32, i32
  }
  func.func @transform_8(%arg0: i32) -> (i32, i32, i32) {
    %c0_i32 = arith.constant 0 : i32
    %c0_i32_0 = arith.constant 0 : i32
    %c0_i32_1 = arith.constant 0 : i32
    %c0_i32_2 = arith.constant 0 : i32
    return %c0_i32, %c0_i32_0, %c0_i32_1 : i32, i32, i32
  }
  func.func @transform_9(%arg0: i32) -> (i32, i32) {
    %c0_i32 = arith.constant 0 : i32
    %c0_i32_0 = arith.constant 0 : i32
    %c0_i32_1 = arith.constant 0 : i32
    return %c0_i32, %c0_i32_0 : i32, i32
  }
  func.func @transform_10(%arg0: i32) -> (i32, i32) {
    %c0_i32 = arith.constant 0 : i32
    %c0_i32_0 = arith.constant 0 : i32
    %c0_i32_1 = arith.constant 0 : i32
    return %c0_i32, %c0_i32_0 : i32, i32
  }
  func.func @transform_11(%arg0: i32) -> (i32, i32, i32, i32) {
    %c0_i32 = arith.constant 0 : i32
    %c0_i32_0 = arith.constant 0 : i32
    %c0_i32_1 = arith.constant 0 : i32
    %c0_i32_2 = arith.constant 0 : i32
    return %arg0, %c0_i32, %c0_i32_0, %c0_i32_1 : i32, i32, i32, i32
  }
}

</mosaic_0001>

<llo_original>
// kernel: residual_group_forward.1
$region0: #{residual_group_forward.1}
  #allocation0 [shape = 'u32[]', space=smem, size = 0x4, offset = 0x4, fixed_abs, tag = 'smem constant byte address 0x4 - core index']
  #allocation1 [shape = 'u32[144,128]{1,0:T(1,128)}', space=vmem, size = 0x12000, scoped, tag = 'internal scratch']
  #allocation2 [shape = 'f32[102,16]{1,0:T(8,128)}', space=vmem, size = 0xd000, scoped, tag = 'scratch operand']
  #allocation3 [shape = 'f32[102,16]{1,0:T(8,128)}', space=vmem, size = 0xd000, scoped, tag = 'scratch operand']
  %s0 = inlined_call_operand.hbm [shape: f32[2,8,8,16], index: 0, kind: input, shape index: {}]
  %s1 = inlined_call_operand.hbm [shape: f32[2,144,16], index: 1, kind: input, shape index: {}]
  %s2 = inlined_call_operand.vmem [shape: f32[2,1,16], index: 2, kind: input, shape index: {}]
  %s3 = inlined_call_operand.hbm [shape: f32[2,144,16], index: 3, kind: input, shape index: {}]
  %s4 = inlined_call_operand.vmem [shape: f32[2,1,16], index: 4, kind: input, shape index: {}]
  %s5 = inlined_call_operand.vmem [shape: f32[2,16,4], index: 5, kind: input, shape index: {}]
  %s6 = inlined_call_operand.vmem [shape: f32[2,1,4], index: 6, kind: input, shape index: {}]
  %s7 = inlined_call_operand.vmem [shape: f32[2,4,16], index: 7, kind: input, shape index: {}]
  %s8 = inlined_call_operand.vmem [shape: f32[2,1,16], index: 8, kind: input, shape index: {}]
  %s9 = inlined_call_operand.hbm [shape: f32[144,16], index: 9, kind: input, shape index: {}]
  %s10 = inlined_call_operand.vmem [shape: f32[1,16], index: 10, kind: input, shape index: {}]
  %s11 = inlined_call_operand.hbm [shape: f32[2,8,8,16], index: 11, kind: output, shape index: {}]
  %s12 = sld [smem:[#allocation0]]
  $region93: #{residual_group_forward.1} parent=0
    _
  %s14 = ssub.s32 1, %s12
  %s15 = scalar_select 0, %s14, %s12
  $region1: #{residual_group_forward.1} parent=0
    #allocation4 [shape = 'u8[65536]{0}', space=vmem, size = 0x10000, scoped, tag = 'input window, operand 0']
    #allocation5 [shape = 's32[2]{0}', space=sflag, size = 0x8, scoped, tag = 'scoped memory for residual_group_forward.1']
    #allocation6 [shape = 's32[2]{0}', space=sflag, size = 0x8, scoped, tag = 'scoped memory for residual_group_forward.1']
    #allocation7 [shape = 'u8[147456]{0}', space=vmem, size = 0x24000, scoped, tag = 'input window, operand 1, single buffered']
    #allocation8 [shape = 's32[1]{0}', space=sflag, size = 0x4, scoped, tag = 'scoped memory for residual_group_forward.1']
    #allocation9 [shape = 'u8[147456]{0}', space=vmem, size = 0x24000, scoped, tag = 'input window, operand 3, single buffered']
    #allocation10 [shape = 'u8[73728]{0}', space=vmem, size = 0x12000, scoped, tag = 'input window, operand 9, single buffered']
    #allocation11 [shape = 's32[1]{0}', space=sflag, size = 0x4, scoped, tag = 'scoped memory for residual_group_forward.1']
    #allocation12 [shape = 'u8[65536]{0}', space=vmem, size = 0x10000, scoped, tag = 'output window, operand 0']
    %16 = vsyncpa [#allocation5], 0
    %s17 = scalar_lea.sflag [#allocation5], 1
    %18 = vsyncpa %s17, 0
    %19 = vsyncpa [#allocation8], 0
    %20 = vsyncpa [#allocation11], 0
    %21 = vsyncpa [#allocation6], 0
    %s22 = scalar_lea.sflag [#allocation6], 1
    %23 = vsyncpa %s22, 0
    loop: start=0, step=1, limit=4
    $region2: #{residual_group_forward.1} parent=1 // loop_pre_header
      _
    $region3: #{residual_group_forward.1} parent=1 // loop_header
      %s25 = sphi 0, %s29
      %p26 = scmp.ge.s32.totalorder %s25, 4
      %s35 = sphi 0, %s37
      %s38 = sphi 0, %s35
      %s39 = sphi 0, %s38
      %s55 = sphi 0, %s39
      %s59 = sphi 0, %s59
      %s61 = sphi 0, %s59
      %s62 = sphi 0, %s61
      %s76 = sphi 0, %s62
      %s80 = sphi 0, %s80
      %s82 = sphi 0, %s80
      %s83 = sphi 0, %s82
      %s97 = sphi 0, %s83
      %s101 = sphi 0, %s101
      %s103 = sphi 0, %s101
      %s104 = sphi 0, %s103
      %s118 = sphi 0, %s104
      %s122 = sphi 0, %s122
      %s124 = sphi 0, %s122
      %s125 = sphi 0, %s124
      %s139 = sphi 0, %s125
      %s143 = sphi 0, %s143
      %s145 = sphi 0, %s143
      %s146 = sphi 0, %s145
      %s160 = sphi 0, %s146
      %s164 = sphi 0, %s164
      %s166 = sphi 0, %s164
      %s167 = sphi 0, %s166
      %s181 = sphi 0, %s167
      %s185 = sphi 0, %s185
      %s187 = sphi 0, %s185
      %s188 = sphi 0, %s187
      %s202 = sphi 0, %s188
      %s206 = sphi 0, %s206
      %s208 = sphi 0, %s206
      %s209 = sphi 0, %s208
      %s223 = sphi 0, %s209
      %s227 = sphi 0, %s227
      %s229 = sphi 0, %s227
      %s230 = sphi 0, %s229
      %s244 = sphi 0, %s230
      %s248 = sphi 0, %s248
      %s250 = sphi 0, %s248
      %s251 = sphi 0, %s250
      %s265 = sphi 0, %s251
      %s271 = sphi 0, %s273
      %s274 = sphi 0, %s271
      %s275 = sphi 0, %s274
      %s291 = sphi 0, %s275
    $region4: #{residual_group_forward.1} parent=1 // loop_header_branch
      %28 = sbr.rel (%p26) target = $region8
    $region5: #{residual_group_forward.1} parent=1 // loop_body
      %s30 = ssub.s32 %s25, 1
      %s31 = ssub.s32 %s25, 2
      %s32 = sadd.s32 %s25, 1
      %s33 = ssub.s32 %s25, %s32
      %p34 = scmp.eq.s32.totalorder %s33, 0
      %s36 = sadd.s32 %s35, 1
      %s37 = scalar_select %p34, %s35, %s36
      %p40 = pneg %p34
      %p41 = scmp.eq.s32.totalorder %s25, 1
      %p42 = por %p40, %p41
      %p43 = scmp.ne.s32.totalorder %s35, %s38
      %p44 = scmp.eq.s32.totalorder %s25, 0
      %p45 = por %p43, %p44
      %p46 = scmp.ne.s32.totalorder %s35, %s38
      %p47 = scmp.eq.s32.totalorder %s30, 1
      %p48 = por %p46, %p47
      %p49 = scmp.ne.s32.totalorder %s38, %s39
      %p50 = scmp.eq.s32.totalorder %s30, 0
      %p51 = por %p49, %p50
      %p52 = scmp.ne.s32.totalorder %s38, %s39
      %p53 = scmp.eq.s32.totalorder %s31, 1
      %p54 = por %p52, %p53
      %p56 = scmp.ne.s32.totalorder %s39, %s55
      %p57 = scmp.eq.s32.totalorder %s31, 0
      %p58 = por %p56, %p57
      %s60 = sadd.s32 %s59, 1
      %p63 = scmp.eq.s32.totalorder %s25, 1
      %p64 = scmp.ne.s32.totalorder %s59, %s61
      %p65 = scmp.eq.s32.totalorder %s25, 0
      %p66 = por %p64, %p65
      %p67 = scmp.ne.s32.totalorder %s59, %s61
      %p68 = scmp.eq.s32.totalorder %s30, 1
      %p69 = por %p67, %p68
      %p70 = scmp.ne.s32.totalorder %s61, %s62
      %p71 = scmp.eq.s32.totalorder %s30, 0
      %p72 = por %p70, %p71
      %p73 = scmp.ne.s32.totalorder %s61, %s62
      %p74 = scmp.eq.s32.totalorder %s31, 1
      %p75 = por %p73, %p74
      %p77 = scmp.ne.s32.totalorder %s62, %s76
      %p78 = scmp.eq.s32.totalorder %s31, 0
      %p79 = por %p77, %p78
      %s81 = sadd.s32 %s80, 1
      %p84 = scmp.eq.s32.totalorder %s25, 1
      %p85 = scmp.ne.s32.totalorder %s80, %s82
      %p86 = scmp.eq.s32.totalorder %s25, 0
      %p87 = por %p85, %p86
      %p88 = scmp.ne.s32.totalorder %s80, %s82
      %p89 = scmp.eq.s32.totalorder %s30, 1
      %p90 = por %p88, %p89
      %p91 = scmp.ne.s32.totalorder %s82, %s83
      %p92 = scmp.eq.s32.totalorder %s30, 0
      %p93 = por %p91, %p92
      %p94 = scmp.ne.s32.totalorder %s82, %s83
      %p95 = scmp.eq.s32.totalorder %s31, 1
      %p96 = por %p94, %p95
      %p98 = scmp.ne.s32.totalorder %s83, %s97
      %p99 = scmp.eq.s32.totalorder %s31, 0
      %p100 = por %p98, %p99
      %s102 = sadd.s32 %s101, 1
      %p105 = scmp.eq.s32.totalorder %s25, 1
      %p106 = scmp.ne.s32.totalorder %s101, %s103
      %p107 = scmp.eq.s32.totalorder %s25, 0
      %p108 = por %p106, %p107
      %p109 = scmp.ne.s32.totalorder %s101, %s103
      %p110 = scmp.eq.s32.totalorder %s30, 1
      %p111 = por %p109, %p110
      %p112 = scmp.ne.s32.totalorder %s103, %s104
      %p113 = scmp.eq.s32.totalorder %s30, 0
      %p114 = por %p112, %p113
      %p115 = scmp.ne.s32.totalorder %s103, %s104
      %p116 = scmp.eq.s32.totalorder %s31, 1
      %p117 = por %p115, %p116
      %p119 = scmp.ne.s32.totalorder %s104, %s118
      %p120 = scmp.eq.s32.totalorder %s31, 0
      %p121 = por %p119, %p120
      %s123 = sadd.s32 %s122, 1
      %p126 = scmp.eq.s32.totalorder %s25, 1
      %p127 = scmp.ne.s32.totalorder %s122, %s124
      %p128 = scmp.eq.s32.totalorder %s25, 0
      %p129 = por %p127, %p128
      %p130 = scmp.ne.s32.totalorder %s122, %s124
      %p131 = scmp.eq.s32.totalorder %s30, 1
      %p132 = por %p130, %p131
      %p133 = scmp.ne.s32.totalorder %s124, %s125
      %p134 = scmp.eq.s32.totalorder %s30, 0
      %p135 = por %p133, %p134
      %p136 = scmp.ne.s32.totalorder %s124, %s125
      %p137 = scmp.eq.s32.totalorder %s31, 1
      %p138 = por %p136, %p137
      %p140 = scmp.ne.s32.totalorder %s125, %s139
      %p141 = scmp.eq.s32.totalorder %s31, 0
      %p142 = por %p140, %p141
      %s144 = sadd.s32 %s143, 1
      %p147 = scmp.eq.s32.totalorder %s25, 1
      %p148 = scmp.ne.s32.totalorder %s143, %s145
      %p149 = scmp.eq.s32.totalorder %s25, 0
      %p150 = por %p148, %p149
      %p151 = scmp.ne.s32.totalorder %s143, %s145
      %p152 = scmp.eq.s32.totalorder %s30, 1
      %p153 = por %p151, %p152
      %p154 = scmp.ne.s32.totalorder %s145, %s146
      %p155 = scmp.eq.s32.totalorder %s30, 0
      %p156 = por %p154, %p155
      %p157 = scmp.ne.s32.totalorder %s145, %s146
      %p158 = scmp.eq.s32.totalorder %s31, 1
      %p159 = por %p157, %p158
      %p161 = scmp.ne.s32.totalorder %s146, %s160
      %p162 = scmp.eq.s32.totalorder %s31, 0
      %p163 = por %p161, %p162
      %s165 = sadd.s32 %s164, 1
      %p168 = scmp.eq.s32.totalorder %s25, 1
      %p169 = scmp.ne.s32.totalorder %s164, %s166
      %p170 = scmp.eq.s32.totalorder %s25, 0
      %p171 = por %p169, %p170
      %p172 = scmp.ne.s32.totalorder %s164, %s166
      %p173 = scmp.eq.s32.totalorder %s30, 1
      %p174 = por %p172, %p173
      %p175 = scmp.ne.s32.totalorder %s166, %s167
      %p176 = scmp.eq.s32.totalorder %s30, 0
      %p177 = por %p175, %p176
      %p178 = scmp.ne.s32.totalorder %s166, %s167
      %p179 = scmp.eq.s32.totalorder %s31, 1
      %p180 = por %p178, %p179
      %p182 = scmp.ne.s32.totalorder %s167, %s181
      %p183 = scmp.eq.s32.totalorder %s31, 0
      %p184 = por %p182, %p183
      %s186 = sadd.s32 %s185, 1
      %p189 = scmp.eq.s32.totalorder %s25, 1
      %p190 = scmp.ne.s32.totalorder %s185, %s187
      %p191 = scmp.eq.s32.totalorder %s25, 0
      %p192 = por %p190, %p191
      %p193 = scmp.ne.s32.totalorder %s185, %s187
      %p194 = scmp.eq.s32.totalorder %s30, 1
      %p195 = por %p193, %p194
      %p196 = scmp.ne.s32.totalorder %s187, %s188
      %p197 = scmp.eq.s32.totalorder %s30, 0
      %p198 = por %p196, %p197
      %p199 = scmp.ne.s32.totalorder %s187, %s188
      %p200 = scmp.eq.s32.totalorder %s31, 1
      %p201 = por %p199, %p200
      %p203 = scmp.ne.s32.totalorder %s188, %s202
      %p204 = scmp.eq.s32.totalorder %s31, 0
      %p205 = por %p203, %p204
      %s207 = sadd.s32 %s206, 1
      %p210 = scmp.eq.s32.totalorder %s25, 1
      %p211 = scmp.ne.s32.totalorder %s206, %s208
      %p212 = scmp.eq.s32.totalorder %s25, 0
      %p213 = por %p211, %p212
      %p214 = scmp.ne.s32.totalorder %s206, %s208
      %p215 = scmp.eq.s32.totalorder %s30, 1
      %p216 = por %p214, %p215
      %p217 = scmp.ne.s32.totalorder %s208, %s209
      %p218 = scmp.eq.s32.totalorder %s30, 0
      %p219 = por %p217, %p218
      %p220 = scmp.ne.s32.totalorder %s208, %s209
      %p221 = scmp.eq.s32.totalorder %s31, 1
      %p222 = por %p220, %p221
      %p224 = scmp.ne.s32.totalorder %s209, %s223
      %p225 = scmp.eq.s32.totalorder %s31, 0
      %p226 = por %p224, %p225
      %s228 = sadd.s32 %s227, 1
      %p231 = scmp.eq.s32.totalorder %s25, 1
      %p232 = scmp.ne.s32.totalorder %s227, %s229
      %p233 = scmp.eq.s32.totalorder %s25, 0
      %p234 = por %p232, %p233
      %p235 = scmp.ne.s32.totalorder %s227, %s229
      %p236 = scmp.eq.s32.totalorder %s30, 1
      %p237 = por %p235, %p236
      %p238 = scmp.ne.s32.totalorder %s229, %s230
      %p239 = scmp.eq.s32.totalorder %s30, 0
      %p240 = por %p238, %p239
      %p241 = scmp.ne.s32.totalorder %s229, %s230
      %p242 = scmp.eq.s32.totalorder %s31, 1
      %p243 = por %p241, %p242
      %p245 = scmp.ne.s32.totalorder %s230, %s244
      %p246 = scmp.eq.s32.totalorder %s31, 0
      %p247 = por %p245, %p246
      %s249 = sadd.s32 %s248, 1
      %p252 = scmp.eq.s32.totalorder %s25, 1
      %p253 = scmp.ne.s32.totalorder %s248, %s250
      %p254 = scmp.eq.s32.totalorder %s25, 0
      %p255 = por %p253, %p254
      %p256 = scmp.ne.s32.totalorder %s248, %s250
      %p257 = scmp.eq.s32.totalorder %s30, 1
      %p258 = por %p256, %p257
      %p259 = scmp.ne.s32.totalorder %s250, %s251
      %p260 = scmp.eq.s32.totalorder %s30, 0
      %p261 = por %p259, %p260
      %p262 = scmp.ne.s32.totalorder %s250, %s251
      %p263 = scmp.eq.s32.totalorder %s31, 1
      %p264 = por %p262, %p263
      %p266 = scmp.ne.s32.totalorder %s251, %s265
      %p267 = scmp.eq.s32.totalorder %s31, 0
      %p268 = por %p266, %p267
      %s269 = ssub.s32 %s25, %s32
      %p270 = scmp.eq.s32.totalorder %s269, 0
      %s272 = sadd.s32 %s271, 1
      %s273 = scalar_select %p270, %s271, %s272
      %p276 = pneg %p270
      %p277 = scmp.eq.s32.totalorder %s25, 1
      %p278 = por %p276, %p277
      %p279 = scmp.ne.s32.totalorder %s271, %s274
      %p280 = scmp.eq.s32.totalorder %s25, 0
      %p281 = por %p279, %p280
      %p282 = scmp.ne.s32.totalorder %s271, %s274
      %p283 = scmp.eq.s32.totalorder %s30, 1
      %p284 = por %p282, %p283
      %p285 = scmp.ne.s32.totalorder %s274, %s275
      %p286 = scmp.eq.s32.totalorder %s30, 0
      %p287 = por %p285, %p286
      %p288 = scmp.ne.s32.totalorder %s274, %s275
      %p289 = scmp.eq.s32.totalorder %s31, 1
      %p290 = por %p288, %p289
      %p292 = scmp.ne.s32.totalorder %s275, %s291
      %p293 = scmp.eq.s32.totalorder %s31, 0
      %p294 = por %p292, %p293
      %p295 = scmp.le.s32.totalorder 1, %s25
      %p296 = scmp.lt.s32.totalorder %s25, 3
      %p297 = pnand %p295, %p296
      %p298 = pneg %p297
      // Predicated region
      $region9: #{residual_group_forward.1} parent=5 // pred_check
        _
      $region10: #{residual_group_forward.1} parent=5 // pred_check_branch
        %300 = sbr.rel (%p297) target = $region12
      $region11: #{residual_group_forward.1} parent=5 // pred_region
        %s301 = ssub.s32 %s25, 1
        // Predicated region
        $region13: #{residual_group_forward.1} parent=11 // pred_check
          %p302 = pneg %p72
        $region14: #{residual_group_forward.1} parent=11 // pred_check_branch
          %304 = sbr.rel (%p302) target = $region16
        $region15: #{residual_group_forward.1} parent=11 // pred_region
          %s306 = ssub.s32 4608, 4608
          %307 = vsyncadd [#allocation8], %s306
          %s308 = sshll.u32 [#allocation7], 4
          %s309 = int_to_ptr.vmem [resolvable:$true] %s308
          %314 = dma.hbm_to_vmem [thread:$0]  %s1, 4608, %s309, [#allocation8], 128, 128, 8
        $region16: #{residual_group_forward.1} parent=11 // pred_fallthru
          _
        // Predicated region
        $region17: #{residual_group_forward.1} parent=11 // pred_check
          %p315 = pneg %p93
        $region18: #{residual_group_forward.1} parent=11 // pred_check_branch
          %317 = sbr.rel (%p315) target = $region20
        $region19: #{residual_group_forward.1} parent=11 // pred_region
          _
        $region20: #{residual_group_forward.1} parent=11 // pred_fallthru
          _
        // Predicated region
        $region21: #{residual_group_forward.1} parent=11 // pred_check
          %p318 = pneg %p114
        $region22: #{residual_group_forward.1} parent=11 // pred_check_branch
          %320 = sbr.rel (%p318) target = $region24
        $region23: #{residual_group_forward.1} parent=11 // pred_region
          %s322 = ssub.s32 4608, 4608
          %323 = vsyncadd [#allocation8], %s322
          %s324 = sshll.u32 [#allocation9], 4
          %s325 = int_to_ptr.vmem [resolvable:$true] %s324
          %330 = dma.hbm_to_vmem [thread:$0]  %s3, 4608, %s325, [#allocation8], 128, 128, 8
        $region24: #{residual_group_forward.1} parent=11 // pred_fallthru
          _
        // Predicated region
        $region25: #{residual_group_forward.1} parent=11 // pred_check
          %p331 = pneg %p135
        $region26: #{residual_group_forward.1} parent=11 // pred_check_branch
          %333 = sbr.rel (%p331) target = $region28
        $region27: #{residual_group_forward.1} parent=11 // pred_region
          _
        $region28: #{residual_group_forward.1} parent=11 // pred_fallthru
          _
        // Predicated region
        $region29: #{residual_group_forward.1} parent=11 // pred_check
          %p334 = pneg %p156
        $region30: #{residual_group_forward.1} parent=11 // pred_check_branch
          %336 = sbr.rel (%p334) target = $region32
        $region31: #{residual_group_forward.1} parent=11 // pred_region
          _
        $region32: #{residual_group_forward.1} parent=11 // pred_fallthru
          _
        // Predicated region
        $region33: #{residual_group_forward.1} parent=11 // pred_check
          %p337 = pneg %p177
        $region34: #{residual_group_forward.1} parent=11 // pred_check_branch
          %339 = sbr.rel (%p337) target = $region36
        $region35: #{residual_group_forward.1} parent=11 // pred_region
          _
        $region36: #{residual_group_forward.1} parent=11 // pred_fallthru
          _
        // Predicated region
        $region37: #{residual_group_forward.1} parent=11 // pred_check
          %p340 = pneg %p198
        $region38: #{residual_group_forward.1} parent=11 // pred_check_branch
          %342 = sbr.rel (%p340) target = $region40
        $region39: #{residual_group_forward.1} parent=11 // pred_region
          _
        $region40: #{residual_group_forward.1} parent=11 // pred_fallthru
          _
        // Predicated region
        $region41: #{residual_group_forward.1} parent=11 // pred_check
          %p343 = pneg %p219
        $region42: #{residual_group_forward.1} parent=11 // pred_check_branch
          %345 = sbr.rel (%p343) target = $region44
        $region43: #{residual_group_forward.1} parent=11 // pred_region
          _
        $region44: #{residual_group_forward.1} parent=11 // pred_fallthru
          _
        // Predicated region
        $region45: #{residual_group_forward.1} parent=11 // pred_check
          %p346 = pneg %p240
        $region46: #{residual_group_forward.1} parent=11 // pred_check_branch
          %348 = sbr.rel (%p346) target = $region48
        $region47: #{residual_group_forward.1} parent=11 // pred_region
          %s350 = ssub.s32 2304, 2304
          %351 = vsyncadd [#allocation11], %s350
          %s352 = sshll.u32 [#allocation10], 4
          %s353 = int_to_ptr.vmem [resolvable:$true] %s352
          %358 = dma.hbm_to_vmem [thread:$0]  %s9, 2304, %s353, [#allocation11], 128, 128, 8
        $region48: #{residual_group_forward.1} parent=11 // pred_fallthru
          _
        // Predicated region
        $region49: #{residual_group_forward.1} parent=11 // pred_check
          %p359 = pneg %p261
        $region50: #{residual_group_forward.1} parent=11 // pred_check_branch
          %361 = sbr.rel (%p359) target = $region52
        $region51: #{residual_group_forward.1} parent=11 // pred_region
          _
        $region52: #{residual_group_forward.1} parent=11 // pred_fallthru
          _
      $region12: #{residual_group_forward.1} parent=5 // pred_fallthru
        _
      %p362 = scmp.lt.s32.totalorder %s25, 2
      // Predicated region
      $region53: #{residual_group_forward.1} parent=5 // pred_check
        %p363 = pneg %p362
      $region54: #{residual_group_forward.1} parent=5 // pred_check_branch
        %365 = sbr.rel (%p363) target = $region56
      $region55: #{residual_group_forward.1} parent=5 // pred_region
        // Predicated region
        $region57: #{residual_group_forward.1} parent=55 // pred_check
          %p366 = pneg %p45
        $region58: #{residual_group_forward.1} parent=55 // pred_check_branch
          %368 = sbr.rel (%p366) target = $region60
        $region59: #{residual_group_forward.1} parent=55 // pred_region
          %s369 = sand.u32 %s35, 1
          %s370 = scalar_lea.sflag [#allocation5], %s369
          %s371 = sand.u32 %s35, 1
          %s372 = smul.addr %s371, 64
          %s373 = scalar_lea.vmem [#allocation4], %s372
          %s375 = ssub.s32 1024, 1024
          %376 = vsyncadd %s370, %s375
          %s377 = smul.addr %s25, 8
          %s378 = smul.addr %s377, 128
          %s379 = scalar_lea.hbm %s0, %s378
          %s380 = sshll.u32 %s373, 4
          %s381 = int_to_ptr.vmem [resolvable:$true] %s380
          %386 = dma.hbm_to_vmem [thread:$0]  %s379, 1024, %s381, %s370, 128, 128, 8
        $region60: #{residual_group_forward.1} parent=55 // pred_fallthru
          _
      $region56: #{residual_group_forward.1} parent=5 // pred_fallthru
        _
      %p387 = scmp.le.s32.totalorder 1, %s25
      %p388 = scmp.lt.s32.totalorder %s25, 3
      %p389 = pnand %p387, %p388
      %p390 = pneg %p389
      // Predicated region
      $region61: #{residual_group_forward.1} parent=5 // pred_check
        _
      $region62: #{residual_group_forward.1} parent=5 // pred_check_branch
        %392 = sbr.rel (%p389) target = $region64
      $region63: #{residual_group_forward.1} parent=5 // pred_region
        %s393 = ssub.s32 %s25, 1
        %s394 = sand.u32 %s38, 1
        %s395 = scalar_lea.sflag [#allocation5], %s394
        %s396 = sand.u32 %s38, 1
        %s397 = smul.addr %s396, 64
        %s398 = scalar_lea.vmem [#allocation4], %s397
        // Predicated region
        $region65: #{residual_group_forward.1} parent=63 // pred_check
          %p399 = pneg %p51
        $region66: #{residual_group_forward.1} parent=63 // pred_check_branch
          %401 = sbr.rel (%p399) target = $region68
        $region67: #{residual_group_forward.1} parent=63 // pred_region
          %402 = dma.done %s395, 1024
        $region68: #{residual_group_forward.1} parent=63 // pred_fallthru
          _
        // Predicated region
        $region69: #{residual_group_forward.1} parent=63 // pred_check
          %p403 = pneg %p72
        $region70: #{residual_group_forward.1} parent=63 // pred_check_branch
          %405 = sbr.rel (%p403) target = $region72
        $region71: #{residual_group_forward.1} parent=63 // pred_region
          %406 = dma.done [#allocation8], 4608
        $region72: #{residual_group_forward.1} parent=63 // pred_fallthru
          _
        // Predicated region
        $region73: #{residual_group_forward.1} parent=63 // pred_check
          %p407 = pneg %p114
        $region74: #{residual_group_forward.1} parent=63 // pred_check_branch
          %409 = sbr.rel (%p407) target = $region76
        $region75: #{residual_group_forward.1} parent=63 // pred_region
          %410 = dma.done [#allocation8], 4608
        $region76: #{residual_group_forward.1} parent=63 // pred_fallthru
          _
        // Predicated region
        $region77: #{residual_group_forward.1} parent=63 // pred_check
          %p411 = pneg %p240
        $region78: #{residual_group_forward.1} parent=63 // pred_check_branch
          %413 = sbr.rel (%p411) target = $region80
        $region79: #{residual_group_forward.1} parent=63 // pred_region
          %414 = dma.done [#allocation11], 2304
        $region80: #{residual_group_forward.1} parent=63 // pred_fallthru
          _
        %s415 = sand.u32 %s38, 1
        %s416 = scalar_lea.sflag [#allocation5], %s415
        %s417 = sand.u32 %s38, 1
        %s418 = smul.addr %s417, 64
        %s419 = scalar_lea.vmem [#allocation4], %s418
        %p420 = pneg %p51
        %p421 = pneg %p48
        %p422 = pneg %p72
        %p423 = pneg %p69
        %p424 = pneg %p93
        %p425 = pneg %p90
        %p426 = pneg %p114
        %p427 = pneg %p111
        %p428 = pneg %p135
        %p429 = pneg %p132
        %p430 = pneg %p156
        %p431 = pneg %p153
        %p432 = pneg %p177
        %p433 = pneg %p174
        %p434 = pneg %p198
        %p435 = pneg %p195
        %p436 = pneg %p219
        %p437 = pneg %p216
        %p438 = pneg %p240
        %p439 = pneg %p237
        %p440 = pneg %p261
        %p441 = pneg %p258
        %p442 = pneg %p287
        %p443 = pneg %p284
        %s444 = sand.u32 %s274, 1
        %s445 = scalar_lea.sflag [#allocation6], %s444
        %s446 = sand.u32 %s274, 1
        %s447 = smul.addr %s446, 64
        %s448 = scalar_lea.vmem [#allocation12], %s447
        %v449 = vlaneseq
        %v450 = vshrl.u32 %v449, 7
        %v451 = vadd.s32 %v450, 8
        %v452 = vadd.s32 %v450, 16
        %v453 = vadd.s32 %v450, 24
        %v454 = vadd.s32 %v450, 32
        %v455 = vadd.s32 %v450, 40
        %v456 = vadd.s32 %v450, 48
        %v457 = vadd.s32 %v450, 56
        %v458 = vadd.s32 %v450, 64
        %v459 = vadd.s32 %v450, 72
        %vm460 = vcmp.lt.s32.totalorder %v450, 0
        %v461 = vsub.s32 0, %v450
        %v462 = vsel %vm460, %v461, %v450
        %v463 = vmul.u32.u64.compose %v462, 3435973837
        %v464 = vextract.low.u32 %v463
        %v465 = vextract.high.u32 %v463
        %v466 = vshrl.u32 %v465, 3
        %v467 = vmul.u32 %v466, 10
        %v468 = vsub.s32 %v462, %v467
        %v469 = vsub.s32 0, %v468
        %v470 = vsel %vm460, %v469, %v468
        %vm471 = vcmp.lt.s32.totalorder %v451, 0
        %v472 = vsub.s32 0, %v451
        %v473 = vsel %vm471, %v472, %v451
        %v474 = vmul.u32.u64.compose %v473, 3435973837
        %v475 = vextract.low.u32 %v474
        %v476 = vextract.high.u32 %v474
        %v477 = vshrl.u32 %v476, 3
        %v478 = vmul.u32 %v477, 10
        %v479 = vsub.s32 %v473, %v478
        %v480 = vsub.s32 0, %v479
        %v481 = vsel %vm471, %v480, %v479
        %vm482 = vcmp.lt.s32.totalorder %v452, 0
        %v483 = vsub.s32 0, %v452
        %v484 = vsel %vm482, %v483, %v452
        %v485 = vmul.u32.u64.compose %v484, 3435973837
        %v486 = vextract.low.u32 %v485
        %v487 = vextract.high.u32 %v485
        %v488 = vshrl.u32 %v487, 3
        %v489 = vmul.u32 %v488, 10
        %v490 = vsub.s32 %v484, %v489
        %v491 = vsub.s32 0, %v490
        %v492 = vsel %vm482, %v491, %v490
        %vm493 = vcmp.lt.s32.totalorder %v453, 0
        %v494 = vsub.s32 0, %v453
        %v495 = vsel %vm493, %v494, %v453
        %v496 = vmul.u32.u64.compose %v495, 3435973837
        %v497 = vextract.low.u32 %v496
        %v498 = vextract.high.u32 %v496
        %v499 = vshrl.u32 %v498, 3
        %v500 = vmul.u32 %v499, 10
        %v501 = vsub.s32 %v495, %v500
        %v502 = vsub.s32 0, %v501
        %v503 = vsel %vm493, %v502, %v501
        %vm504 = vcmp.lt.s32.totalorder %v454, 0
        %v505 = vsub.s32 0, %v454
        %v506 = vsel %vm504, %v505, %v454
        %v507 = vmul.u32.u64.compose %v506, 3435973837
        %v508 = vextract.low.u32 %v507
        %v509 = vextract.high.u32 %v507
        %v510 = vshrl.u32 %v509, 3
        %v511 = vmul.u32 %v510, 10
        %v512 = vsub.s32 %v506, %v511
        %v513 = vsub.s32 0, %v512
        %v514 = vsel %vm504, %v513, %v512
        %vm515 = vcmp.lt.s32.totalorder %v455, 0
        %v516 = vsub.s32 0, %v455
        %v517 = vsel %vm515, %v516, %v455
        %v518 = vmul.u32.u64.compose %v517, 3435973837
        %v519 = vextract.low.u32 %v518
        %v520 = vextract.high.u32 %v518
        %v521 = vshrl.u32 %v520, 3
        %v522 = vmul.u32 %v521, 10
        %v523 = vsub.s32 %v517, %v522
        %v524 = vsub.s32 0, %v523
        %v525 = vsel %vm515, %v524, %v523
        %vm526 = vcmp.lt.s32.totalorder %v456, 0
        %v527 = vsub.s32 0, %v456
        %v528 = vsel %vm526, %v527, %v456
        %v529 = vmul.u32.u64.compose %v528, 3435973837
        %v530 = vextract.low.u32 %v529
        %v531 = vextract.high.u32 %v529
        %v532 = vshrl.u32 %v531, 3
        %v533 = vmul.u32 %v532, 10
        %v534 = vsub.s32 %v528, %v533
        %v535 = vsub.s32 0, %v534
        %v536 = vsel %vm526, %v535, %v534
        %vm537 = vcmp.lt.s32.totalorder %v457, 0
        %v538 = vsub.s32 0, %v457
        %v539 = vsel %vm537, %v538, %v457
        %v540 = vmul.u32.u64.compose %v539, 3435973837
        %v541 = vextract.low.u32 %v540
        %v542 = vextract.high.u32 %v540
        %v543 = vshrl.u32 %v542, 3
        %v544 = vmul.u32 %v543, 10
        %v545 = vsub.s32 %v539, %v544
        %v546 = vsub.s32 0, %v545
        %v547 = vsel %vm537, %v546, %v545
        %vm548 = vcmp.lt.s32.totalorder %v458, 0
        %v549 = vsub.s32 0, %v458
        %v550 = vsel %vm548, %v549, %v458
        %v551 = vmul.u32.u64.compose %v550, 3435973837
        %v552 = vextract.low.u32 %v551
        %v553 = vextract.high.u32 %v551
        %v554 = vshrl.u32 %v553, 3
        %v555 = vmul.u32 %v554, 10
        %v556 = vsub.s32 %v550, %v555
        %v557 = vsub.s32 0, %v556
        %v558 = vsel %vm548, %v557, %v556
        %vm559 = vcmp.lt.s32.totalorder %v459, 0
        %v560 = vsub.s32 0, %v459
        %v561 = vsel %vm559, %v560, %v459
        %v562 = vmul.u32.u64.compose %v561, 3435973837
        %v563 = vextract.low.u32 %v562
        %v564 = vextract.high.u32 %v562
        %v565 = vshrl.u32 %v564, 3
        %v566 = vmul.u32 %v565, 10
        %v567 = vsub.s32 %v561, %v566
        %v568 = vsub.s32 0, %v567
        %v569 = vsel %vm559, %v568, %v567
        %vm570 = vcmp.ne.s32.totalorder %v470, 0
        %vm571 = vcmp.ne.s32.totalorder %v481, 0
        %vm572 = vcmp.ne.s32.totalorder %v492, 0
        %vm573 = vcmp.ne.s32.totalorder %v503, 0
        %vm574 = vcmp.ne.s32.totalorder %v514, 0
        %vm575 = vcmp.ne.s32.totalorder %v525, 0
        %vm576 = vcmp.ne.s32.totalorder %v536, 0
        %vm577 = vcmp.ne.s32.totalorder %v547, 0
        %vm578 = vcmp.ne.s32.totalorder %v558, 0
        %vm579 = vcmp.ne.s32.totalorder %v569, 0
        %vm580 = vcmp.lt.s32.totalorder %v470, 0
        %vm581 = vcmp.lt.s32.totalorder %v481, 0
        %vm582 = vcmp.lt.s32.totalorder %v492, 0
        %vm583 = vcmp.lt.s32.totalorder %v503, 0
        %vm584 = vcmp.lt.s32.totalorder %v514, 0
        %vm585 = vcmp.lt.s32.totalorder %v525, 0
        %vm586 = vcmp.lt.s32.totalorder %v536, 0
        %vm587 = vcmp.lt.s32.totalorder %v547, 0
        %vm588 = vcmp.lt.s32.totalorder %v558, 0
        %vm589 = vcmp.lt.s32.totalorder %v569, 0
        %vm590 = vmand %vm580, %vm570
        %vm591 = vmand %vm581, %vm571
        %vm592 = vmand %vm582, %vm572
        %vm593 = vmand %vm583, %vm573
        %vm594 = vmand %vm584, %vm574
        %vm595 = vmand %vm585, %vm575
        %vm596 = vmand %vm586, %vm576
        %vm597 = vmand %vm587, %vm577
        %vm598 = vmand %vm588, %vm578
        %vm599 = vmand %vm589, %vm579
        %v600 = vadd.s32 %v470, 10
        %v601 = vadd.s32 %v481, 10
        %v602 = vadd.s32 %v492, 10
        %v603 = vadd.s32 %v503, 10
        %v604 = vadd.s32 %v514, 10
        %v605 = vadd.s32 %v525, 10
        %v606 = vadd.s32 %v536, 10
        %v607 = vadd.s32 %v547, 10
        %v608 = vadd.s32 %v558, 10
        %v609 = vadd.s32 %v569, 10
        %v610 = vsel %vm590, %v600, %v470
        %v611 = vsel %vm591, %v601, %v481
        %v612 = vsel %vm592, %v602, %v492
        %v613 = vsel %vm593, %v603, %v503
        %v614 = vsel %vm594, %v604, %v514
        %v615 = vsel %vm595, %v605, %v525
        %v616 = vsel %vm596, %v606, %v536
        %v617 = vsel %vm597, %v607, %v547
        %v618 = vsel %vm598, %v608, %v558
        %v619 = vsel %vm599, %v609, %v569
        %vm620 = vcmp.lt.s32.totalorder %v610, 8
        %vm621 = vcmp.lt.s32.totalorder %v611, 8
        %vm622 = vcmp.lt.s32.totalorder %v612, 8
        %vm623 = vcmp.lt.s32.totalorder %v613, 8
        %vm624 = vcmp.lt.s32.totalorder %v614, 8
        %vm625 = vcmp.lt.s32.totalorder %v615, 8
        %vm626 = vcmp.lt.s32.totalorder %v616, 8
        %vm627 = vcmp.lt.s32.totalorder %v617, 8
        %vm628 = vcmp.lt.s32.totalorder %v618, 8
        %vm629 = vcmp.lt.s32.totalorder %v619, 8
        %vm630 = vcmask 130048
        %631 = vst.msk [vmem:[#allocation2] sm:$0xff] %vm630, 0.0
        %632 = vst.msk [vmem:[#allocation2 + $0x8] sm:$0xff] %vm630, 0.0
        %633 = vst.msk [vmem:[#allocation2 + $0x10] sm:$0xff] %vm630, 0.0
        %634 = vst.msk [vmem:[#allocation2 + $0x18] sm:$0xff] %vm630, 0.0
        %635 = vst.msk [vmem:[#allocation2 + $0x20] sm:$0xff] %vm630, 0.0
        %636 = vst.msk [vmem:[#allocation2 + $0x28] sm:$0xff] %vm630, 0.0
        %637 = vst.msk [vmem:[#allocation2 + $0x30] sm:$0xff] %vm630, 0.0
        %638 = vst.msk [vmem:[#allocation2 + $0x38] sm:$0xff] %vm630, 0.0
        %639 = vst.msk [vmem:[#allocation2 + $0x40] sm:$0xff] %vm630, 0.0
        %640 = vst.msk [vmem:[#allocation2 + $0x48] sm:$0xff] %vm630, 0.0
        %641 = vst.msk [vmem:[#allocation2 + $0x50] sm:$0xff] %vm630, 0.0
        %642 = vst.msk [vmem:[#allocation2 + $0x58] sm:$0xff] %vm630, 0.0
        %vm643 = vcmask 128000
        %644 = vst.msk [vmem:[#allocation2 + $0x60] sm:$0x3f] %vm643, 0.0
        %645 = vst.msk [vmem:[#allocation3] sm:$0xff] %vm630, 0.0
        %646 = vst.msk [vmem:[#allocation3 + $0x8] sm:$0xff] %vm630, 0.0
        %647 = vst.msk [vmem:[#allocation3 + $0x10] sm:$0xff] %vm630, 0.0
        %648 = vst.msk [vmem:[#allocation3 + $0x18] sm:$0xff] %vm630, 0.0
        %649 = vst.msk [vmem:[#allocation3 + $0x20] sm:$0xff] %vm630, 0.0
        %650 = vst.msk [vmem:[#allocation3 + $0x28] sm:$0xff] %vm630, 0.0
        %651 = vst.msk [vmem:[#allocation3 + $0x30] sm:$0xff] %vm630, 0.0
        %652 = vst.msk [vmem:[#allocation3 + $0x38] sm:$0xff] %vm630, 0.0
        %653 = vst.msk [vmem:[#allocation3 + $0x40] sm:$0xff] %vm630, 0.0
        %654 = vst.msk [vmem:[#allocation3 + $0x48] sm:$0xff] %vm630, 0.0
        %655 = vst.msk [vmem:[#allocation3 + $0x50] sm:$0xff] %vm630, 0.0
        %656 = vst.msk [vmem:[#allocation3 + $0x58] sm:$0xff] %vm630, 0.0
        %657 = vst.msk [vmem:[#allocation3 + $0x60] sm:$0x3f] %vm643, 0.0
        %v658 = vld [vmem:[%s398] sm:$0xff]
        %v659 = vld [vmem:[%s398 + $0x8] sm:$0xff]
        %v660 = vld [vmem:[%s398 + $0x10] sm:$0xff]
        %v661 = vld [vmem:[%s398 + $0x18] sm:$0xff]
        %v662 = vld [vmem:[%s398 + $0x20] sm:$0xff]
        %v663 = vld [vmem:[%s398 + $0x28] sm:$0xff]
        %v664 = vld [vmem:[%s398 + $0x30] sm:$0xff]
        %v665 = vld [vmem:[%s398 + $0x38] sm:$0xff]
        %v675 = vcombine.high %v658, %v658
        %v677 = vunpack.c.l.s4 1983009808
        %v678 = vunpack.c.0.s8 %v677
        %v679 = vlaneseq
        %v680 = vshrl.u32 %v679, 7
        %v681 = vsub.s32 %v678, %v680
        %v682 = vrot.slane %v658, %v681
        %v684 = vunpack.c.l.s4 1983009808
        %v685 = vunpack.c.0.s8 %v684
        %v686 = vlaneseq
        %v687 = vshrl.u32 %v686, 7
        %v688 = vsub.s32 %v685, %v687
        %v689 = vrot.slane %v675, %v688
        %v690 = vcombine.high %v682, %v682
        %v691 = vcombine.high %v689, %v689
        %v693 = vunpack.c.l.s4 1983009808
        %v694 = vunpack.c.0.s8 %v693
        %v695 = vlaneseq
        %v696 = vshrl.u32 %v695, 7
        %v697 = vsub.s32 %v694, %v696
        %v698 = vrot.slane 0.0, %v697
        %v699 = vcombine.high %v659, %v659
        %v701 = vunpack.c.l.s4 1983009808
        %v702 = vunpack.c.0.s8 %v701
        %v703 = vlaneseq
        %v704 = vshrl.u32 %v703, 7
        %v705 = vsub.s32 %v702, %v704
        %v706 = vrot.slane %v659, %v705
        %v708 = vunpack.c.l.s4 1983009808
        %v709 = vunpack.c.0.s8 %v708
        %v710 = vlaneseq
        %v711 = vshrl.u32 %v710, 7
        %v712 = vsub.s32 %v709, %v711
        %v713 = vrot.slane %v699, %v712
        %v714 = vcombine.high %v706, %v706
        %v715 = vcombine.high %v713, %v713
        %v716 = vcombine.high %v660, %v660
        %v718 = vunpack.c.l.s4 1983009808
        %v719 = vunpack.c.0.s8 %v718
        %v720 = vlaneseq
        %v721 = vshrl.u32 %v720, 7
        %v722 = vsub.s32 %v719, %v721
        %v723 = vrot.slane %v660, %v722
        %v725 = vunpack.c.l.s4 1983009808
        %v726 = vunpack.c.0.s8 %v725
        %v727 = vlaneseq
        %v728 = vshrl.u32 %v727, 7
        %v729 = vsub.s32 %v726, %v728
        %v730 = vrot.slane %v716, %v729
        %v731 = vcombine.high %v723, %v723
        %v732 = vcombine.high %v730, %v730
        %v733 = vcombine.high %v661, %v661
        %v735 = vunpack.c.l.s4 1983009808
        %v736 = vunpack.c.0.s8 %v735
        %v737 = vlaneseq
        %v738 = vshrl.u32 %v737, 7
        %v739 = vsub.s32 %v736, %v738
        %v740 = vrot.slane %v661, %v739
        %v742 = vunpack.c.l.s4 1983009808
        %v743 = vunpack.c.0.s8 %v742
        %v744 = vlaneseq
        %v745 = vshrl.u32 %v744, 7
        %v746 = vsub.s32 %v743, %v745
        %v747 = vrot.slane %v733, %v746
        %v748 = vcombine.high %v740, %v740
        %v749 = vcombine.high %v747, %v747
        %v750 = vcombine.high %v662, %v662
        %v752 = vunpack.c.l.s4 1983009808
        %v753 = vunpack.c.0.s8 %v752
        %v754 = vlaneseq
        %v755 = vshrl.u32 %v754, 7
        %v756 = vsub.s32 %v753, %v755
        %v757 = vrot.slane %v662, %v756
        %v759 = vunpack.c.l.s4 1983009808
        %v760 = vunpack.c.0.s8 %v759
        %v761 = vlaneseq
        %v762 = vshrl.u32 %v761, 7
        %v763 = vsub.s32 %v760, %v762
        %v764 = vrot.slane %v750, %v763
        %v765 = vcombine.high %v757, %v757
        %v766 = vcombine.high %v764, %v764
        %v767 = vcombine.high %v663, %v663
        %v769 = vunpack.c.l.s4 1983009808
        %v770 = vunpack.c.0.s8 %v769
        %v771 = vlaneseq
        %v772 = vshrl.u32 %v771, 7
        %v773 = vsub.s32 %v770, %v772
        %v774 = vrot.slane %v663, %v773
        %v776 = vunpack.c.l.s4 1983009808
        %v777 = vunpack.c.0.s8 %v776
        %v778 = vlaneseq
        %v779 = vshrl.u32 %v778, 7
        %v780 = vsub.s32 %v777, %v779
        %v781 = vrot.slane %v767, %v780
        %v782 = vcombine.high %v774, %v774
        %v783 = vcombine.high %v781, %v781
        %v784 = vcombine.high %v664, %v664
        %v786 = vunpack.c.l.s4 1983009808
        %v787 = vunpack.c.0.s8 %v786
        %v788 = vlaneseq
        %v789 = vshrl.u32 %v788, 7
        %v790 = vsub.s32 %v787, %v789
        %v791 = vrot.slane %v664, %v790
        %v793 = vunpack.c.l.s4 1983009808
        %v794 = vunpack.c.0.s8 %v793
        %v795 = vlaneseq
        %v796 = vshrl.u32 %v795, 7
        %v797 = vsub.s32 %v794, %v796
        %v798 = vrot.slane %v784, %v797
        %v799 = vcombine.high %v791, %v791
        %v800 = vcombine.high %v798, %v798
        %v801 = vcombine.high %v665, %v665
        %v803 = vunpack.c.l.s4 1983009808
        %v804 = vunpack.c.0.s8 %v803
        %v805 = vlaneseq
        %v806 = vshrl.u32 %v805, 7
        %v807 = vsub.s32 %v804, %v806
        %v808 = vrot.slane %v665, %v807
        %v810 = vunpack.c.l.s4 1983009808
        %v811 = vunpack.c.0.s8 %v810
        %v812 = vlaneseq
        %v813 = vshrl.u32 %v812, 7
        %v814 = vsub.s32 %v811, %v813
        %v815 = vrot.slane %v801, %v814
        %v816 = vcombine.high %v808, %v808
        %v817 = vcombine.high %v815, %v815
        %v818 = vcombine.low %v682, %v690
        %v819 = vcombine.low %v689, %v691
        %v821 = vunpack.c.l.s4 1983009808
        %v822 = vunpack.c.0.s8 %v821
        %v823 = vlaneseq
        %v824 = vshrl.u32 %v823, 7
        %v825 = vsub.s32 %v822, %v824
        %v826 = vrot.slane %v818, %v825
        %v828 = vunpack.c.l.s4 1983009808
        %v829 = vunpack.c.0.s8 %v828
        %v830 = vlaneseq
        %v831 = vshrl.u32 %v830, 7
        %v832 = vsub.s32 %v829, %v831
        %v833 = vrot.slane %v819, %v832
        %v834 = vcombine.low %v826, %v833
        %v835 = vcombine.low %v698, %v706
        %v836 = vcombine.low %v714, %v713
        %v838 = vunpack.c.l.s4 1983009808
        %v839 = vunpack.c.0.s8 %v838
        %v840 = vlaneseq
        %v841 = vshrl.u32 %v840, 7
        %v842 = vsub.s32 %v839, %v841
        %v843 = vrot.slane %v835, %v842
        %v845 = vunpack.c.l.s4 1983009808
        %v846 = vunpack.c.0.s8 %v845
        %v847 = vlaneseq
        %v848 = vshrl.u32 %v847, 7
        %v849 = vsub.s32 %v846, %v848
        %v850 = vrot.slane %v836, %v849
        %v851 = vcombine.low %v843, %v850
        %v852 = vcombine.low %v715, %v698
        %v853 = vcombine.low %v723, %v731
        %v855 = vunpack.c.l.s4 1983009808
        %v856 = vunpack.c.0.s8 %v855
        %v857 = vlaneseq
        %v858 = vshrl.u32 %v857, 7
        %v859 = vsub.s32 %v856, %v858
        %v860 = vrot.slane %v852, %v859
        %v862 = vunpack.c.l.s4 1983009808
        %v863 = vunpack.c.0.s8 %v862
        %v864 = vlaneseq
        %v865 = vshrl.u32 %v864, 7
        %v866 = vsub.s32 %v863, %v865
        %v867 = vrot.slane %v853, %v866
        %v868 = vcombine.low %v860, %v867
        %v869 = vcombine.low %v730, %v732
        %v870 = vcombine.low %v698, %v740
        %v872 = vunpack.c.l.s4 1983009808
        %v873 = vunpack.c.0.s8 %v872
        %v874 = vlaneseq
        %v875 = vshrl.u32 %v874, 7
        %v876 = vsub.s32 %v873, %v875
        %v877 = vrot.slane %v869, %v876
        %v879 = vunpack.c.l.s4 1983009808
        %v880 = vunpack.c.0.s8 %v879
        %v881 = vlaneseq
        %v882 = vshrl.u32 %v881, 7
        %v883 = vsub.s32 %v880, %v882
        %v884 = vrot.slane %v870, %v883
        %v885 = vcombine.low %v877, %v884
        %v886 = vcombine.low %v748, %v747
        %v887 = vcombine.low %v749, %v698
        %v889 = vunpack.c.l.s4 1983009808
        %v890 = vunpack.c.0.s8 %v889
        %v891 = vlaneseq
        %v892 = vshrl.u32 %v891, 7
        %v893 = vsub.s32 %v890, %v892
        %v894 = vrot.slane %v886, %v893
        %v896 = vunpack.c.l.s4 1983009808
        %v897 = vunpack.c.0.s8 %v896
        %v898 = vlaneseq
        %v899 = vshrl.u32 %v898, 7
        %v900 = vsub.s32 %v897, %v899
        %v901 = vrot.slane %v887, %v900
        %v902 = vcombine.low %v894, %v901
        %v903 = vcombine.low %v757, %v765
        %v904 = vcombine.low %v764, %v766
        %v906 = vunpack.c.l.s4 1983009808
        %v907 = vunpack.c.0.s8 %v906
        %v908 = vlaneseq
        %v909 = vshrl.u32 %v908, 7
        %v910 = vsub.s32 %v907, %v909
        %v911 = vrot.slane %v903, %v910
        %v913 = vunpack.c.l.s4 1983009808
        %v914 = vunpack.c.0.s8 %v913
        %v915 = vlaneseq
        %v916 = vshrl.u32 %v915, 7
        %v917 = vsub.s32 %v914, %v916
        %v918 = vrot.slane %v904, %v917
        %v919 = vcombine.low %v911, %v918
        %v920 = vcombine.low %v698, %v774
        %v921 = vcombine.low %v782, %v781
        %v923 = vunpack.c.l.s4 1983009808
        %v924 = vunpack.c.0.s8 %v923
        %v925 = vlaneseq
        %v926 = vshrl.u32 %v925, 7
        %v927 = vsub.s32 %v924, %v926
        %v928 = vrot.slane %v920, %v927
        %v930 = vunpack.c.l.s4 1983009808
        %v931 = vunpack.c.0.s8 %v930
        %v932 = vlaneseq
        %v933 = vshrl.u32 %v932, 7
        %v934 = vsub.s32 %v931, %v933
        %v935 = vrot.slane %v921, %v934
        %v936 = vcombine.low %v928, %v935
        %v937 = vcombine.low %v783, %v698
        %v938 = vcombine.low %v791, %v799
        %v940 = vunpack.c.l.s4 1983009808
        %v941 = vunpack.c.0.s8 %v940
        %v942 = vlaneseq
        %v943 = vshrl.u32 %v942, 7
        %v944 = vsub.s32 %v941, %v943
        %v945 = vrot.slane %v937, %v944
        %v947 = vunpack.c.l.s4 1983009808
        %v948 = vunpack.c.0.s8 %v947
        %v949 = vlaneseq
        %v950 = vshrl.u32 %v949, 7
        %v951 = vsub.s32 %v948, %v950
        %v952 = vrot.slane %v938, %v951
        %v953 = vcombine.low %v945, %v952
        %v954 = vcombine.low %v798, %v800
        %v955 = vcombine.low %v698, %v808
        %v957 = vunpack.c.l.s4 1983009808
        %v958 = vunpack.c.0.s8 %v957
        %v959 = vlaneseq
        %v960 = vshrl.u32 %v959, 7
        %v961 = vsub.s32 %v958, %v960
        %v962 = vrot.slane %v954, %v961
        %v964 = vunpack.c.l.s4 1983009808
        %v965 = vunpack.c.0.s8 %v964
        %v966 = vlaneseq
        %v967 = vshrl.u32 %v966, 7
        %v968 = vsub.s32 %v965, %v967
        %v969 = vrot.slane %v955, %v968
        %v970 = vcombine.low %v962, %v969
        %v971 = vcombine.low %v816, %v815
        %v972 = vcombine.low %v817, %v698
        %v974 = vunpack.c.l.s4 1983009808
        %v975 = vunpack.c.0.s8 %v974
        %v976 = vlaneseq
        %v977 = vshrl.u32 %v976, 7
        %v978 = vsub.s32 %v975, %v977
        %v979 = vrot.slane %v971, %v978
        %v981 = vunpack.c.l.s4 1983009808
        %v982 = vunpack.c.0.s8 %v981
        %v983 = vlaneseq
        %v984 = vshrl.u32 %v983, 7
        %v985 = vsub.s32 %v982, %v984
        %v986 = vrot.slane %v972, %v985
        %v987 = vcombine.low %v979, %v986
        %998 = vst.msk [vmem:[#allocation2 + $0xb] sm:$0xff] %vm630, %v834
        %999 = vst.msk [vmem:[#allocation2 + $0x13] sm:$0xff] %vm630, %v851
        %1000 = vst.msk [vmem:[#allocation2 + $0x1b] sm:$0xff] %vm630, %v868
        %1001 = vst.msk [vmem:[#allocation2 + $0x23] sm:$0xff] %vm630, %v885
        %1002 = vst.msk [vmem:[#allocation2 + $0x2b] sm:$0xff] %vm630, %v902
        %1003 = vst.msk [vmem:[#allocation2 + $0x33] sm:$0xff] %vm630, %v919
        %1004 = vst.msk [vmem:[#allocation2 + $0x3b] sm:$0xff] %vm630, %v936
        %1005 = vst.msk [vmem:[#allocation2 + $0x43] sm:$0xff] %vm630, %v953
        %1006 = vst.msk [vmem:[#allocation2 + $0x4b] sm:$0xff] %vm630, %v970
        %1007 = vst.msk [vmem:[#allocation2 + $0x53] sm:$0xff] %vm630, %v987
        %v1008 = vld [vmem:[#allocation7] sm:$0xff]
        %v1009 = vld [vmem:[#allocation7 + $0x8] sm:$0xff]
        %v1010 = vld [vmem:[#allocation7 + $0x10] sm:$0xff]
        %v1011 = vld [vmem:[#allocation7 + $0x18] sm:$0xff]
        %v1012 = vld [vmem:[#allocation7 + $0x20] sm:$0xff]
        %v1013 = vld [vmem:[#allocation7 + $0x28] sm:$0xff]
        %v1014 = vld [vmem:[#allocation7 + $0x30] sm:$0xff]
        %v1015 = vld [vmem:[#allocation7 + $0x38] sm:$0xff]
        %v1016 = vld [vmem:[#allocation7 + $0x40] sm:$0xff]
        %v1017 = vld [vmem:[#allocation7 + $0x48] sm:$0xff]
        %v1018 = vld [vmem:[#allocation7 + $0x50] sm:$0xff]
        %v1019 = vld [vmem:[#allocation7 + $0x58] sm:$0xff]
        %v1020 = vld [vmem:[#allocation7 + $0x60] sm:$0xff]
        %v1021 = vld [vmem:[#allocation7 + $0x68] sm:$0xff]
        %v1022 = vld [vmem:[#allocation7 + $0x70] sm:$0xff]
        %v1023 = vld [vmem:[#allocation7 + $0x78] sm:$0xff]
        %v1024 = vld [vmem:[#allocation7 + $0x80] sm:$0xff]
        %v1025 = vld [vmem:[#allocation7 + $0x88] sm:$0xff]
        %v1026 = vld [vmem:[%s2] sm:$0x1]
        %v1027 = vld [vmem:[#allocation2] sm:$0xff]
        %v1028 = vld [vmem:[#allocation2 + $0x8] sm:$0xff]
        %v1029 = vld [vmem:[#allocation2 + $0x10] sm:$0xff]
        %v1030 = vld [vmem:[#allocation2 + $0x18] sm:$0xff]
        %v1031 = vld [vmem:[#allocation2 + $0x20] sm:$0xff]
        %v1032 = vld [vmem:[#allocation2 + $0x28] sm:$0xff]
        %v1033 = vld [vmem:[#allocation2 + $0x30] sm:$0xff]
        %v1034 = vld [vmem:[#allocation2 + $0x38] sm:$0xff]
        %v1035 = vld [vmem:[#allocation2 + $0x40] sm:$0xff]
        %v1036 = vld [vmem:[#allocation2 + $0x48] sm:$0xff]
        %v1037 = vld [vmem:[#allocation2 + $0x1] sm:$0xff]
        %v1038 = vld [vmem:[#allocation2 + $0x9] sm:$0xff]
        %v1039 = vld [vmem:[#allocation2 + $0x11] sm:$0xff]
        %v1040 = vld [vmem:[#allocation2 + $0x19] sm:$0xff]
        %v1041 = vld [vmem:[#allocation2 + $0x21] sm:$0xff]
        %v1042 = vld [vmem:[#allocation2 + $0x29] sm:$0xff]
        %v1043 = vld [vmem:[#allocation2 + $0x31] sm:$0xff]
        %v1044 = vld [vmem:[#allocation2 + $0x39] sm:$0xff]
        %v1045 = vld [vmem:[#allocation2 + $0x41] sm:$0xff]
        %v1046 = vld [vmem:[#allocation2 + $0x49] sm:$0xff]
        %v1047 = vld [vmem:[#allocation2 + $0x2] sm:$0xff]
        %v1048 = vld [vmem:[#allocation2 + $0xa] sm:$0xff]
        %v1049 = vld [vmem:[#allocation2 + $0x12] sm:$0xff]
        %v1050 = vld [vmem:[#allocation2 + $0x1a] sm:$0xff]
        %v1051 = vld [vmem:[#allocation2 + $0x22] sm:$0xff]
        %v1052 = vld [vmem:[#allocation2 + $0x2a] sm:$0xff]
        %v1053 = vld [vmem:[#allocation2 + $0x32] sm:$0xff]
        %v1054 = vld [vmem:[#allocation2 + $0x3a] sm:$0xff]
        %v1055 = vld [vmem:[#allocation2 + $0x42] sm:$0xff]
        %v1056 = vld [vmem:[#allocation2 + $0x4a] sm:$0xff]
        %v1057 = vld [vmem:[#allocation2 + $0x52] sm:$0xff]
        %v1058 = vld [vmem:[#allocation2 + $0xb] sm:$0xff]
        %v1059 = vld [vmem:[#allocation2 + $0x13] sm:$0xff]
        %v1060 = vld [vmem:[#allocation2 + $0x1b] sm:$0xff]
        %v1061 = vld [vmem:[#allocation2 + $0x23] sm:$0xff]
        %v1062 = vld [vmem:[#allocation2 + $0x2b] sm:$0xff]
        %v1063 = vld [vmem:[#allocation2 + $0x33] sm:$0xff]
        %v1064 = vld [vmem:[#allocation2 + $0x3b] sm:$0xff]
        %v1065 = vld [vmem:[#allocation2 + $0x43] sm:$0xff]
        %v1066 = vld [vmem:[#allocation2 + $0x4b] sm:$0xff]
        %v1067 = vld [vmem:[#allocation2 + $0x53] sm:$0xff]
        %v1068 = vld [vmem:[#allocation2 + $0xc] sm:$0xff]
        %v1069 = vld [vmem:[#allocation2 + $0x14] sm:$0xff]
        %v1070 = vld [vmem:[#allocation2 + $0x1c] sm:$0xff]
        %v1071 = vld [vmem:[#allocation2 + $0x24] sm:$0xff]
        %v1072 = vld [vmem:[#allocation2 + $0x2c] sm:$0xff]
        %v1073 = vld [vmem:[#allocation2 + $0x34] sm:$0xff]
        %v1074 = vld [vmem:[#allocation2 + $0x3c] sm:$0xff]
        %v1075 = vld [vmem:[#allocation2 + $0x44] sm:$0xff]
        %v1076 = vld [vmem:[#allocation2 + $0x4c] sm:$0xff]
        %v1077 = vld [vmem:[#allocation2 + $0x54] sm:$0xff]
        %v1078 = vld [vmem:[#allocation2 + $0x5c] sm:$0xff]
        %v1079 = vld [vmem:[#allocation2 + $0x15] sm:$0xff]
        %v1080 = vld [vmem:[#allocation2 + $0x1d] sm:$0xff]
        %v1081 = vld [vmem:[#allocation2 + $0x25] sm:$0xff]
        %v1082 = vld [vmem:[#allocation2 + $0x2d] sm:$0xff]
        %v1083 = vld [vmem:[#allocation2 + $0x35] sm:$0xff]
        %v1084 = vld [vmem:[#allocation2 + $0x3d] sm:$0xff]
        %v1085 = vld [vmem:[#allocation2 + $0x45] sm:$0xff]
        %v1086 = vld [vmem:[#allocation2 + $0x4d] sm:$0xff]
        %v1087 = vld [vmem:[#allocation2 + $0x55] sm:$0xff]
        %v1088 = vld [vmem:[#allocation2 + $0x5d] sm:$0xff]
        %v1089 = vld [vmem:[#allocation2 + $0x16] sm:$0xff]
        %v1090 = vld [vmem:[#allocation2 + $0x1e] sm:$0xff]
        %v1091 = vld [vmem:[#allocation2 + $0x26] sm:$0xff]
        %v1092 = vld [vmem:[#allocation2 + $0x2e] sm:$0xff]
        %v1093 = vld [vmem:[#allocation2 + $0x36] sm:$0xff]
        %v1094 = vld [vmem:[#allocation2 + $0x3e] sm:$0xff]
        %v1095 = vld [vmem:[#allocation2 + $0x46] sm:$0xff]
        %v1096 = vld [vmem:[#allocation2 + $0x4e] sm:$0xff]
        %v1097 = vld [vmem:[#allocation2 + $0x56] sm:$0xff]
        %v1098 = vld [vmem:[#allocation2 + $0x5e] sm:$0xff]
        %1109 = vrot.lane.b32.xlu0 %v1037, 16
        %v1110 = vpop.permute.xlu0 %1109
        %1111 = vrot.lane.b32.xlu0 %v1038, 16
        %v1112 = vpop.permute.xlu0 %1111
        %1113 = vrot.lane.b32.xlu0 %v1039, 16
        %v1114 = vpop.permute.xlu0 %1113
        %1115 = vrot.lane.b32.xlu0 %v1040, 16
        %v1116 = vpop.permute.xlu0 %1115
        %1117 = vrot.lane.b32.xlu0 %v1041, 16
        %v1118 = vpop.permute.xlu0 %1117
        %1119 = vrot.lane.b32.xlu0 %v1042, 16
        %v1120 = vpop.permute.xlu0 %1119
        %1121 = vrot.lane.b32.xlu0 %v1043, 16
        %v1122 = vpop.permute.xlu0 %1121
        %1123 = vrot.lane.b32.xlu0 %v1044, 16
        %v1124 = vpop.permute.xlu0 %1123
        %1125 = vrot.lane.b32.xlu0 %v1045, 16
        %v1126 = vpop.permute.xlu0 %1125
        %1127 = vrot.lane.b32.xlu0 %v1046, 16
        %v1128 = vpop.permute.xlu0 %1127
        %1149 = vrot.lane.b32.xlu0 %v1047, 32
        %v1150 = vpop.permute.xlu0 %1149
        %1151 = vrot.lane.b32.xlu0 %v1048, 32
        %v1152 = vpop.permute.xlu0 %1151
        %1153 = vrot.lane.b32.xlu0 %v1049, 32
        %v1154 = vpop.permute.xlu0 %1153
        %1155 = vrot.lane.b32.xlu0 %v1050, 32
        %v1156 = vpop.permute.xlu0 %1155
        %1157 = vrot.lane.b32.xlu0 %v1051, 32
        %v1158 = vpop.permute.xlu0 %1157
        %1159 = vrot.lane.b32.xlu0 %v1052, 32
        %v1160 = vpop.permute.xlu0 %1159
        %1161 = vrot.lane.b32.xlu0 %v1053, 32
        %v1162 = vpop.permute.xlu0 %1161
        %1163 = vrot.lane.b32.xlu0 %v1054, 32
        %v1164 = vpop.permute.xlu0 %1163
        %1165 = vrot.lane.b32.xlu0 %v1055, 32
        %v1166 = vpop.permute.xlu0 %1165
        %1167 = vrot.lane.b32.xlu0 %v1056, 32
        %v1168 = vpop.permute.xlu0 %1167
        %1180 = vrot.lane.b32.xlu0 %v1048, 48
        %v1181 = vpop.permute.xlu0 %1180
        %1182 = vrot.lane.b32.xlu0 %v1049, 48
        %v1183 = vpop.permute.xlu0 %1182
        %1184 = vrot.lane.b32.xlu0 %v1050, 48
        %v1185 = vpop.permute.xlu0 %1184
        %1186 = vrot.lane.b32.xlu0 %v1051, 48
        %v1187 = vpop.permute.xlu0 %1186
        %1188 = vrot.lane.b32.xlu0 %v1052, 48
        %v1189 = vpop.permute.xlu0 %1188
        %1190 = vrot.lane.b32.xlu0 %v1053, 48
        %v1191 = vpop.permute.xlu0 %1190
        %1192 = vrot.lane.b32.xlu0 %v1054, 48
        %v1193 = vpop.permute.xlu0 %1192
        %1194 = vrot.lane.b32.xlu0 %v1055, 48
        %v1195 = vpop.permute.xlu0 %1194
        %1196 = vrot.lane.b32.xlu0 %v1056, 48
        %v1197 = vpop.permute.xlu0 %1196
        %1198 = vrot.lane.b32.xlu0 %v1057, 48
        %v1199 = vpop.permute.xlu0 %1198
        %1220 = vrot.lane.b32.xlu0 %v1058, 64
        %v1221 = vpop.permute.xlu0 %1220
        %1222 = vrot.lane.b32.xlu0 %v1059, 64
        %v1223 = vpop.permute.xlu0 %1222
        %1224 = vrot.lane.b32.xlu0 %v1060, 64
        %v1225 = vpop.permute.xlu0 %1224
        %1226 = vrot.lane.b32.xlu0 %v1061, 64
        %v1227 = vpop.permute.xlu0 %1226
        %1228 = vrot.lane.b32.xlu0 %v1062, 64
        %v1229 = vpop.permute.xlu0 %1228
        %1230 = vrot.lane.b32.xlu0 %v1063, 64
        %v1231 = vpop.permute.xlu0 %1230
        %1232 = vrot.lane.b32.xlu0 %v1064, 64
        %v1233 = vpop.permute.xlu0 %1232
        %1234 = vrot.lane.b32.xlu0 %v1065, 64
        %v1235 = vpop.permute.xlu0 %1234
        %1236 = vrot.lane.b32.xlu0 %v1066, 64
        %v1237 = vpop.permute.xlu0 %1236
        %1238 = vrot.lane.b32.xlu0 %v1067, 64
        %v1239 = vpop.permute.xlu0 %1238
        %1260 = vrot.lane.b32.xlu0 %v1068, 80
        %v1261 = vpop.permute.xlu0 %1260
        %1262 = vrot.lane.b32.xlu0 %v1069, 80
        %v1263 = vpop.permute.xlu0 %1262
        %1264 = vrot.lane.b32.xlu0 %v1070, 80
        %v1265 = vpop.permute.xlu0 %1264
        %1266 = vrot.lane.b32.xlu0 %v1071, 80
        %v1267 = vpop.permute.xlu0 %1266
        %1268 = vrot.lane.b32.xlu0 %v1072, 80
        %v1269 = vpop.permute.xlu0 %1268
        %1270 = vrot.lane.b32.xlu0 %v1073, 80
        %v1271 = vpop.permute.xlu0 %1270
        %1272 = vrot.lane.b32.xlu0 %v1074, 80
        %v1273 = vpop.permute.xlu0 %1272
        %1274 = vrot.lane.b32.xlu0 %v1075, 80
        %v1275 = vpop.permute.xlu0 %1274
        %1276 = vrot.lane.b32.xlu0 %v1076, 80
        %v1277 = vpop.permute.xlu0 %1276
        %1278 = vrot.lane.b32.xlu0 %v1077, 80
        %v1279 = vpop.permute.xlu0 %1278
        %1291 = vrot.lane.b32.xlu0 %v1069, 96
        %v1292 = vpop.permute.xlu0 %1291
        %1293 = vrot.lane.b32.xlu0 %v1070, 96
        %v1294 = vpop.permute.xlu0 %1293
        %1295 = vrot.lane.b32.xlu0 %v1071, 96
        %v1296 = vpop.permute.xlu0 %1295
        %1297 = vrot.lane.b32.xlu0 %v1072, 96
        %v1298 = vpop.permute.xlu0 %1297
        %1299 = vrot.lane.b32.xlu0 %v1073, 96
        %v1300 = vpop.permute.xlu0 %1299
        %1301 = vrot.lane.b32.xlu0 %v1074, 96
        %v1302 = vpop.permute.xlu0 %1301
        %1303 = vrot.lane.b32.xlu0 %v1075, 96
        %v1304 = vpop.permute.xlu0 %1303
        %1305 = vrot.lane.b32.xlu0 %v1076, 96
        %v1306 = vpop.permute.xlu0 %1305
        %1307 = vrot.lane.b32.xlu0 %v1077, 96
        %v1308 = vpop.permute.xlu0 %1307
        %1309 = vrot.lane.b32.xlu0 %v1078, 96
        %v1310 = vpop.permute.xlu0 %1309
        %1331 = vrot.lane.b32.xlu0 %v1079, 112
        %v1332 = vpop.permute.xlu0 %1331
        %1333 = vrot.lane.b32.xlu0 %v1080, 112
        %v1334 = vpop.permute.xlu0 %1333
        %1335 = vrot.lane.b32.xlu0 %v1081, 112
        %v1336 = vpop.permute.xlu0 %1335
        %1337 = vrot.lane.b32.xlu0 %v1082, 112
        %v1338 = vpop.permute.xlu0 %1337
        %1339 = vrot.lane.b32.xlu0 %v1083, 112
        %v1340 = vpop.permute.xlu0 %1339
        %1341 = vrot.lane.b32.xlu0 %v1084, 112
        %v1342 = vpop.permute.xlu0 %1341
        %1343 = vrot.lane.b32.xlu0 %v1085, 112
        %v1344 = vpop.permute.xlu0 %1343
        %1345 = vrot.lane.b32.xlu0 %v1086, 112
        %v1346 = vpop.permute.xlu0 %1345
        %1347 = vrot.lane.b32.xlu0 %v1087, 112
        %v1348 = vpop.permute.xlu0 %1347
        %1349 = vrot.lane.b32.xlu0 %v1088, 112
        %v1350 = vpop.permute.xlu0 %1349
        %v1361 = vsel %vm630, %v1027, %v1110
        %v1362 = vsel %vm630, %v1028, %v1112
        %v1363 = vsel %vm630, %v1029, %v1114
        %v1364 = vsel %vm630, %v1030, %v1116
        %v1365 = vsel %vm630, %v1031, %v1118
        %v1366 = vsel %vm630, %v1032, %v1120
        %v1367 = vsel %vm630, %v1033, %v1122
        %v1368 = vsel %vm630, %v1034, %v1124
        %v1369 = vsel %vm630, %v1035, %v1126
        %v1370 = vsel %vm630, %v1036, %v1128
        %vm1371 = vcmask 261120
        %v1372 = vsel %vm1371, %v1361, %v1150
        %v1373 = vsel %vm1371, %v1362, %v1152
        %v1374 = vsel %vm1371, %v1363, %v1154
        %v1375 = vsel %vm1371, %v1364, %v1156
        %v1376 = vsel %vm1371, %v1365, %v1158
        %v1377 = vsel %vm1371, %v1366, %v1160
        %v1378 = vsel %vm1371, %v1367, %v1162
        %v1379 = vsel %vm1371, %v1368, %v1164
        %v1380 = vsel %vm1371, %v1369, %v1166
        %v1381 = vsel %vm1371, %v1370, %v1168
        %vm1382 = vcmask 392192
        %v1383 = vsel %vm1382, %v1372, %v1181
        %v1384 = vsel %vm1382, %v1373, %v1183
        %v1385 = vsel %vm1382, %v1374, %v1185
        %v1386 = vsel %vm1382, %v1375, %v1187
        %v1387 = vsel %vm1382, %v1376, %v1189
        %v1388 = vsel %vm1382, %v1377, %v1191
        %v1389 = vsel %vm1382, %v1378, %v1193
        %v1390 = vsel %vm1382, %v1379, %v1195
        %v1391 = vsel %vm1382, %v1380, %v1197
        %v1392 = vsel %vm1382, %v1381, %v1199
        %vm1393 = vcmask 523264
        %v1394 = vsel %vm1393, %v1383, %v1221
        %v1395 = vsel %vm1393, %v1384, %v1223
        %v1396 = vsel %vm1393, %v1385, %v1225
        %v1397 = vsel %vm1393, %v1386, %v1227
        %v1398 = vsel %vm1393, %v1387, %v1229
        %v1399 = vsel %vm1393, %v1388, %v1231
        %v1400 = vsel %vm1393, %v1389, %v1233
        %v1401 = vsel %vm1393, %v1390, %v1235
        %v1402 = vsel %vm1393, %v1391, %v1237
        %v1403 = vsel %vm1393, %v1392, %v1239
        %vm1404 = vcmask 654336
        %v1405 = vsel %vm1404, %v1394, %v1261
        %v1406 = vsel %vm1404, %v1395, %v1263
        %v1407 = vsel %vm1404, %v1396, %v1265
        %v1408 = vsel %vm1404, %v1397, %v1267
        %v1409 = vsel %vm1404, %v1398, %v1269
        %v1410 = vsel %vm1404, %v1399, %v1271
        %v1411 = vsel %vm1404, %v1400, %v1273
        %v1412 = vsel %vm1404, %v1401, %v1275
        %v1413 = vsel %vm1404, %v1402, %v1277
        %v1414 = vsel %vm1404, %v1403, %v1279
        %vm1415 = vcmask 785408
        %v1416 = vsel %vm1415, %v1405, %v1292
        %v1417 = vsel %vm1415, %v1406, %v1294
        %v1418 = vsel %vm1415, %v1407, %v1296
        %v1419 = vsel %vm1415, %v1408, %v1298
        %v1420 = vsel %vm1415, %v1409, %v1300
        %v1421 = vsel %vm1415, %v1410, %v1302
        %v1422 = vsel %vm1415, %v1411, %v1304
        %v1423 = vsel %vm1415, %v1412, %v1306
        %v1424 = vsel %vm1415, %v1413, %v1308
        %v1425 = vsel %vm1415, %v1414, %v1310
        %vm1426 = vcmask 916480
        %v1427 = vsel %vm1426, %v1416, %v1332
        %v1428 = vsel %vm1426, %v1417, %v1334
        %v1429 = vsel %vm1426, %v1418, %v1336
        %v1430 = vsel %vm1426, %v1419, %v1338
        %v1431 = vsel %vm1426, %v1420, %v1340
        %v1432 = vsel %vm1426, %v1421, %v1342
        %v1433 = vsel %vm1426, %v1422, %v1344
        %v1434 = vsel %vm1426, %v1423, %v1346
        %v1435 = vsel %vm1426, %v1424, %v1348
        %v1436 = vsel %vm1426, %v1425, %v1350
        %v1438 = vlaneseq
        %v1439 = vshrl.u32 %v1438, 7
        %v1440 = vsub.s32 0, %v1439
        %v1441 = vrot.slane %v1026, %v1440
        %v1444 = vsel %vm630, %v1089, 0
        %v1447 = vsel %vm630, %v1090, 0
        %v1450 = vsel %vm630, %v1091, 0
        %v1453 = vsel %vm630, %v1092, 0
        %v1456 = vsel %vm630, %v1093, 0
        %v1459 = vsel %vm630, %v1094, 0
        %v1462 = vsel %vm630, %v1095, 0
        %v1465 = vsel %vm630, %v1096, 0
        %v1468 = vsel %vm630, %v1097, 0
        %v1471 = vsel %vm630, %v1098, 0
        %1473 = vmatprep.subr.mxu0 0.0
        %1474 = vmatpush1.msra.mxu0 %v1008
        %1475 = vmatprep.subr.mxu0 0.0
        %1476 = vmatpush1.msra.mxu0 %v1009
        %1477 = vmatprep.subr.mxu0 0.0
        %1478 = vmatpush1.msra.mxu0 %v1010
        %1479 = vmatprep.subr.mxu0 0.0
        %1480 = vmatpush1.msra.mxu0 %v1011
        %1481 = vmatprep.subr.mxu0 0.0
        %1482 = vmatpush1.msra.mxu0 %v1012
        %1483 = vmatprep.subr.mxu0 0.0
        %1484 = vmatpush1.msra.mxu0 %v1013
        %1485 = vmatprep.subr.mxu0 0.0
        %1486 = vmatpush1.msra.mxu0 %v1014
        %1487 = vmatprep.subr.mxu0 0.0
        %1488 = vmatpush1.msra.mxu0 %v1015
        %1489 = vmatprep.subr.mxu0 0.0
        %1490 = vmatpush1.msra.mxu0 %v1016
        %1491 = vmatprep.subr.mxu0 0.0
        %1492 = vmatpush1.msra.mxu0 %v1017
        %1493 = vmatprep.subr.mxu0 0.0
        %1494 = vmatpush1.msra.mxu0 %v1018
        %1495 = vmatprep.subr.mxu0 0.0
        %1496 = vmatpush1.msra.mxu0 %v1019
        %1497 = vmatprep.subr.mxu0 0.0
        %1498 = vmatpush1.msra.mxu0 %v1020
        %1499 = vmatprep.subr.mxu0 0.0
        %1500 = vmatpush1.msra.mxu0 %v1021
        %1501 = vmatprep.subr.mxu0 0.0
        %1502 = vmatpush1.msra.mxu0 %v1022
        %1503 = vmatprep.subr.mxu0 0.0
        %1504 = vmatpush1.msra.mxu0 %v1023
        %1505 = vmatprep.subr.mxu0 0.0
        %1506 = vmatpush1.msra.mxu0 %v1024
        %1507 = vmatprep.subr.mxu0 0.0
        %1508 = vmatpush1.msra.mxu0 %v1025
        %1509 = vmatprep.subr.mxu0 0.0
        %1510 = vmatpush1.msra.mxu0 0.0
        %1511 = vmatprep.subr.mxu0 0.0
        %1512 = vmatpush1.msra.mxu0 0.0
        %1513 = vmatprep.subr.mxu0 0.0
        %1514 = vmatpush1.msra.mxu0 0.0
        %1515 = vmatprep.subr.mxu0 0.0
        %1516 = vmatpush1.msra.mxu0 0.0
        %1517 = vmatprep.subr.mxu0 0.0
        %1518 = vmatpush1.msra.mxu0 0.0
        %1519 = vmatprep.subr.mxu0 0.0
        %1520 = vmatpush1.msra.mxu0 0.0
        %1521 = vmatprep.subr.mxu0 0.0
        %1522 = vmatpush1.msra.mxu0 0.0
        %1523 = vmatprep.subr.mxu0 0.0
        %1524 = vmatpush1.msra.mxu0 0.0
        %1525 = vmatprep.subr.mxu0 0.0
        %1526 = vmatpush1.msra.mxu0 0.0
        %1527 = vmatprep.subr.mxu0 0.0
        %1528 = vmatpush1.msra.mxu0 0.0
        %1529 = vmatprep.subr.mxu0 0.0
        %1530 = vmatpush1.msra.mxu0 0.0
        %1531 = vmatprep.subr.mxu0 0.0
        %1532 = vmatpush1.msra.mxu0 0.0
        %1533 = vmatprep.subr.mxu0 0.0
        %1534 = vmatpush1.msra.mxu0 0.0
        %1535 = vmatprep.subr.mxu0 0.0
        %1536 = vmatpush1.msra.mxu0 0.0
        %1537 = vmatprep.mubr.f32.mxu0 %v1444
        %1538 = vmatmul.mubr.f32.gmra.mrb[0].mxu0 %v1427
        %v1539 = vpop.f32.mrb[0].mxu0
        %v1540 = vadd.f32 %v1441, %v1539
        %v1541 = vpop.f32.mrb[0].mxu0
        %1542 = vmatprep.mubr.f32.mxu0 %v1447
        %1543 = vmatmul.mubr.f32.gmra.mrb[0].mxu0 %v1428
        %v1544 = vpop.f32.mrb[0].mxu0
        %v1545 = vadd.f32 %v1441, %v1544
        %v1546 = vpop.f32.mrb[0].mxu0
        %1547 = vmatprep.mubr.f32.mxu0 %v1450
        %1548 = vmatmul.mubr.f32.gmra.mrb[0].mxu0 %v1429
        %v1549 = vpop.f32.mrb[0].mxu0
        %v1550 = vadd.f32 %v1441, %v1549
        %v1551 = vpop.f32.mrb[0].mxu0
        %1552 = vmatprep.mubr.f32.mxu0 %v1453
        %1553 = vmatmul.mubr.f32.gmra.mrb[0].mxu0 %v1430
        %v1554 = vpop.f32.mrb[0].mxu0
        %v1555 = vadd.f32 %v1441, %v1554
        %v1556 = vpop.f32.mrb[0].mxu0
        %1557 = vmatprep.mubr.f32.mxu0 %v1456
        %1558 = vmatmul.mubr.f32.gmra.mrb[0].mxu0 %v1431
        %v1559 = vpop.f32.mrb[0].mxu0
        %v1560 = vadd.f32 %v1441, %v1559
        %v1561 = vpop.f32.mrb[0].mxu0
        %1562 = vmatprep.mubr.f32.mxu0 %v1459
        %1563 = vmatmul.mubr.f32.gmra.mrb[0].mxu0 %v1432
        %v1564 = vpop.f32.mrb[0].mxu0
        %v1565 = vadd.f32 %v1441, %v1564
        %v1566 = vpop.f32.mrb[0].mxu0
        %1567 = vmatprep.mubr.f32.mxu0 %v1462
        %1568 = vmatmul.mubr.f32.gmra.mrb[0].mxu0 %v1433
        %v1569 = vpop.f32.mrb[0].mxu0
        %v1570 = vadd.f32 %v1441, %v1569
        %v1571 = vpop.f32.mrb[0].mxu0
        %1572 = vmatprep.mubr.f32.mxu0 %v1465
        %1573 = vmatmul.mubr.f32.gmra.mrb[0].mxu0 %v1434
        %v1574 = vpop.f32.mrb[0].mxu0
        %v1575 = vadd.f32 %v1441, %v1574
        %v1576 = vpop.f32.mrb[0].mxu0
        %1577 = vmatprep.mubr.f32.mxu0 %v1468
        %1578 = vmatmul.mubr.f32.gmra.mrb[0].mxu0 %v1435
        %v1579 = vpop.f32.mrb[0].mxu0
        %v1580 = vadd.f32 %v1441, %v1579
        %v1581 = vpop.f32.mrb[0].mxu0
        %1582 = vmatprep.mubr.f32.mxu0 %v1471
        %1583 = vmatmul.mubr.f32.gmra.mrb[0].mxu0 %v1436
        %v1584 = vpop.f32.mrb[0].mxu0
        %v1585 = vadd.f32 %v1441, %v1584
        %v1586 = vpop.f32.mrb[0].mxu0
        %1587 = vdwg.mxu0
        %v1588 = vmax.f32 %v1540, 0.0
        %v1589 = vmax.f32 %v1545, 0.0
        %v1590 = vmax.f32 %v1550, 0.0
        %v1591 = vmax.f32 %v1555, 0.0
        %v1592 = vmax.f32 %v1560, 0.0
        %v1593 = vmax.f32 %v1565, 0.0
        %v1594 = vmax.f32 %v1570, 0.0
        %v1595 = vmax.f32 %v1575, 0.0
        %v1596 = vmax.f32 %v1580, 0.0
        %v1597 = vmax.f32 %v1585, 0.0
        %v1598 = vsel %vm620, 1, 0
        %v1599 = vsel %vm621, 1, 0
        %v1600 = vsel %vm622, 1, 0
        %v1601 = vsel %vm623, 1, 0
        %v1602 = vsel %vm624, 1, 0
        %v1603 = vsel %vm625, 1, 0
        %v1604 = vsel %vm626, 1, 0
        %v1605 = vsel %vm627, 1, 0
        %v1606 = vsel %vm628, 1, 0
        %v1607 = vsel %vm629, 1, 0
        %vm1608 = vcmp.eq.s32.totalorder %v1598, 1
        %vm1609 = vcmp.eq.s32.totalorder %v1599, 1
        %vm1610 = vcmp.eq.s32.totalorder %v1600, 1
        %vm1611 = vcmp.eq.s32.totalorder %v1601, 1
        %vm1612 = vcmp.eq.s32.totalorder %v1602, 1
        %vm1613 = vcmp.eq.s32.totalorder %v1603, 1
        %vm1614 = vcmp.eq.s32.totalorder %v1604, 1
        %vm1615 = vcmp.eq.s32.totalorder %v1605, 1
        %vm1616 = vcmp.eq.s32.totalorder %v1606, 1
        %vm1617 = vcmp.eq.s32.totalorder %v1607, 1
        %v1618 = vsel %vm1608, %v1588, 0.0
        %v1619 = vsel %vm1609, %v1589, 0.0
        %v1620 = vsel %vm1610, %v1590, 0.0
        %v1621 = vsel %vm1611, %v1591, 0.0
        %v1622 = vsel %vm1612, %v1592, 0.0
        %v1623 = vsel %vm1613, %v1593, 0.0
        %v1624 = vsel %vm1614, %v1594, 0.0
        %v1625 = vsel %vm1615, %v1595, 0.0
        %v1626 = vsel %vm1616, %v1596, 0.0
        %v1627 = vsel %vm1617, %v1597, 0.0
        %1628 = vst.msk [vmem:[#allocation3 + $0xb] sm:$0xff] %vm630, %v1618
        %1629 = vst.msk [vmem:[#allocation3 + $0x13] sm:$0xff] %vm630, %v1619
        %1630 = vst.msk [vmem:[#allocation3 + $0x1b] sm:$0xff] %vm630, %v1620
        %1631 = vst.msk [vmem:[#allocation3 + $0x23] sm:$0xff] %vm630, %v1621
        %1632 = vst.msk [vmem:[#allocation3 + $0x2b] sm:$0xff] %vm630, %v1622
        %1633 = vst.msk [vmem:[#allocation3 + $0x33] sm:$0xff] %vm630, %v1623
        %1634 = vst.msk [vmem:[#allocation3 + $0x3b] sm:$0xff] %vm630, %v1624
        %1635 = vst.msk [vmem:[#allocation3 + $0x43] sm:$0xff] %vm630, %v1625
        %1636 = vst.msk [vmem:[#allocation3 + $0x4b] sm:$0xff] %vm630, %v1626
        %1637 = vst.msk [vmem:[#allocation3 + $0x53] sm:$0xff] %vm630, %v1627
        %v1638 = vld [vmem:[#allocation9] sm:$0xff]
        %v1639 = vld [vmem:[#allocation9 + $0x8] sm:$0xff]
        %v1640 = vld [vmem:[#allocation9 + $0x10] sm:$0xff]
        %v1641 = vld [vmem:[#allocation9 + $0x18] sm:$0xff]
        %v1642 = vld [vmem:[#allocation9 + $0x20] sm:$0xff]
        %v1643 = vld [vmem:[#allocation9 + $0x28] sm:$0xff]
        %v1644 = vld [vmem:[#allocation9 + $0x30] sm:$0xff]
        %v1645 = vld [vmem:[#allocation9 + $0x38] sm:$0xff]
        %v1646 = vld [vmem:[#allocation9 + $0x40] sm:$0xff]
        %v1647 = vld [vmem:[#allocation9 + $0x48] sm:$0xff]
        %v1648 = vld [vmem:[#allocation9 + $0x50] sm:$0xff]
        %v1649 = vld [vmem:[#allocation9 + $0x58] sm:$0xff]
        %v1650 = vld [vmem:[#allocation9 + $0x60] sm:$0xff]
        %v1651 = vld [vmem:[#allocation9 + $0x68] sm:$0xff]
        %v1652 = vld [vmem:[#allocation9 + $0x70] sm:$0xff]
        %v1653 = vld [vmem:[#allocation9 + $0x78] sm:$0xff]
        %v1654 = vld [vmem:[#allocation9 + $0x80] sm:$0xff]
        %v1655 = vld [vmem:[#allocation9 + $0x88] sm:$0xff]
        %v1656 = vld [vmem:[%s4] sm:$0x1]
        %v1657 = vld [vmem:[#allocation3] sm:$0xff]
        %v1658 = vld [vmem:[#allocation3 + $0x8] sm:$0xff]
        %v1659 = vld [vmem:[#allocation3 + $0x10] sm:$0xff]
        %v1660 = vld [vmem:[#allocation3 + $0x18] sm:$0xff]
        %v1661 = vld [vmem:[#allocation3 + $0x20] sm:$0xff]
        %v1662 = vld [vmem:[#allocation3 + $0x28] sm:$0xff]
        %v1663 = vld [vmem:[#allocation3 + $0x30] sm:$0xff]
        %v1664 = vld [vmem:[#allocation3 + $0x38] sm:$0xff]
        %v1665 = vld [vmem:[#allocation3 + $0x40] sm:$0xff]
        %v1666 = vld [vmem:[#allocation3 + $0x48] sm:$0xff]
        %v1667 = vld [vmem:[#allocation3 + $0x1] sm:$0xff]
        %v1668 = vld [vmem:[#allocation3 + $0x9] sm:$0xff]
        %v1669 = vld [vmem:[#allocation3 + $0x11] sm:$0xff]
        %v1670 = vld [vmem:[#allocation3 + $0x19] sm:$0xff]
        %v1671 = vld [vmem:[#allocation3 + $0x21] sm:$0xff]
        %v1672 = vld [vmem:[#allocation3 + $0x29] sm:$0xff]
        %v1673 = vld [vmem:[#allocation3 + $0x31] sm:$0xff]
        %v1674 = vld [vmem:[#allocation3 + $0x39] sm:$0xff]
        %v1675 = vld [vmem:[#allocation3 + $0x41] sm:$0xff]
        %v1676 = vld [vmem:[#allocation3 + $0x49] sm:$0xff]
        %v1677 = vld [vmem:[#allocation3 + $0x2] sm:$0xff]
        %v1678 = vld [vmem:[#allocation3 + $0xa] sm:$0xff]
        %v1679 = vld [vmem:[#allocation3 + $0x12] sm:$0xff]
        %v1680 = vld [vmem:[#allocation3 + $0x1a] sm:$0xff]
        %v1681 = vld [vmem:[#allocation3 + $0x22] sm:$0xff]
        %v1682 = vld [vmem:[#allocation3 + $0x2a] sm:$0xff]
        %v1683 = vld [vmem:[#allocation3 + $0x32] sm:$0xff]
        %v1684 = vld [vmem:[#allocation3 + $0x3a] sm:$0xff]
        %v1685 = vld [vmem:[#allocation3 + $0x42] sm:$0xff]
        %v1686 = vld [vmem:[#allocation3 + $0x4a] sm:$0xff]
        %v1687 = vld [vmem:[#allocation3 + $0x52] sm:$0xff]
        %v1688 = vld [vmem:[#allocation3 + $0xb] sm:$0xff]
        %v1689 = vld [vmem:[#allocation3 + $0x13] sm:$0xff]
        %v1690 = vld [vmem:[#allocation3 + $0x1b] sm:$0xff]
        %v1691 = vld [vmem:[#allocation3 + $0x23] sm:$0xff]
        %v1692 = vld [vmem:[#allocation3 + $0x2b] sm:$0xff]
        %v1693 = vld [vmem:[#allocation3 + $0x33] sm:$0xff]
        %v1694 = vld [vmem:[#allocation3 + $0x3b] sm:$0xff]
        %v1695 = vld [vmem:[#allocation3 + $0x43] sm:$0xff]
        %v1696 = vld [vmem:[#allocation3 + $0x4b] sm:$0xff]
        %v1697 = vld [vmem:[#allocation3 + $0x53] sm:$0xff]
        %v1698 = vld [vmem:[#allocation3 + $0xc] sm:$0xff]
        %v1699 = vld [vmem:[#allocation3 + $0x14] sm:$0xff]
        %v1700 = vld [vmem:[#allocation3 + $0x1c] sm:$0xff]
        %v1701 = vld [vmem:[#allocation3 + $0x24] sm:$0xff]
        %v1702 = vld [vmem:[#allocation3 + $0x2c] sm:$0xff]
        %v1703 = vld [vmem:[#allocation3 + $0x34] sm:$0xff]
        %v1704 = vld [vmem:[#allocation3 + $0x3c] sm:$0xff]
        %v1705 = vld [vmem:[#allocation3 + $0x44] sm:$0xff]
        %v1706 = vld [vmem:[#allocation3 + $0x4c] sm:$0xff]
        %v1707 = vld [vmem:[#allocation3 + $0x54] sm:$0xff]
        %v1708 = vld [vmem:[#allocation3 + $0x5c] sm:$0xff]
        %v1709 = vld [vmem:[#allocation3 + $0x15] sm:$0xff]
        %v1710 = vld [vmem:[#allocation3 + $0x1d] sm:$0xff]
        %v1711 = vld [vmem:[#allocation3 + $0x25] sm:$0xff]
        %v1712 = vld [vmem:[#allocation3 + $0x2d] sm:$0xff]
        %v1713 = vld [vmem:[#allocation3 + $0x35] sm:$0xff]
        %v1714 = vld [vmem:[#allocation3 + $0x3d] sm:$0xff]
        %v1715 = vld [vmem:[#allocation3 + $0x45] sm:$0xff]
        %v1716 = vld [vmem:[#allocation3 + $0x4d] sm:$0xff]
        %v1717 = vld [vmem:[#allocation3 + $0x55] sm:$0xff]
        %v1718 = vld [vmem:[#allocation3 + $0x5d] sm:$0xff]
        %v1719 = vld [vmem:[#allocation3 + $0x16] sm:$0xff]
        %v1720 = vld [vmem:[#allocation3 + $0x1e] sm:$0xff]
        %v1721 = vld [vmem:[#allocation3 + $0x26] sm:$0xff]
        %v1722 = vld [vmem:[#allocation3 + $0x2e] sm:$0xff]
        %v1723 = vld [vmem:[#allocation3 + $0x36] sm:$0xff]
        %v1724 = vld [vmem:[#allocation3 + $0x3e] sm:$0xff]
        %v1725 = vld [vmem:[#allocation3 + $0x46] sm:$0xff]
        %v1726 = vld [vmem:[#allocation3 + $0x4e] sm:$0xff]
        %v1727 = vld [vmem:[#allocation3 + $0x56] sm:$0xff]
        %v1728 = vld [vmem:[#allocation3 + $0x5e] sm:$0xff]
        %1739 = vrot.lane.b32.xlu0 %v1667, 16
        %v1740 = vpop.permute.xlu0 %1739
        %1741 = vrot.lane.b32.xlu0 %v1668, 16
        %v1742 = vpop.permute.xlu0 %1741
        %1743 = vrot.lane.b32.xlu0 %v1669, 16
        %v1744 = vpop.permute.xlu0 %1743
        %1745 = vrot.lane.b32.xlu0 %v1670, 16
        %v1746 = vpop.permute.xlu0 %1745
        %1747 = vrot.lane.b32.xlu0 %v1671, 16
        %v1748 = vpop.permute.xlu0 %1747
        %1749 = vrot.lane.b32.xlu0 %v1672, 16
        %v1750 = vpop.permute.xlu0 %1749
        %1751 = vrot.lane.b32.xlu0 %v1673, 16
        %v1752 = vpop.permute.xlu0 %1751
        %1753 = vrot.lane.b32.xlu0 %v1674, 16
        %v1754 = vpop.permute.xlu0 %1753
        %1755 = vrot.lane.b32.xlu0 %v1675, 16
        %v1756 = vpop.permute.xlu0 %1755
        %1757 = vrot.lane.b32.xlu0 %v1676, 16
        %v1758 = vpop.permute.xlu0 %1757
        %1779 = vrot.lane.b32.xlu0 %v1677, 32
        %v1780 = vpop.permute.xlu0 %1779
        %1781 = vrot.lane.b32.xlu0 %v1678, 32
        %v1782 = vpop.permute.xlu0 %1781
        %1783 = vrot.lane.b32.xlu0 %v1679, 32
        %v1784 = vpop.permute.xlu0 %1783
        %1785 = vrot.lane.b32.xlu0 %v1680, 32
        %v1786 = vpop.permute.xlu0 %1785
        %1787 = vrot.lane.b32.xlu0 %v1681, 32
        %v1788 = vpop.permute.xlu0 %1787
        %1789 = vrot.lane.b32.xlu0 %v1682, 32
        %v1790 = vpop.permute.xlu0 %1789
        %1791 = vrot.lane.b32.xlu0 %v1683, 32
        %v1792 = vpop.permute.xlu0 %1791
        %1793 = vrot.lane.b32.xlu0 %v1684, 32
        %v1794 = vpop.permute.xlu0 %1793
        %1795 = vrot.lane.b32.xlu0 %v1685, 32
        %v1796 = vpop.permute.xlu0 %1795
        %1797 = vrot.lane.b32.xlu0 %v1686, 32
        %v1798 = vpop.permute.xlu0 %1797
        %1810 = vrot.lane.b32.xlu0 %v1678, 48
        %v1811 = vpop.permute.xlu0 %1810
        %1812 = vrot.lane.b32.xlu0 %v1679, 48
        %v1813 = vpop.permute.xlu0 %1812
        %1814 = vrot.lane.b32.xlu0 %v1680, 48
        %v1815 = vpop.permute.xlu0 %1814
        %1816 = vrot.lane.b32.xlu0 %v1681, 48
        %v1817 = vpop.permute.xlu0 %1816
        %1818 = vrot.lane.b32.xlu0 %v1682, 48
        %v1819 = vpop.permute.xlu0 %1818
        %1820 = vrot.lane.b32.xlu0 %v1683, 48
        %v1821 = vpop.permute.xlu0 %1820
        %1822 = vrot.lane.b32.xlu0 %v1684, 48
        %v1823 = vpop.permute.xlu0 %1822
        %1824 = vrot.lane.b32.xlu0 %v1685, 48
        %v1825 = vpop.permute.xlu0 %1824
        %1826 = vrot.lane.b32.xlu0 %v1686, 48
        %v1827 = vpop.permute.xlu0 %1826
        %1828 = vrot.lane.b32.xlu0 %v1687, 48
        %v1829 = vpop.permute.xlu0 %1828
        %1850 = vrot.lane.b32.xlu0 %v1688, 64
        %v1851 = vpop.permute.xlu0 %1850
        %1852 = vrot.lane.b32.xlu0 %v1689, 64
        %v1853 = vpop.permute.xlu0 %1852
        %1854 = vrot.lane.b32.xlu0 %v1690, 64
        %v1855 = vpop.permute.xlu0 %1854
        %1856 = vrot.lane.b32.xlu0 %v1691, 64
        %v1857 = vpop.permute.xlu0 %1856
        %1858 = vrot.lane.b32.xlu0 %v1692, 64
        %v1859 = vpop.permute.xlu0 %1858
        %1860 = vrot.lane.b32.xlu0 %v1693, 64
        %v1861 = vpop.permute.xlu0 %1860
        %1862 = vrot.lane.b32.xlu0 %v1694, 64
        %v1863 = vpop.permute.xlu0 %1862
        %1864 = vrot.lane.b32.xlu0 %v1695, 64
        %v1865 = vpop.permute.xlu0 %1864
        %1866 = vrot.lane.b32.xlu0 %v1696, 64
        %v1867 = vpop.permute.xlu0 %1866
        %1868 = vrot.lane.b32.xlu0 %v1697, 64
        %v1869 = vpop.permute.xlu0 %1868
        %1890 = vrot.lane.b32.xlu0 %v1698, 80
        %v1891 = vpop.permute.xlu0 %1890
        %1892 = vrot.lane.b32.xlu0 %v1699, 80
        %v1893 = vpop.permute.xlu0 %1892
        %1894 = vrot.lane.b32.xlu0 %v1700, 80
        %v1895 = vpop.permute.xlu0 %1894
        %1896 = vrot.lane.b32.xlu0 %v1701, 80
        %v1897 = vpop.permute.xlu0 %1896
        %1898 = vrot.lane.b32.xlu0 %v1702, 80
        %v1899 = vpop.permute.xlu0 %1898
        %1900 = vrot.lane.b32.xlu0 %v1703, 80
        %v1901 = vpop.permute.xlu0 %1900
        %1902 = vrot.lane.b32.xlu0 %v1704, 80
        %v1903 = vpop.permute.xlu0 %1902
        %1904 = vrot.lane.b32.xlu0 %v1705, 80
        %v1905 = vpop.permute.xlu0 %1904
        %1906 = vrot.lane.b32.xlu0 %v1706, 80
        %v1907 = vpop.permute.xlu0 %1906
        %1908 = vrot.lane.b32.xlu0 %v1707, 80
        %v1909 = vpop.permute.xlu0 %1908
        %1921 = vrot.lane.b32.xlu0 %v1699, 96
        %v1922 = vpop.permute.xlu0 %1921
        %1923 = vrot.lane.b32.xlu0 %v1700, 96
        %v1924 = vpop.permute.xlu0 %1923
        %1925 = vrot.lane.b32.xlu0 %v1701, 96
        %v1926 = vpop.permute.xlu0 %1925
        %1927 = vrot.lane.b32.xlu0 %v1702, 96
        %v1928 = vpop.permute.xlu0 %1927
        %1929 = vrot.lane.b32.xlu0 %v1703, 96
        %v1930 = vpop.permute.xlu0 %1929
        %1931 = vrot.lane.b32.xlu0 %v1704, 96
        %v1932 = vpop.permute.xlu0 %1931
        %1933 = vrot.lane.b32.xlu0 %v1705, 96
        %v1934 = vpop.permute.xlu0 %1933
        %1935 = vrot.lane.b32.xlu0 %v1706, 96
        %v1936 = vpop.permute.xlu0 %1935
        %1937 = vrot.lane.b32.xlu0 %v1707, 96
        %v1938 = vpop.permute.xlu0 %1937
        %1939 = vrot.lane.b32.xlu0 %v1708, 96
        %v1940 = vpop.permute.xlu0 %1939
        %1961 = vrot.lane.b32.xlu0 %v1709, 112
        %v1962 = vpop.permute.xlu0 %1961
        %1963 = vrot.lane.b32.xlu0 %v1710, 112
        %v1964 = vpop.permute.xlu0 %1963
        %1965 = vrot.lane.b32.xlu0 %v1711, 112
        %v1966 = vpop.permute.xlu0 %1965
        %1967 = vrot.lane.b32.xlu0 %v1712, 112
        %v1968 = vpop.permute.xlu0 %1967
        %1969 = vrot.lane.b32.xlu0 %v1713, 112
        %v1970 = vpop.permute.xlu0 %1969
        %1971 = vrot.lane.b32.xlu0 %v1714, 112
        %v1972 = vpop.permute.xlu0 %1971
        %1973 = vrot.lane.b32.xlu0 %v1715, 112
        %v1974 = vpop.permute.xlu0 %1973
        %1975 = vrot.lane.b32.xlu0 %v1716, 112
        %v1976 = vpop.permute.xlu0 %1975
        %1977 = vrot.lane.b32.xlu0 %v1717, 112
        %v1978 = vpop.permute.xlu0 %1977
        %1979 = vrot.lane.b32.xlu0 %v1718, 112
        %v1980 = vpop.permute.xlu0 %1979
        %v1991 = vsel %vm630, %v1657, %v1740
        %v1992 = vsel %vm630, %v1658, %v1742
        %v1993 = vsel %vm630, %v1659, %v1744
        %v1994 = vsel %vm630, %v1660, %v1746
        %v1995 = vsel %vm630, %v1661, %v1748
        %v1996 = vsel %vm630, %v1662, %v1750
        %v1997 = vsel %vm630, %v1663, %v1752
        %v1998 = vsel %vm630, %v1664, %v1754
        %v1999 = vsel %vm630, %v1665, %v1756
        %v2000 = vsel %vm630, %v1666, %v1758
        %v2001 = vsel %vm1371, %v1991, %v1780
        %v2002 = vsel %vm1371, %v1992, %v1782
        %v2003 = vsel %vm1371, %v1993, %v1784
        %v2004 = vsel %vm1371, %v1994, %v1786
        %v2005 = vsel %vm1371, %v1995, %v1788
        %v2006 = vsel %vm1371, %v1996, %v1790
        %v2007 = vsel %vm1371, %v1997, %v1792
        %v2008 = vsel %vm1371, %v1998, %v1794
        %v2009 = vsel %vm1371, %v1999, %v1796
        %v2010 = vsel %vm1371, %v2000, %v1798
        %v2011 = vsel %vm1382, %v2001, %v1811
        %v2012 = vsel %vm1382, %v2002, %v1813
        %v2013 = vsel %vm1382, %v2003, %v1815
        %v2014 = vsel %vm1382, %v2004, %v1817
        %v2015 = vsel %vm1382, %v2005, %v1819
        %v2016 = vsel %vm1382, %v2006, %v1821
        %v2017 = vsel %vm1382, %v2007, %v1823
        %v2018 = vsel %vm1382, %v2008, %v1825
        %v2019 = vsel %vm1382, %v2009, %v1827
        %v2020 = vsel %vm1382, %v2010, %v1829
        %v2021 = vsel %vm1393, %v2011, %v1851
        %v2022 = vsel %vm1393, %v2012, %v1853
        %v2023 = vsel %vm1393, %v2013, %v1855
        %v2024 = vsel %vm1393, %v2014, %v1857
        %v2025 = vsel %vm1393, %v2015, %v1859
        %v2026 = vsel %vm1393, %v2016, %v1861
        %v2027 = vsel %vm1393, %v2017, %v1863
        %v2028 = vsel %vm1393, %v2018, %v1865
        %v2029 = vsel %vm1393, %v2019, %v1867
        %v2030 = vsel %vm1393, %v2020, %v1869
        %v2031 = vsel %vm1404, %v2021, %v1891
        %v2032 = vsel %vm1404, %v2022, %v1893
        %v2033 = vsel %vm1404, %v2023, %v1895
        %v2034 = vsel %vm1404, %v2024, %v1897
        %v2035 = vsel %vm1404, %v2025, %v1899
        %v2036 = vsel %vm1404, %v2026, %v1901
        %v2037 = vsel %vm1404, %v2027, %v1903
        %v2038 = vsel %vm1404, %v2028, %v1905
        %v2039 = vsel %vm1404, %v2029, %v1907
        %v2040 = vsel %vm1404, %v2030, %v1909
        %v2041 = vsel %vm1415, %v2031, %v1922
        %v2042 = vsel %vm1415, %v2032, %v1924
        %v2043 = vsel %vm1415, %v2033, %v1926
        %v2044 = vsel %vm1415, %v2034, %v1928
        %v2045 = vsel %vm1415, %v2035, %v1930
        %v2046 = vsel %vm1415, %v2036, %v1932
        %v2047 = vsel %vm1415, %v2037, %v1934
        %v2048 = vsel %vm1415, %v2038, %v1936
        %v2049 = vsel %vm1415, %v2039, %v1938
        %v2050 = vsel %vm1415, %v2040, %v1940
        %v2051 = vsel %vm1426, %v2041, %v1962
        %v2052 = vsel %vm1426, %v2042, %v1964
        %v2053 = vsel %vm1426, %v2043, %v1966
        %v2054 = vsel %vm1426, %v2044, %v1968
        %v2055 = vsel %vm1426, %v2045, %v1970
        %v2056 = vsel %vm1426, %v2046, %v1972
        %v2057 = vsel %vm1426, %v2047, %v1974
        %v2058 = vsel %vm1426, %v2048, %v1976
        %v2059 = vsel %vm1426, %v2049, %v1978
        %v2060 = vsel %vm1426, %v2050, %v1980
        %v2062 = vlaneseq
        %v2063 = vshrl.u32 %v2062, 7
        %v2064 = vsub.s32 0, %v2063
        %v2065 = vrot.slane %v1656, %v2064
        %v2068 = vsel %vm630, %v1719, 0
        %v2071 = vsel %vm630, %v1720, 0
        %v2074 = vsel %vm630, %v1721, 0
        %v2077 = vsel %vm630, %v1722, 0
        %v2080 = vsel %vm630, %v1723, 0
        %v2083 = vsel %vm630, %v1724, 0
        %v2086 = vsel %vm630, %v1725, 0
        %v2089 = vsel %vm630, %v1726, 0
        %v2092 = vsel %vm630, %v1727, 0
        %v2095 = vsel %vm630, %v1728, 0
        %2097 = vmatprep.subr.mxu0 0.0
        %2098 = vmatpush1.msra.mxu0 %v1638
        %2099 = vmatprep.subr.mxu0 0.0
        %2100 = vmatpush1.msra.mxu0 %v1639
        %2101 = vmatprep.subr.mxu0 0.0
        %2102 = vmatpush1.msra.mxu0 %v1640
        %2103 = vmatprep.subr.mxu0 0.0
        %2104 = vmatpush1.msra.mxu0 %v1641
        %2105 = vmatprep.subr.mxu0 0.0
        %2106 = vmatpush1.msra.mxu0 %v1642
        %2107 = vmatprep.subr.mxu0 0.0
        %2108 = vmatpush1.msra.mxu0 %v1643
        %2109 = vmatprep.subr.mxu0 0.0
        %2110 = vmatpush1.msra.mxu0 %v1644
        %2111 = vmatprep.subr.mxu0 0.0
        %2112 = vmatpush1.msra.mxu0 %v1645
        %2113 = vmatprep.subr.mxu0 0.0
        %2114 = vmatpush1.msra.mxu0 %v1646
        %2115 = vmatprep.subr.mxu0 0.0
        %2116 = vmatpush1.msra.mxu0 %v1647
        %2117 = vmatprep.subr.mxu0 0.0
        %2118 = vmatpush1.msra.mxu0 %v1648
        %2119 = vmatprep.subr.mxu0 0.0
        %2120 = vmatpush1.msra.mxu0 %v1649
        %2121 = vmatprep.subr.mxu0 0.0
        %2122 = vmatpush1.msra.mxu0 %v1650
        %2123 = vmatprep.subr.mxu0 0.0
        %2124 = vmatpush1.msra.mxu0 %v1651
        %2125 = vmatprep.subr.mxu0 0.0
        %2126 = vmatpush1.msra.mxu0 %v1652
        %2127 = vmatprep.subr.mxu0 0.0
        %2128 = vmatpush1.msra.mxu0 %v1653
        %2129 = vmatprep.subr.mxu0 0.0
        %2130 = vmatpush1.msra.mxu0 %v1654
        %2131 = vmatprep.subr.mxu0 0.0
        %2132 = vmatpush1.msra.mxu0 %v1655
        %2133 = vmatprep.subr.mxu0 0.0
        %2134 = vmatpush1.msra.mxu0 0.0
        %2135 = vmatprep.subr.mxu0 0.0
        %2136 = vmatpush1.msra.mxu0 0.0
        %2137 = vmatprep.subr.mxu0 0.0
        %2138 = vmatpush1.msra.mxu0 0.0
        %2139 = vmatprep.subr.mxu0 0.0
        %2140 = vmatpush1.msra.mxu0 0.0
        %2141 = vmatprep.subr.mxu0 0.0
        %2142 = vmatpush1.msra.mxu0 0.0
        %2143 = vmatprep.subr.mxu0 0.0
        %2144 = vmatpush1.msra.mxu0 0.0
        %2145 = vmatprep.subr.mxu0 0.0
        %2146 = vmatpush1.msra.mxu0 0.0
        %2147 = vmatprep.subr.mxu0 0.0
        %2148 = vmatpush1.msra.mxu0 0.0
        %2149 = vmatprep.subr.mxu0 0.0
        %2150 = vmatpush1.msra.mxu0 0.0
        %2151 = vmatprep.subr.mxu0 0.0
        %2152 = vmatpush1.msra.mxu0 0.0
        %2153 = vmatprep.subr.mxu0 0.0
        %2154 = vmatpush1.msra.mxu0 0.0
        %2155 = vmatprep.subr.mxu0 0.0
        %2156 = vmatpush1.msra.mxu0 0.0
        %2157 = vmatprep.subr.mxu0 0.0
        %2158 = vmatpush1.msra.mxu0 0.0
        %2159 = vmatprep.subr.mxu0 0.0
        %2160 = vmatpush1.msra.mxu0 0.0
        %2161 = vmatprep.mubr.f32.mxu0 %v2068
        %2162 = vmatmul.mubr.f32.gmra.mrb[0].mxu0 %v2051
        %v2163 = vpop.f32.mrb[0].mxu0
        %v2164 = vadd.f32 %v2065, %v2163
        %v2165 = vpop.f32.mrb[0].mxu0
        %2166 = vmatprep.mubr.f32.mxu0 %v2071
        %2167 = vmatmul.mubr.f32.gmra.mrb[0].mxu0 %v2052
        %v2168 = vpop.f32.mrb[0].mxu0
        %v2169 = vadd.f32 %v2065, %v2168
        %v2170 = vpop.f32.mrb[0].mxu0
        %2171 = vmatprep.mubr.f32.mxu0 %v2074
        %2172 = vmatmul.mubr.f32.gmra.mrb[0].mxu0 %v2053
        %v2173 = vpop.f32.mrb[0].mxu0
        %v2174 = vadd.f32 %v2065, %v2173
        %v2175 = vpop.f32.mrb[0].mxu0
        %2176 = vmatprep.mubr.f32.mxu0 %v2077
        %2177 = vmatmul.mubr.f32.gmra.mrb[0].mxu0 %v2054
        %v2178 = vpop.f32.mrb[0].mxu0
        %v2179 = vadd.f32 %v2065, %v2178
        %v2180 = vpop.f32.mrb[0].mxu0
        %2181 = vmatprep.mubr.f32.mxu0 %v2080
        %2182 = vmatmul.mubr.f32.gmra.mrb[0].mxu0 %v2055
        %v2183 = vpop.f32.mrb[0].mxu0
        %v2184 = vadd.f32 %v2065, %v2183
        %v2185 = vpop.f32.mrb[0].mxu0
        %2186 = vmatprep.mubr.f32.mxu0 %v2083
        %2187 = vmatmul.mubr.f32.gmra.mrb[0].mxu0 %v2056
        %v2188 = vpop.f32.mrb[0].mxu0
        %v2189 = vadd.f32 %v2065, %v2188
        %v2190 = vpop.f32.mrb[0].mxu0
        %2191 = vmatprep.mubr.f32.mxu0 %v2086
        %2192 = vmatmul.mubr.f32.gmra.mrb[0].mxu0 %v2057
        %v2193 = vpop.f32.mrb[0].mxu0
        %v2194 = vadd.f32 %v2065, %v2193
        %v2195 = vpop.f32.mrb[0].mxu0
        %2196 = vmatprep.mubr.f32.mxu0 %v2089
        %2197 = vmatmul.mubr.f32.gmra.mrb[0].mxu0 %v2058
        %v2198 = vpop.f32.mrb[0].mxu0
        %v2199 = vadd.f32 %v2065, %v2198
        %v2200 = vpop.f32.mrb[0].mxu0
        %2201 = vmatprep.mubr.f32.mxu0 %v2092
        %2202 = vmatmul.mubr.f32.gmra.mrb[0].mxu0 %v2059
        %v2203 = vpop.f32.mrb[0].mxu0
        %v2204 = vadd.f32 %v2065, %v2203
        %v2205 = vpop.f32.mrb[0].mxu0
        %2206 = vmatprep.mubr.f32.mxu0 %v2095
        %2207 = vmatmul.mubr.f32.gmra.mrb[0].mxu0 %v2060
        %v2208 = vpop.f32.mrb[0].mxu0
        %v2209 = vadd.f32 %v2065, %v2208
        %v2210 = vpop.f32.mrb[0].mxu0
        %2211 = vdwg.mxu0
        %v2212 = vsel %vm1608, %v2164, 0.0
        %v2213 = vsel %vm1609, %v2169, 0.0
        %v2214 = vsel %vm1610, %v2174, 0.0
        %v2215 = vsel %vm1611, %v2179, 0.0
        %v2216 = vsel %vm1612, %v2184, 0.0
        %v2217 = vsel %vm1613, %v2189, 0.0
        %v2218 = vsel %vm1614, %v2194, 0.0
        %v2219 = vsel %vm1615, %v2199, 0.0
        %v2220 = vsel %vm1616, %v2204, 0.0
        %v2221 = vsel %vm1617, %v2209, 0.0
        %v2222 = vsel %vm630, %v2212, 0.0
        %v2223 = vsel %vm630, %v2213, 0.0
        %v2224 = vadd.f32 %v2222, %v2223
        %v2225 = vsel %vm630, %v2214, 0.0
        %v2226 = vadd.f32 %v2224, %v2225
        %v2227 = vsel %vm630, %v2215, 0.0
        %v2228 = vadd.f32 %v2226, %v2227
        %v2229 = vsel %vm630, %v2216, 0.0
        %v2230 = vadd.f32 %v2228, %v2229
        %v2231 = vsel %vm630, %v2217, 0.0
        %v2232 = vadd.f32 %v2230, %v2231
        %v2233 = vsel %vm630, %v2218, 0.0
        %v2234 = vadd.f32 %v2232, %v2233
        %v2235 = vsel %vm630, %v2219, 0.0
        %v2236 = vadd.f32 %v2234, %v2235
        %v2237 = vsel %vm630, %v2220, 0.0
        %v2238 = vadd.f32 %v2236, %v2237
        %v2239 = vsel %vm630, %v2221, 0.0
        %v2240 = vadd.f32 %v2238, %v2239
        %v2241 = vrot.slane %v2240, 4
        %v2242 = vadd.f32 %v2240, %v2241
        %v2243 = vrot.slane %v2242, 2
        %v2244 = vadd.f32 %v2242, %v2243
        %v2245 = vrot.slane %v2244, 1
        %v2246 = vadd.f32 %v2244, %v2245
        %v2247 = vmul.f32 %v2246, 0.015625
        %v2248 = vld [vmem:[%s5] sm:$0xff]
        %v2249 = vld [vmem:[%s5 + $0x8] sm:$0xff]
        %v2250 = vld [vmem:[%s6] sm:$0x1]
        %v2252 = vsel %vm630, %v2247, 0
        %2254 = vmatprep.subr.mxu0 0.0
        %2255 = vmatpush1.msra.mxu0 %v2248
        %2256 = vmatprep.subr.mxu0 0.0
        %2257 = vmatpush1.msra.mxu0 %v2249
        %2258 = vmatprep.subr.mxu0 0.0
        %2259 = vmatpush1.msra.mxu0 0.0
        %2260 = vmatprep.subr.mxu0 0.0
        %2261 = vmatpush1.msra.mxu0 0.0
        %2262 = vmatprep.subr.mxu0 0.0
        %2263 = vmatpush1.msra.mxu0 0.0
        %2264 = vmatprep.subr.mxu0 0.0
        %2265 = vmatpush1.msra.mxu0 0.0
        %2266 = vmatprep.subr.mxu0 0.0
        %2267 = vmatpush1.msra.mxu0 0.0
        %2268 = vmatprep.subr.mxu0 0.0
        %2269 = vmatpush1.msra.mxu0 0.0
        %2270 = vmatprep.subr.mxu0 0.0
        %2271 = vmatpush1.msra.mxu0 0.0
        %2272 = vmatprep.subr.mxu0 0.0
        %2273 = vmatpush1.msra.mxu0 0.0
        %2274 = vmatprep.subr.mxu0 0.0
        %2275 = vmatpush1.msra.mxu0 0.0
        %2276 = vmatprep.subr.mxu0 0.0
        %2277 = vmatpush1.msra.mxu0 0.0
        %2278 = vmatprep.subr.mxu0 0.0
        %2279 = vmatpush1.msra.mxu0 0.0
        %2280 = vmatprep.subr.mxu0 0.0
        %2281 = vmatpush1.msra.mxu0 0.0
        %2282 = vmatprep.subr.mxu0 0.0
        %2283 = vmatpush1.msra.mxu0 0.0
        %2284 = vmatprep.subr.mxu0 0.0
        %2285 = vmatpush1.msra.mxu0 0.0
        %2286 = vmatprep.subr.mxu0 0.0
        %2287 = vmatpush1.msra.mxu0 0.0
        %2288 = vmatprep.subr.mxu0 0.0
        %2289 = vmatpush1.msra.mxu0 0.0
        %2290 = vmatprep.subr.mxu0 0.0
        %2291 = vmatpush1.msra.mxu0 0.0
        %2292 = vmatprep.subr.mxu0 0.0
        %2293 = vmatpush1.msra.mxu0 0.0
        %2294 = vmatprep.subr.mxu0 0.0
        %2295 = vmatpush1.msra.mxu0 0.0
        %2296 = vmatprep.subr.mxu0 0.0
        %2297 = vmatpush1.msra.mxu0 0.0
        %2298 = vmatprep.subr.mxu0 0.0
        %2299 = vmatpush1.msra.mxu0 0.0
        %2300 = vmatprep.subr.mxu0 0.0
        %2301 = vmatpush1.msra.mxu0 0.0
        %2302 = vmatprep.subr.mxu0 0.0
        %2303 = vmatpush1.msra.mxu0 0.0
        %2304 = vmatprep.subr.mxu0 0.0
        %2305 = vmatpush1.msra.mxu0 0.0
        %2306 = vmatprep.subr.mxu0 0.0
        %2307 = vmatpush1.msra.mxu0 0.0
        %2308 = vmatprep.subr.mxu0 0.0
        %2309 = vmatpush1.msra.mxu0 0.0
        %2310 = vmatprep.subr.mxu0 0.0
        %2311 = vmatpush1.msra.mxu0 0.0
        %2312 = vmatprep.subr.mxu0 0.0
        %2313 = vmatpush1.msra.mxu0 0.0
        %2314 = vmatprep.subr.mxu0 0.0
        %2315 = vmatpush1.msra.mxu0 0.0
        %2316 = vmatprep.subr.mxu0 0.0
        %2317 = vmatpush1.msra.mxu0 0.0
        %2318 = vmatprep.mubr.f32.mxu0 0.0
        %2319 = vmatmul.mubr.f32.gmra.mrb[0].mxu0 %v2252
        %v2320 = vpop.f32.mrb[0].mxu0
        %v2321 = vadd.f32 %v2250, %v2320
        %v2322 = vpop.f32.mrb[0].mxu0
        %2323 = vdwg.mxu0
        %v2324 = vmax.f32 %v2321, 0.0
        %v2325 = vld [vmem:[%s7] sm:$0xf]
        %v2326 = vld [vmem:[%s8] sm:$0x1]
        %vm2327 = vcmask 31744
        %v2329 = vsel %vm2327, %v2324, 0
        %vm2331 = vcmask 1043456
        %v2333 = vsel %vm2331, %v2325, 0
        %2335 = vmatprep.subr.mxu0 0.0
        %2336 = vmatpush1.msra.mxu0 %v2333
        %2337 = vmatprep.subr.mxu0 0.0
        %2338 = vmatpush1.msra.mxu0 0.0
        %2339 = vmatprep.subr.mxu0 0.0
        %2340 = vmatpush1.msra.mxu0 0.0
        %2341 = vmatprep.subr.mxu0 0.0
        %2342 = vmatpush1.msra.mxu0 0.0
        %2343 = vmatprep.subr.mxu0 0.0
        %2344 = vmatpush1.msra.mxu0 0.0
        %2345 = vmatprep.subr.mxu0 0.0
        %2346 = vmatpush1.msra.mxu0 0.0
        %2347 = vmatprep.subr.mxu0 0.0
        %2348 = vmatpush1.msra.mxu0 0.0
        %2349 = vmatprep.subr.mxu0 0.0
        %2350 = vmatpush1.msra.mxu0 0.0
        %2351 = vmatprep.subr.mxu0 0.0
        %2352 = vmatpush1.msra.mxu0 0.0
        %2353 = vmatprep.subr.mxu0 0.0
        %2354 = vmatpush1.msra.mxu0 0.0
        %2355 = vmatprep.subr.mxu0 0.0
        %2356 = vmatpush1.msra.mxu0 0.0
        %2357 = vmatprep.subr.mxu0 0.0
        %2358 = vmatpush1.msra.mxu0 0.0
        %2359 = vmatprep.subr.mxu0 0.0
        %2360 = vmatpush1.msra.mxu0 0.0
        %2361 = vmatprep.subr.mxu0 0.0
        %2362 = vmatpush1.msra.mxu0 0.0
        %2363 = vmatprep.subr.mxu0 0.0
        %2364 = vmatpush1.msra.mxu0 0.0
        %2365 = vmatprep.subr.mxu0 0.0
        %2366 = vmatpush1.msra.mxu0 0.0
        %2367 = vmatprep.subr.mxu0 0.0
        %2368 = vmatpush1.msra.mxu0 0.0
        %2369 = vmatprep.subr.mxu0 0.0
        %2370 = vmatpush1.msra.mxu0 0.0
        %2371 = vmatprep.subr.mxu0 0.0
        %2372 = vmatpush1.msra.mxu0 0.0
        %2373 = vmatprep.subr.mxu0 0.0
        %2374 = vmatpush1.msra.mxu0 0.0
        %2375 = vmatprep.subr.mxu0 0.0
        %2376 = vmatpush1.msra.mxu0 0.0
        %2377 = vmatprep.subr.mxu0 0.0
        %2378 = vmatpush1.msra.mxu0 0.0
        %2379 = vmatprep.subr.mxu0 0.0
        %2380 = vmatpush1.msra.mxu0 0.0
        %2381 = vmatprep.subr.mxu0 0.0
        %2382 = vmatpush1.msra.mxu0 0.0
        %2383 = vmatprep.subr.mxu0 0.0
        %2384 = vmatpush1.msra.mxu0 0.0
        %2385 = vmatprep.subr.mxu0 0.0
        %2386 = vmatpush1.msra.mxu0 0.0
        %2387 = vmatprep.subr.mxu0 0.0
        %2388 = vmatpush1.msra.mxu0 0.0
        %2389 = vmatprep.subr.mxu0 0.0
        %2390 = vmatpush1.msra.mxu0 0.0
        %2391 = vmatprep.subr.mxu0 0.0
        %2392 = vmatpush1.msra.mxu0 0.0
        %2393 = vmatprep.subr.mxu0 0.0
        %2394 = vmatpush1.msra.mxu0 0.0
        %2395 = vmatprep.subr.mxu0 0.0
        %2396 = vmatpush1.msra.mxu0 0.0
        %2397 = vmatprep.subr.mxu0 0.0
        %2398 = vmatpush1.msra.mxu0 0.0
        %2399 = vmatprep.mubr.f32.mxu0 0.0
        %2400 = vmatmul.mubr.f32.gmra.mrb[0].mxu0 %v2329
        %v2401 = vpop.f32.mrb[0].mxu0
        %v2402 = vadd.f32 %v2326, %v2401
        %v2403 = vpop.f32.mrb[0].mxu0
        %2404 = vdwg.mxu0
        %v2405 = vxor.u32 %v2402, 2147483648
        %v2406 = vmul.f32 %v2405, 1.442695
        %v2407 = vpow.pop %v2406
        %v2408 = vadd.f32 %v2407, 1.0
        %v2409 = vrcp.pop %v2408
        %v2410 = vmul.f32 1.0, %v2409
        %v2411 = vld [vmem:[#allocation2 + $0xb] sm:$0xff]
        %v2412 = vld [vmem:[#allocation2 + $0x13] sm:$0xff]
        %v2413 = vld [vmem:[#allocation2 + $0x1b] sm:$0xff]
        %v2414 = vld [vmem:[#allocation2 + $0x23] sm:$0xff]
        %v2415 = vld [vmem:[#allocation2 + $0x2b] sm:$0xff]
        %v2416 = vld [vmem:[#allocation2 + $0x33] sm:$0xff]
        %v2417 = vld [vmem:[#allocation2 + $0x3b] sm:$0xff]
        %v2418 = vld [vmem:[#allocation2 + $0x43] sm:$0xff]
        %v2419 = vld [vmem:[#allocation2 + $0x4b] sm:$0xff]
        %v2420 = vld [vmem:[#allocation2 + $0x53] sm:$0xff]
        %v2421 = vlaneseq
        %v2422 = vshrl.u32 %v2421, 7
        %v2423 = vsub.s32 0, %v2422
        %v2424 = vrot.slane %v2410, %v2423
        %v2425 = vmul.f32 %v2212, %v2424
        %v2426 = vmul.f32 %v2213, %v2424
        %v2427 = vmul.f32 %v2214, %v2424
        %v2428 = vmul.f32 %v2215, %v2424
        %v2429 = vmul.f32 %v2216, %v2424
        %v2430 = vmul.f32 %v2217, %v2424
        %v2431 = vmul.f32 %v2218, %v2424
        %v2432 = vmul.f32 %v2219, %v2424
        %v2433 = vmul.f32 %v2220, %v2424
        %v2434 = vmul.f32 %v2221, %v2424
        %v2435 = vadd.f32 %v2425, %v2411
        %v2436 = vadd.f32 %v2426, %v2412
        %v2437 = vadd.f32 %v2427, %v2413
        %v2438 = vadd.f32 %v2428, %v2414
        %v2439 = vadd.f32 %v2429, %v2415
        %v2440 = vadd.f32 %v2430, %v2416
        %v2441 = vadd.f32 %v2431, %v2417
        %v2442 = vadd.f32 %v2432, %v2418
        %v2443 = vadd.f32 %v2433, %v2419
        %v2444 = vadd.f32 %v2434, %v2420
        %2445 = vst.msk [vmem:[#allocation2 + $0xb] sm:$0xff] %vm630, %v2435
        %2446 = vst.msk [vmem:[#allocation2 + $0x13] sm:$0xff] %vm630, %v2436
        %2447 = vst.msk [vmem:[#allocation2 + $0x1b] sm:$0xff] %vm630, %v2437
        %2448 = vst.msk [vmem:[#allocation2 + $0x23] sm:$0xff] %vm630, %v2438
        %2449 = vst.msk [vmem:[#allocation2 + $0x2b] sm:$0xff] %vm630, %v2439
        %2450 = vst.msk [vmem:[#allocation2 + $0x33] sm:$0xff] %vm630, %v2440
        %2451 = vst.msk [vmem:[#allocation2 + $0x3b] sm:$0xff] %vm630, %v2441
        %2452 = vst.msk [vmem:[#allocation2 + $0x43] sm:$0xff] %vm630, %v2442
        %2453 = vst.msk [vmem:[#allocation2 + $0x4b] sm:$0xff] %vm630, %v2443
        %2454 = vst.msk [vmem:[#allocation2 + $0x53] sm:$0xff] %vm630, %v2444
        %s2455 = scalar_lea.vmem [#allocation7], 144
        %v2456 = vld [vmem:[%s2455] sm:$0xff]
        %v2457 = vld [vmem:[%s2455 + $0x8] sm:$0xff]
        %v2458 = vld [vmem:[%s2455 + $0x10] sm:$0xff]
        %v2459 = vld [vmem:[%s2455 + $0x18] sm:$0xff]
        %v2460 = vld [vmem:[%s2455 + $0x20] sm:$0xff]
        %v2461 = vld [vmem:[%s2455 + $0x28] sm:$0xff]
        %v2462 = vld [vmem:[%s2455 + $0x30] sm:$0xff]
        %v2463 = vld [vmem:[%s2455 + $0x38] sm:$0xff]
        %v2464 = vld [vmem:[%s2455 + $0x40] sm:$0xff]
        %v2465 = vld [vmem:[%s2455 + $0x48] sm:$0xff]
        %v2466 = vld [vmem:[%s2455 + $0x50] sm:$0xff]
        %v2467 = vld [vmem:[%s2455 + $0x58] sm:$0xff]
        %v2468 = vld [vmem:[%s2455 + $0x60] sm:$0xff]
        %v2469 = vld [vmem:[%s2455 + $0x68] sm:$0xff]
        %v2470 = vld [vmem:[%s2455 + $0x70] sm:$0xff]
        %v2471 = vld [vmem:[%s2455 + $0x78] sm:$0xff]
        %v2472 = vld [vmem:[%s2455 + $0x80] sm:$0xff]
        %v2473 = vld [vmem:[%s2455 + $0x88] sm:$0xff]
        %s2474 = scalar_lea.vmem %s2, 1
        %v2475 = vld [vmem:[%s2474] sm:$0x1]
        %v2476 = vld [vmem:[#allocation2] sm:$0xff]
        %v2477 = vld [vmem:[#allocation2 + $0x8] sm:$0xff]
        %v2478 = vld [vmem:[#allocation2 + $0x10] sm:$0xff]
        %v2479 = vld [vmem:[#allocation2 + $0x18] sm:$0xff]
        %v2480 = vld [vmem:[#allocation2 + $0x20] sm:$0xff]
        %v2481 = vld [vmem:[#allocation2 + $0x28] sm:$0xff]
        %v2482 = vld [vmem:[#allocation2 + $0x30] sm:$0xff]
        %v2483 = vld [vmem:[#allocation2 + $0x38] sm:$0xff]
        %v2484 = vld [vmem:[#allocation2 + $0x40] sm:$0xff]
        %v2485 = vld [vmem:[#allocation2 + $0x48] sm:$0xff]
        %v2486 = vld [vmem:[#allocation2 + $0x1] sm:$0xff]
        %v2487 = vld [vmem:[#allocation2 + $0x9] sm:$0xff]
        %v2488 = vld [vmem:[#allocation2 + $0x11] sm:$0xff]
        %v2489 = vld [vmem:[#allocation2 + $0x19] sm:$0xff]
        %v2490 = vld [vmem:[#allocation2 + $0x21] sm:$0xff]
        %v2491 = vld [vmem:[#allocation2 + $0x29] sm:$0xff]
        %v2492 = vld [vmem:[#allocation2 + $0x31] sm:$0xff]
        %v2493 = vld [vmem:[#allocation2 + $0x39] sm:$0xff]
        %v2494 = vld [vmem:[#allocation2 + $0x41] sm:$0xff]
        %v2495 = vld [vmem:[#allocation2 + $0x49] sm:$0xff]
        %v2496 = vld [vmem:[#allocation2 + $0x2] sm:$0xff]
        %v2497 = vld [vmem:[#allocation2 + $0xa] sm:$0xff]
        %v2498 = vld [vmem:[#allocation2 + $0x12] sm:$0xff]
        %v2499 = vld [vmem:[#allocation2 + $0x1a] sm:$0xff]
        %v2500 = vld [vmem:[#allocation2 + $0x22] sm:$0xff]
        %v2501 = vld [vmem:[#allocation2 + $0x2a] sm:$0xff]
        %v2502 = vld [vmem:[#allocation2 + $0x32] sm:$0xff]
        %v2503 = vld [vmem:[#allocation2 + $0x3a] sm:$0xff]
        %v2504 = vld [vmem:[#allocation2 + $0x42] sm:$0xff]
        %v2505 = vld [vmem:[#allocation2 + $0x4a] sm:$0xff]
        %v2506 = vld [vmem:[#allocation2 + $0x52] sm:$0xff]
        %v2507 = vld [vmem:[#allocation2 + $0xb] sm:$0xff]
        %v2508 = vld [vmem:[#allocation2 + $0x13] sm:$0xff]
        %v2509 = vld [vmem:[#allocation2 + $0x1b] sm:$0xff]
        %v2510 = vld [vmem:[#allocation2 + $0x23] sm:$0xff]
        %v2511 = vld [vmem:[#allocation2 + $0x2b] sm:$0xff]
        %v2512 = vld [vmem:[#allocation2 + $0x33] sm:$0xff]
        %v2513 = vld [vmem:[#allocation2 + $0x3b] sm:$0xff]
        %v2514 = vld [vmem:[#allocation2 + $0x43] sm:$0xff]
        %v2515 = vld [vmem:[#allocation2 + $0x4b] sm:$0xff]
        %v2516 = vld [vmem:[#allocation2 + $0x53] sm:$0xff]
        %v2517 = vld [vmem:[#allocation2 + $0xc] sm:$0xff]
        %v2518 = vld [vmem:[#allocation2 + $0x14] sm:$0xff]
        %v2519 = vld [vmem:[#allocation2 + $0x1c] sm:$0xff]
        %v2520 = vld [vmem:[#allocation2 + $0x24] sm:$0xff]
        %v2521 = vld [vmem:[#allocation2 + $0x2c] sm:$0xff]
        %v2522 = vld [vmem:[#allocation2 + $0x34] sm:$0xff]
        %v2523 = vld [vmem:[#allocation2 + $0x3c] sm:$0xff]
        %v2524 = vld [vmem:[#allocation2 + $0x44] sm:$0xff]
        %v2525 = vld [vmem:[#allocation2 + $0x4c] sm:$0xff]
        %v2526 = vld [vmem:[#allocation2 + $0x54] sm:$0xff]
        %v2527 = vld [vmem:[#allocation2 + $0x5c] sm:$0xff]
        %v2528 = vld [vmem:[#allocation2 + $0x15] sm:$0xff]
        %v2529 = vld [vmem:[#allocation2 + $0x1d] sm:$0xff]
        %v2530 = vld [vmem:[#allocation2 + $0x25] sm:$0xff]
        %v2531 = vld [vmem:[#allocation2 + $0x2d] sm:$0xff]
        %v2532 = vld [vmem:[#allocation2 + $0x35] sm:$0xff]
        %v2533 = vld [vmem:[#allocation2 + $0x3d] sm:$0xff]
        %v2534 = vld [vmem:[#allocation2 + $0x45] sm:$0xff]
        %v2535 = vld [vmem:[#allocation2 + $0x4d] sm:$0xff]
        %v2536 = vld [vmem:[#allocation2 + $0x55] sm:$0xff]
        %v2537 = vld [vmem:[#allocation2 + $0x5d] sm:$0xff]
        %v2538 = vld [vmem:[#allocation2 + $0x16] sm:$0xff]
        %v2539 = vld [vmem:[#allocation2 + $0x1e] sm:$0xff]
        %v2540 = vld [vmem:[#allocation2 + $0x26] sm:$0xff]
        %v2541 = vld [vmem:[#allocation2 + $0x2e] sm:$0xff]
        %v2542 = vld [vmem:[#allocation2 + $0x36] sm:$0xff]
        %v2543 = vld [vmem:[#allocation2 + $0x3e] sm:$0xff]
        %v2544 = vld [vmem:[#allocation2 + $0x46] sm:$0xff]
        %v2545 = vld [vmem:[#allocation2 + $0x4e] sm:$0xff]
        %v2546 = vld [vmem:[#allocation2 + $0x56] sm:$0xff]
        %v2547 = vld [vmem:[#allocation2 + $0x5e] sm:$0xff]
        %2558 = vrot.lane.b32.xlu0 %v2486, 16
        %v2559 = vpop.permute.xlu0 %2558
        %2560 = vrot.lane.b32.xlu0 %v2487, 16
        %v2561 = vpop.permute.xlu0 %2560
        %2562 = vrot.lane.b32.xlu0 %v2488, 16
        %v2563 = vpop.permute.xlu0 %2562
        %2564 = vrot.lane.b32.xlu0 %v2489, 16
        %v2565 = vpop.permute.xlu0 %2564
        %2566 = vrot.lane.b32.xlu0 %v2490, 16
        %v2567 = vpop.permute.xlu0 %2566
        %2568 = vrot.lane.b32.xlu0 %v2491, 16
        %v2569 = vpop.permute.xlu0 %2568
        %2570 = vrot.lane.b32.xlu0 %v2492, 16
        %v2571 = vpop.permute.xlu0 %2570
        %2572 = vrot.lane.b32.xlu0 %v2493, 16
        %v2573 = vpop.permute.xlu0 %2572
        %2574 = vrot.lane.b32.xlu0 %v2494, 16
        %v2575 = vpop.permute.xlu0 %2574
        %2576 = vrot.lane.b32.xlu0 %v2495, 16
        %v2577 = vpop.permute.xlu0 %2576
        %2598 = vrot.lane.b32.xlu0 %v2496, 32
        %v2599 = vpop.permute.xlu0 %2598
        %2600 = vrot.lane.b32.xlu0 %v2497, 32
        %v2601 = vpop.permute.xlu0 %2600
        %2602 = vrot.lane.b32.xlu0 %v2498, 32
        %v2603 = vpop.permute.xlu0 %2602
        %2604 = vrot.lane.b32.xlu0 %v2499, 32
        %v2605 = vpop.permute.xlu0 %2604
        %2606 = vrot.lane.b32.xlu0 %v2500, 32
        %v2607 = vpop.permute.xlu0 %2606
        %2608 = vrot.lane.b32.xlu0 %v2501, 32
        %v2609 = vpop.permute.xlu0 %2608
        %2610 = vrot.lane.b32.xlu0 %v2502, 32
        %v2611 = vpop.permute.xlu0 %2610
        %2612 = vrot.lane.b32.xlu0 %v2503, 32
        %v2613 = vpop.permute.xlu0 %2612
        %2614 = vrot.lane.b32.xlu0 %v2504, 32
        %v2615 = vpop.permute.xlu0 %2614
        %2616 = vrot.lane.b32.xlu0 %v2505, 32
        %v2617 = vpop.permute.xlu0 %2616
        %2629 = vrot.lane.b32.xlu0 %v2497, 48
        %v2630 = vpop.permute.xlu0 %2629
        %2631 = vrot.lane.b32.xlu0 %v2498, 48
        %v2632 = vpop.permute.xlu0 %2631
        %2633 = vrot.lane.b32.xlu0 %v2499, 48
        %v2634 = vpop.permute.xlu0 %2633
        %2635 = vrot.lane.b32.xlu0 %v2500, 48
        %v2636 = vpop.permute.xlu0 %2635
        %2637 = vrot.lane.b32.xlu0 %v2501, 48
        %v2638 = vpop.permute.xlu0 %2637
        %2639 = vrot.lane.b32.xlu0 %v2502, 48
        %v2640 = vpop.permute.xlu0 %2639
        %2641 = vrot.lane.b32.xlu0 %v2503, 48
        %v2642 = vpop.permute.xlu0 %2641
        %2643 = vrot.lane.b32.xlu0 %v2504, 48
        %v2644 = vpop.permute.xlu0 %2643
        %2645 = vrot.lane.b32.xlu0 %v2505, 48
        %v2646 = vpop.permute.xlu0 %2645
        %2647 = vrot.lane.b32.xlu0 %v2506, 48
        %v2648 = vpop.permute.xlu0 %2647
        %2669 = vrot.lane.b32.xlu0 %v2507, 64
        %v2670 = vpop.permute.xlu0 %2669
        %2671 = vrot.lane.b32.xlu0 %v2508, 64
        %v2672 = vpop.permute.xlu0 %2671
        %2673 = vrot.lane.b32.xlu0 %v2509, 64
        %v2674 = vpop.permute.xlu0 %2673
        %2675 = vrot.lane.b32.xlu0 %v2510, 64
        %v2676 = vpop.permute.xlu0 %2675
        %2677 = vrot.lane.b32.xlu0 %v2511, 64
        %v2678 = vpop.permute.xlu0 %2677
        %2679 = vrot.lane.b32.xlu0 %v2512, 64
        %v2680 = vpop.permute.xlu0 %2679
        %2681 = vrot.lane.b32.xlu0 %v2513, 64
        %v2682 = vpop.permute.xlu0 %2681
        %2683 = vrot.lane.b32.xlu0 %v2514, 64
        %v2684 = vpop.permute.xlu0 %2683
        %2685 = vrot.lane.b32.xlu0 %v2515, 64
        %v2686 = vpop.permute.xlu0 %2685
        %2687 = vrot.lane.b32.xlu0 %v2516, 64
        %v2688 = vpop.permute.xlu0 %2687
        %2709 = vrot.lane.b32.xlu0 %v2517, 80
        %v2710 = vpop.permute.xlu0 %2709
        %2711 = vrot.lane.b32.xlu0 %v2518, 80
        %v2712 = vpop.permute.xlu0 %2711
        %2713 = vrot.lane.b32.xlu0 %v2519, 80
        %v2714 = vpop.permute.xlu0 %2713
        %2715 = vrot.lane.b32.xlu0 %v2520, 80
        %v2716 = vpop.permute.xlu0 %2715
        %2717 = vrot.lane.b32.xlu0 %v2521, 80
        %v2718 = vpop.permute.xlu0 %2717
        %2719 = vrot.lane.b32.xlu0 %v2522, 80
        %v2720 = vpop.permute.xlu0 %2719
        %2721 = vrot.lane.b32.xlu0 %v2523, 80
        %v2722 = vpop.permute.xlu0 %2721
        %2723 = vrot.lane.b32.xlu0 %v2524, 80
        %v2724 = vpop.permute.xlu0 %2723
        %2725 = vrot.lane.b32.xlu0 %v2525, 80
        %v2726 = vpop.permute.xlu0 %2725
        %2727 = vrot.lane.b32.xlu0 %v2526, 80
        %v2728 = vpop.permute.xlu0 %2727
        %2740 = vrot.lane.b32.xlu0 %v2518, 96
        %v2741 = vpop.permute.xlu0 %2740
        %2742 = vrot.lane.b32.xlu0 %v2519, 96
        %v2743 = vpop.permute.xlu0 %2742
        %2744 = vrot.lane.b32.xlu0 %v2520, 96
        %v2745 = vpop.permute.xlu0 %2744
        %2746 = vrot.lane.b32.xlu0 %v2521, 96
        %v2747 = vpop.permute.xlu0 %2746
        %2748 = vrot.lane.b32.xlu0 %v2522, 96
        %v2749 = vpop.permute.xlu0 %2748
        %2750 = vrot.lane.b32.xlu0 %v2523, 96
        %v2751 = vpop.permute.xlu0 %2750
        %2752 = vrot.lane.b32.xlu0 %v2524, 96
        %v2753 = vpop.permute.xlu0 %2752
        %2754 = vrot.lane.b32.xlu0 %v2525, 96
        %v2755 = vpop.permute.xlu0 %2754
        %2756 = vrot.lane.b32.xlu0 %v2526, 96
        %v2757 = vpop.permute.xlu0 %2756
        %2758 = vrot.lane.b32.xlu0 %v2527, 96
        %v2759 = vpop.permute.xlu0 %2758
        %2780 = vrot.lane.b32.xlu0 %v2528, 112
        %v2781 = vpop.permute.xlu0 %2780
        %2782 = vrot.lane.b32.xlu0 %v2529, 112
        %v2783 = vpop.permute.xlu0 %2782
        %2784 = vrot.lane.b32.xlu0 %v2530, 112
        %v2785 = vpop.permute.xlu0 %2784
        %2786 = vrot.lane.b32.xlu0 %v2531, 112
        %v2787 = vpop.permute.xlu0 %2786
        %2788 = vrot.lane.b32.xlu0 %v2532, 112
        %v2789 = vpop.permute.xlu0 %2788
        %2790 = vrot.lane.b32.xlu0 %v2533, 112
        %v2791 = vpop.permute.xlu0 %2790
        %2792 = vrot.lane.b32.xlu0 %v2534, 112
        %v2793 = vpop.permute.xlu0 %2792
        %2794 = vrot.lane.b32.xlu0 %v2535, 112
        %v2795 = vpop.permute.xlu0 %2794
        %2796 = vrot.lane.b32.xlu0 %v2536, 112
        %v2797 = vpop.permute.xlu0 %2796
        %2798 = vrot.lane.b32.xlu0 %v2537, 112
        %v2799 = vpop.permute.xlu0 %2798
        %v2810 = vsel %vm630, %v2476, %v2559
        %v2811 = vsel %vm630, %v2477, %v2561
        %v2812 = vsel %vm630, %v2478, %v2563
        %v2813 = vsel %vm630, %v2479, %v2565
        %v2814 = vsel %vm630, %v2480, %v2567
        %v2815 = vsel %vm630, %v2481, %v2569
        %v2816 = vsel %vm630, %v2482, %v2571
        %v2817 = vsel %vm630, %v2483, %v2573
        %v2818 = vsel %vm630, %v2484, %v2575
        %v2819 = vsel %vm630, %v2485, %v2577
        %v2820 = vsel %vm1371, %v2810, %v2599
        %v2821 = vsel %vm1371, %v2811, %v2601
        %v2822 = vsel %vm1371, %v2812, %v2603
        %v2823 = vsel %vm1371, %v2813, %v2605
        %v2824 = vsel %vm1371, %v2814, %v2607
        %v2825 = vsel %vm1371, %v2815, %v2609
        %v2826 = vsel %vm1371, %v2816, %v2611
        %v2827 = vsel %vm1371, %v2817, %v2613
        %v2828 = vsel %vm1371, %v2818, %v2615
        %v2829 = vsel %vm1371, %v2819, %v2617
        %v2830 = vsel %vm1382, %v2820, %v2630
        %v2831 = vsel %vm1382, %v2821, %v2632
        %v2832 = vsel %vm1382, %v2822, %v2634
        %v2833 = vsel %vm1382, %v2823, %v2636
        %v2834 = vsel %vm1382, %v2824, %v2638
        %v2835 = vsel %vm1382, %v2825, %v2640
        %v2836 = vsel %vm1382, %v2826, %v2642
        %v2837 = vsel %vm1382, %v2827, %v2644
        %v2838 = vsel %vm1382, %v2828, %v2646
        %v2839 = vsel %vm1382, %v2829, %v2648
        %v2840 = vsel %vm1393, %v2830, %v2670
        %v2841 = vsel %vm1393, %v2831, %v2672
        %v2842 = vsel %vm1393, %v2832, %v2674
        %v2843 = vsel %vm1393, %v2833, %v2676
        %v2844 = vsel %vm1393, %v2834, %v2678
        %v2845 = vsel %vm1393, %v2835, %v2680
        %v2846 = vsel %vm1393, %v2836, %v2682
        %v2847 = vsel %vm1393, %v2837, %v2684
        %v2848 = vsel %vm1393, %v2838, %v2686
        %v2849 = vsel %vm1393, %v2839, %v2688
        %v2850 = vsel %vm1404, %v2840, %v2710
        %v2851 = vsel %vm1404, %v2841, %v2712
        %v2852 = vsel %vm1404, %v2842, %v2714
        %v2853 = vsel %vm1404, %v2843, %v2716
        %v2854 = vsel %vm1404, %v2844, %v2718
        %v2855 = vsel %vm1404, %v2845, %v2720
        %v2856 = vsel %vm1404, %v2846, %v2722
        %v2857 = vsel %vm1404, %v2847, %v2724
        %v2858 = vsel %vm1404, %v2848, %v2726
        %v2859 = vsel %vm1404, %v2849, %v2728
        %v2860 = vsel %vm1415, %v2850, %v2741
        %v2861 = vsel %vm1415, %v2851, %v2743
        %v2862 = vsel %vm1415, %v2852, %v2745
        %v2863 = vsel %vm1415, %v2853, %v2747
        %v2864 = vsel %vm1415, %v2854, %v2749
        %v2865 = vsel %vm1415, %v2855, %v2751
        %v2866 = vsel %vm1415, %v2856, %v2753
        %v2867 = vsel %vm1415, %v2857, %v2755
        %v2868 = vsel %vm1415, %v2858, %v2757
        %v2869 = vsel %vm1415, %v2859, %v2759
        %v2870 = vsel %vm1426, %v2860, %v2781
        %v2871 = vsel %vm1426, %v2861, %v2783
        %v2872 = vsel %vm1426, %v2862, %v2785
        %v2873 = vsel %vm1426, %v2863, %v2787
        %v2874 = vsel %vm1426, %v2864, %v2789
        %v2875 = vsel %vm1426, %v2865, %v2791
        %v2876 = vsel %vm1426, %v2866, %v2793
        %v2877 = vsel %vm1426, %v2867, %v2795
        %v2878 = vsel %vm1426, %v2868, %v2797
        %v2879 = vsel %vm1426, %v2869, %v2799
        %v2881 = vlaneseq
        %v2882 = vshrl.u32 %v2881, 7
        %v2883 = vsub.s32 0, %v2882
        %v2884 = vrot.slane %v2475, %v2883
        %v2887 = vsel %vm630, %v2538, 0
        %v2890 = vsel %vm630, %v2539, 0
        %v2893 = vsel %vm630, %v2540, 0
        %v2896 = vsel %vm630, %v2541, 0
        %v2899 = vsel %vm630, %v2542, 0
        %v2902 = vsel %vm630, %v2543, 0
        %v2905 = vsel %vm630, %v2544, 0
        %v2908 = vsel %vm630, %v2545, 0
        %v2911 = vsel %vm630, %v2546, 0
        %v2914 = vsel %vm630, %v2547, 0
        %2916 = vmatprep.subr.mxu0 0.0
        %2917 = vmatpush1.msra.mxu0 %v2456
        %2918 = vmatprep.subr.mxu0 0.0
        %2919 = vmatpush1.msra.mxu0 %v2457
        %2920 = vmatprep.subr.mxu0 0.0
        %2921 = vmatpush1.msra.mxu0 %v2458
        %2922 = vmatprep.subr.mxu0 0.0
        %2923 = vmatpush1.msra.mxu0 %v2459
        %2924 = vmatprep.subr.mxu0 0.0
        %2925 = vmatpush1.msra.mxu0 %v2460
        %2926 = vmatprep.subr.mxu0 0.0
        %2927 = vmatpush1.msra.mxu0 %v2461
        %2928 = vmatprep.subr.mxu0 0.0
        %2929 = vmatpush1.msra.mxu0 %v2462
        %2930 = vmatprep.subr.mxu0 0.0
        %2931 = vmatpush1.msra.mxu0 %v2463
        %2932 = vmatprep.subr.mxu0 0.0
        %2933 = vmatpush1.msra.mxu0 %v2464
        %2934 = vmatprep.subr.mxu0 0.0
        %2935 = vmatpush1.msra.mxu0 %v2465
        %2936 = vmatprep.subr.mxu0 0.0
        %2937 = vmatpush1.msra.mxu0 %v2466
        %2938 = vmatprep.subr.mxu0 0.0
        %2939 = vmatpush1.msra.mxu0 %v2467
        %2940 = vmatprep.subr.mxu0 0.0
        %2941 = vmatpush1.msra.mxu0 %v2468
        %2942 = vmatprep.subr.mxu0 0.0
        %2943 = vmatpush1.msra.mxu0 %v2469
        %2944 = vmatprep.subr.mxu0 0.0
        %2945 = vmatpush1.msra.mxu0 %v2470
        %2946 = vmatprep.subr.mxu0 0.0
        %2947 = vmatpush1.msra.mxu0 %v2471
        %2948 = vmatprep.subr.mxu0 0.0
        %2949 = vmatpush1.msra.mxu0 %v2472
        %2950 = vmatprep.subr.mxu0 0.0
        %2951 = vmatpush1.msra.mxu0 %v2473
        %2952 = vmatprep.subr.mxu0 0.0
        %2953 = vmatpush1.msra.mxu0 0.0
        %2954 = vmatprep.subr.mxu0 0.0
        %2955 = vmatpush1.msra.mxu0 0.0
        %2956 = vmatprep.subr.mxu0 0.0
        %2957 = vmatpush1.msra.mxu0 0.0
        %2958 = vmatprep.subr.mxu0 0.0
        %2959 = vmatpush1.msra.mxu0 0.0
        %2960 = vmatprep.subr.mxu0 0.0
        %2961 = vmatpush1.msra.mxu0 0.0
        %2962 = vmatprep.subr.mxu0 0.0
        %2963 = vmatpush1.msra.mxu0 0.0
        %2964 = vmatprep.subr.mxu0 0.0
        %2965 = vmatpush1.msra.mxu0 0.0
        %2966 = vmatprep.subr.mxu0 0.0
        %2967 = vmatpush1.msra.mxu0 0.0
        %2968 = vmatprep.subr.mxu0 0.0
        %2969 = vmatpush1.msra.mxu0 0.0
        %2970 = vmatprep.subr.mxu0 0.0
        %2971 = vmatpush1.msra.mxu0 0.0
        %2972 = vmatprep.subr.mxu0 0.0
        %2973 = vmatpush1.msra.mxu0 0.0
        %2974 = vmatprep.subr.mxu0 0.0
        %2975 = vmatpush1.msra.mxu0 0.0
        %2976 = vmatprep.subr.mxu0 0.0
        %2977 = vmatpush1.msra.mxu0 0.0
        %2978 = vmatprep.subr.mxu0 0.0
        %2979 = vmatpush1.msra.mxu0 0.0
        %2980 = vmatprep.mubr.f32.mxu0 %v2887
        %2981 = vmatmul.mubr.f32.gmra.mrb[0].mxu0 %v2870
        %v2982 = vpop.f32.mrb[0].mxu0
        %v2983 = vadd.f32 %v2884, %v2982
        %v2984 = vpop.f32.mrb[0].mxu0
        %2985 = vmatprep.mubr.f32.mxu0 %v2890
        %2986 = vmatmul.mubr.f32.gmra.mrb[0].mxu0 %v2871
        %v2987 = vpop.f32.mrb[0].mxu0
        %v2988 = vadd.f32 %v2884, %v2987
        %v2989 = vpop.f32.mrb[0].mxu0
        %2990 = vmatprep.mubr.f32.mxu0 %v2893
        %2991 = vmatmul.mubr.f32.gmra.mrb[0].mxu0 %v2872
        %v2992 = vpop.f32.mrb[0].mxu0
        %v2993 = vadd.f32 %v2884, %v2992
        %v2994 = vpop.f32.mrb[0].mxu0
        %2995 = vmatprep.mubr.f32.mxu0 %v2896
        %2996 = vmatmul.mubr.f32.gmra.mrb[0].mxu0 %v2873
        %v2997 = vpop.f32.mrb[0].mxu0
        %v2998 = vadd.f32 %v2884, %v2997
        %v2999 = vpop.f32.mrb[0].mxu0
        %3000 = vmatprep.mubr.f32.mxu0 %v2899
        %3001 = vmatmul.mubr.f32.gmra.mrb[0].mxu0 %v2874
        %v3002 = vpop.f32.mrb[0].mxu0
        %v3003 = vadd.f32 %v2884, %v3002
        %v3004 = vpop.f32.mrb[0].mxu0
        %3005 = vmatprep.mubr.f32.mxu0 %v2902
        %3006 = vmatmul.mubr.f32.gmra.mrb[0].mxu0 %v2875
        %v3007 = vpop.f32.mrb[0].mxu0
        %v3008 = vadd.f32 %v2884, %v3007
        %v3009 = vpop.f32.mrb[0].mxu0
        %3010 = vmatprep.mubr.f32.mxu0 %v2905
        %3011 = vmatmul.mubr.f32.gmra.mrb[0].mxu0 %v2876
        %v3012 = vpop.f32.mrb[0].mxu0
        %v3013 = vadd.f32 %v2884, %v3012
        %v3014 = vpop.f32.mrb[0].mxu0
        %3015 = vmatprep.mubr.f32.mxu0 %v2908
        %3016 = vmatmul.mubr.f32.gmra.mrb[0].mxu0 %v2877
        %v3017 = vpop.f32.mrb[0].mxu0
        %v3018 = vadd.f32 %v2884, %v3017
        %v3019 = vpop.f32.mrb[0].mxu0
        %3020 = vmatprep.mubr.f32.mxu0 %v2911
        %3021 = vmatmul.mubr.f32.gmra.mrb[0].mxu0 %v2878
        %v3022 = vpop.f32.mrb[0].mxu0
        %v3023 = vadd.f32 %v2884, %v3022
        %v3024 = vpop.f32.mrb[0].mxu0
        %3025 = vmatprep.mubr.f32.mxu0 %v2914
        %3026 = vmatmul.mubr.f32.gmra.mrb[0].mxu0 %v2879
        %v3027 = vpop.f32.mrb[0].mxu0
        %v3028 = vadd.f32 %v2884, %v3027
        %v3029 = vpop.f32.mrb[0].mxu0
        %3030 = vdwg.mxu0
        %v3031 = vmax.f32 %v2983, 0.0
        %v3032 = vmax.f32 %v2988, 0.0
        %v3033 = vmax.f32 %v2993, 0.0
        %v3034 = vmax.f32 %v2998, 0.0
        %v3035 = vmax.f32 %v3003, 0.0
        %v3036 = vmax.f32 %v3008, 0.0
        %v3037 = vmax.f32 %v3013, 0.0
        %v3038 = vmax.f32 %v3018, 0.0
        %v3039 = vmax.f32 %v3023, 0.0
        %v3040 = vmax.f32 %v3028, 0.0
        %v3041 = vsel %vm1608, %v3031, 0.0
        %v3042 = vsel %vm1609, %v3032, 0.0
        %v3043 = vsel %vm1610, %v3033, 0.0
        %v3044 = vsel %vm1611, %v3034, 0.0
        %v3045 = vsel %vm1612, %v3035, 0.0
        %v3046 = vsel %vm1613, %v3036, 0.0
        %v3047 = vsel %vm1614, %v3037, 0.0
        %v3048 = vsel %vm1615, %v3038, 0.0
        %v3049 = vsel %vm1616, %v3039, 0.0
        %v3050 = vsel %vm1617, %v3040, 0.0
        %3051 = vst.msk [vmem:[#allocation3 + $0xb] sm:$0xff] %vm630, %v3041
        %3052 = vst.msk [vmem:[#allocation3 + $0x13] sm:$0xff] %vm630, %v3042
        %3053 = vst.msk [vmem:[#allocation3 + $0x1b] sm:$0xff] %vm630, %v3043
        %3054 = vst.msk [vmem:[#allocation3 + $0x23] sm:$0xff] %vm630, %v3044
        %3055 = vst.msk [vmem:[#allocation3 + $0x2b] sm:$0xff] %vm630, %v3045
        %3056 = vst.msk [vmem:[#allocation3 + $0x33] sm:$0xff] %vm630, %v3046
        %3057 = vst.msk [vmem:[#allocation3 + $0x3b] sm:$0xff] %vm630, %v3047
        %3058 = vst.msk [vmem:[#allocation3 + $0x43] sm:$0xff] %vm630, %v3048
        %3059 = vst.msk [vmem:[#allocation3 + $0x4b] sm:$0xff] %vm630, %v3049
        %3060 = vst.msk [vmem:[#allocation3 + $0x53] sm:$0xff] %vm630, %v3050
        %s3061 = scalar_lea.vmem [#allocation9], 144
        %v3062 = vld [vmem:[%s3061] sm:$0xff]
        %v3063 = vld [vmem:[%s3061 + $0x8] sm:$0xff]
        %v3064 = vld [vmem:[%s3061 + $0x10] sm:$0xff]
        %v3065 = vld [vmem:[%s3061 + $0x18] sm:$0xff]
        %v3066 = vld [vmem:[%s3061 + $0x20] sm:$0xff]
        %v3067 = vld [vmem:[%s3061 + $0x28] sm:$0xff]
        %v3068 = vld [vmem:[%s3061 + $0x30] sm:$0xff]
        %v3069 = vld [vmem:[%s3061 + $0x38] sm:$0xff]
        %v3070 = vld [vmem:[%s3061 + $0x40] sm:$0xff]
        %v3071 = vld [vmem:[%s3061 + $0x48] sm:$0xff]
        %v3072 = vld [vmem:[%s3061 + $0x50] sm:$0xff]
        %v3073 = vld [vmem:[%s3061 + $0x58] sm:$0xff]
        %v3074 = vld [vmem:[%s3061 + $0x60] sm:$0xff]
        %v3075 = vld [vmem:[%s3061 + $0x68] sm:$0xff]
        %v3076 = vld [vmem:[%s3061 + $0x70] sm:$0xff]
        %v3077 = vld [vmem:[%s3061 + $0x78] sm:$0xff]
        %v3078 = vld [vmem:[%s3061 + $0x80] sm:$0xff]
        %v3079 = vld [vmem:[%s3061 + $0x88] sm:$0xff]
        %s3080 = scalar_lea.vmem %s4, 1
        %v3081 = vld [vmem:[%s3080] sm:$0x1]
        %v3082 = vld [vmem:[#allocation3] sm:$0xff]
        %v3083 = vld [vmem:[#allocation3 + $0x8] sm:$0xff]
        %v3084 = vld [vmem:[#allocation3 + $0x10] sm:$0xff]
        %v3085 = vld [vmem:[#allocation3 + $0x18] sm:$0xff]
        %v3086 = vld [vmem:[#allocation3 + $0x20] sm:$0xff]
        %v3087 = vld [vmem:[#allocation3 + $0x28] sm:$0xff]
        %v3088 = vld [vmem:[#allocation3 + $0x30] sm:$0xff]
        %v3089 = vld [vmem:[#allocation3 + $0x38] sm:$0xff]
        %v3090 = vld [vmem:[#allocation3 + $0x40] sm:$0xff]
        %v3091 = vld [vmem:[#allocation3 + $0x48] sm:$0xff]
        %v3092 = vld [vmem:[#allocation3 + $0x1] sm:$0xff]
        %v3093 = vld [vmem:[#allocation3 + $0x9] sm:$0xff]
        %v3094 = vld [vmem:[#allocation3 + $0x11] sm:$0xff]
        %v3095 = vld [vmem:[#allocation3 + $0x19] sm:$0xff]
        %v3096 = vld [vmem:[#allocation3 + $0x21] sm:$0xff]
        %v3097 = vld [vmem:[#allocation3 + $0x29] sm:$0xff]
        %v3098 = vld [vmem:[#allocation3 + $0x31] sm:$0xff]
        %v3099 = vld [vmem:[#allocation3 + $0x39] sm:$0xff]
        %v3100 = vld [vmem:[#allocation3 + $0x41] sm:$0xff]
        %v3101 = vld [vmem:[#allocation3 + $0x49] sm:$0xff]
        %v3102 = vld [vmem:[#allocation3 + $0x2] sm:$0xff]
        %v3103 = vld [vmem:[#allocation3 + $0xa] sm:$0xff]
        %v3104 = vld [vmem:[#allocation3 + $0x12] sm:$0xff]
        %v3105 = vld [vmem:[#allocation3 + $0x1a] sm:$0xff]
        %v3106 = vld [vmem:[#allocation3 + $0x22] sm:$0xff]
        %v3107 = vld [vmem:[#allocation3 + $0x2a] sm:$0xff]
        %v3108 = vld [vmem:[#allocation3 + $0x32] sm:$0xff]
        %v3109 = vld [vmem:[#allocation3 + $0x3a] sm:$0xff]
        %v3110 = vld [vmem:[#allocation3 + $0x42] sm:$0xff]
        %v3111 = vld [vmem:[#allocation3 + $0x4a] sm:$0xff]
        %v3112 = vld [vmem:[#allocation3 + $0x52] sm:$0xff]
        %v3113 = vld [vmem:[#allocation3 + $0xb] sm:$0xff]
        %v3114 = vld [vmem:[#allocation3 + $0x13] sm:$0xff]
        %v3115 = vld [vmem:[#allocation3 + $0x1b] sm:$0xff]
        %v3116 = vld [vmem:[#allocation3 + $0x23] sm:$0xff]
        %v3117 = vld [vmem:[#allocation3 + $0x2b] sm:$0xff]
        %v3118 = vld [vmem:[#allocation3 + $0x33] sm:$0xff]
        %v3119 = vld [vmem:[#allocation3 + $0x3b] sm:$0xff]
        %v3120 = vld [vmem:[#allocation3 + $0x43] sm:$0xff]
        %v3121 = vld [vmem:[#allocation3 + $0x4b] sm:$0xff]
        %v3122 = vld [vmem:[#allocation3 + $0x53] sm:$0xff]
        %v3123 = vld [vmem:[#allocation3 + $0xc] sm:$0xff]
        %v3124 = vld [vmem:[#allocation3 + $0x14] sm:$0xff]
        %v3125 = vld [vmem:[#allocation3 + $0x1c] sm:$0xff]
        %v3126 = vld [vmem:[#allocation3 + $0x24] sm:$0xff]
        %v3127 = vld [vmem:[#allocation3 + $0x2c] sm:$0xff]
        %v3128 = vld [vmem:[#allocation3 + $0x34] sm:$0xff]
        %v3129 = vld [vmem:[#allocation3 + $0x3c] sm:$0xff]
        %v3130 = vld [vmem:[#allocation3 + $0x44] sm:$0xff]
        %v3131 = vld [vmem:[#allocation3 + $0x4c] sm:$0xff]
        %v3132 = vld [vmem:[#allocation3 + $0x54] sm:$0xff]
        %v3133 = vld [vmem:[#allocation3 + $0x5c] sm:$0xff]
        %v3134 = vld [vmem:[#allocation3 + $0x15] sm:$0xff]
        %v3135 = vld [vmem:[#allocation3 + $0x1d] sm:$0xff]
        %v3136 = vld [vmem:[#allocation3 + $0x25] sm:$0xff]
        %v3137 = vld [vmem:[#allocation3 + $0x2d] sm:$0xff]
        %v3138 = vld [vmem:[#allocation3 + $0x35] sm:$0xff]
        %v3139 = vld [vmem:[#allocation3 + $0x3d] sm:$0xff]
        %v3140 = vld [vmem:[#allocation3 + $0x45] sm:$0xff]
        %v3141 = vld [vmem:[#allocation3 + $0x4d] sm:$0xff]
        %v3142 = vld [vmem:[#allocation3 + $0x55] sm:$0xff]
        %v3143 = vld [vmem:[#allocation3 + $0x5d] sm:$0xff]
        %v3144 = vld [vmem:[#allocation3 + $0x16] sm:$0xff]
        %v3145 = vld [vmem:[#allocation3 + $0x1e] sm:$0xff]
        %v3146 = vld [vmem:[#allocation3 + $0x26] sm:$0xff]
        %v3147 = vld [vmem:[#allocation3 + $0x2e] sm:$0xff]
        %v3148 = vld [vmem:[#allocation3 + $0x36] sm:$0xff]
        %v3149 = vld [vmem:[#allocation3 + $0x3e] sm:$0xff]
        %v3150 = vld [vmem:[#allocation3 + $0x46] sm:$0xff]
        %v3151 = vld [vmem:[#allocation3 + $0x4e] sm:$0xff]
        %v3152 = vld [vmem:[#allocation3 + $0x56] sm:$0xff]
        %v3153 = vld [vmem:[#allocation3 + $0x5e] sm:$0xff]
        %3164 = vrot.lane.b32.xlu0 %v3092, 16
        %v3165 = vpop.permute.xlu0 %3164
        %3166 = vrot.lane.b32.xlu0 %v3093, 16
        %v3167 = vpop.permute.xlu0 %3166
        %3168 = vrot.lane.b32.xlu0 %v3094, 16
        %v3169 = vpop.permute.xlu0 %3168
        %3170 = vrot.lane.b32.xlu0 %v3095, 16
        %v3171 = vpop.permute.xlu0 %3170
        %3172 = vrot.lane.b32.xlu0 %v3096, 16
        %v3173 = vpop.permute.xlu0 %3172
        %3174 = vrot.lane.b32.xlu0 %v3097, 16
        %v3175 = vpop.permute.xlu0 %3174
        %3176 = vrot.lane.b32.xlu0 %v3098, 16
        %v3177 = vpop.permute.xlu0 %3176
        %3178 = vrot.lane.b32.xlu0 %v3099, 16
        %v3179 = vpop.permute.xlu0 %3178
        %3180 = vrot.lane.b32.xlu0 %v3100, 16
        %v3181 = vpop.permute.xlu0 %3180
        %3182 = vrot.lane.b32.xlu0 %v3101, 16
        %v3183 = vpop.permute.xlu0 %3182
        %3204 = vrot.lane.b32.xlu0 %v3102, 32
        %v3205 = vpop.permute.xlu0 %3204
        %3206 = vrot.lane.b32.xlu0 %v3103, 32
        %v3207 = vpop.permute.xlu0 %3206
        %3208 = vrot.lane.b32.xlu0 %v3104, 32
        %v3209 = vpop.permute.xlu0 %3208
        %3210 = vrot.lane.b32.xlu0 %v3105, 32
        %v3211 = vpop.permute.xlu0 %3210
        %3212 = vrot.lane.b32.xlu0 %v3106, 32
        %v3213 = vpop.permute.xlu0 %3212
        %3214 = vrot.lane.b32.xlu0 %v3107, 32
        %v3215 = vpop.permute.xlu0 %3214
        %3216 = vrot.lane.b32.xlu0 %v3108, 32
        %v3217 = vpop.permute.xlu0 %3216
        %3218 = vrot.lane.b32.xlu0 %v3109, 32
        %v3219 = vpop.permute.xlu0 %3218
        %3220 = vrot.lane.b32.xlu0 %v3110, 32
        %v3221 = vpop.permute.xlu0 %3220
        %3222 = vrot.lane.b32.xlu0 %v3111, 32
        %v3223 = vpop.permute.xlu0 %3222
        %3235 = vrot.lane.b32.xlu0 %v3103, 48
        %v3236 = vpop.permute.xlu0 %3235
        %3237 = vrot.lane.b32.xlu0 %v3104, 48
        %v3238 = vpop.permute.xlu0 %3237
        %3239 = vrot.lane.b32.xlu0 %v3105, 48
        %v3240 = vpop.permute.xlu0 %3239
        %3241 = vrot.lane.b32.xlu0 %v3106, 48
        %v3242 = vpop.permute.xlu0 %3241
        %3243 = vrot.lane.b32.xlu0 %v3107, 48
        %v3244 = vpop.permute.xlu0 %3243
        %3245 = vrot.lane.b32.xlu0 %v3108, 48
        %v3246 = vpop.permute.xlu0 %3245
        %3247 = vrot.lane.b32.xlu0 %v3109, 48
        %v3248 = vpop.permute.xlu0 %3247
        %3249 = vrot.lane.b32.xlu0 %v3110, 48
        %v3250 = vpop.permute.xlu0 %3249
        %3251 = vrot.lane.b32.xlu0 %v3111, 48
        %v3252 = vpop.permute.xlu0 %3251
        %3253 = vrot.lane.b32.xlu0 %v3112, 48
        %v3254 = vpop.permute.xlu0 %3253
        %3275 = vrot.lane.b32.xlu0 %v3113, 64
        %v3276 = vpop.permute.xlu0 %3275
        %3277 = vrot.lane.b32.xlu0 %v3114, 64
        %v3278 = vpop.permute.xlu0 %3277
        %3279 = vrot.lane.b32.xlu0 %v3115, 64
        %v3280 = vpop.permute.xlu0 %3279
        %3281 = vrot.lane.b32.xlu0 %v3116, 64
        %v3282 = vpop.permute.xlu0 %3281
        %3283 = vrot.lane.b32.xlu0 %v3117, 64
        %v3284 = vpop.permute.xlu0 %3283
        %3285 = vrot.lane.b32.xlu0 %v3118, 64
        %v3286 = vpop.permute.xlu0 %3285
        %3287 = vrot.lane.b32.xlu0 %v3119, 64
        %v3288 = vpop.permute.xlu0 %3287
        %3289 = vrot.lane.b32.xlu0 %v3120, 64
        %v3290 = vpop.permute.xlu0 %3289
        %3291 = vrot.lane.b32.xlu0 %v3121, 64
        %v3292 = vpop.permute.xlu0 %3291
        %3293 = vrot.lane.b32.xlu0 %v3122, 64
        %v3294 = vpop.permute.xlu0 %3293
        %3315 = vrot.lane.b32.xlu0 %v3123, 80
        %v3316 = vpop.permute.xlu0 %3315
        %3317 = vrot.lane.b32.xlu0 %v3124, 80
        %v3318 = vpop.permute.xlu0 %3317
        %3319 = vrot.lane.b32.xlu0 %v3125, 80
        %v3320 = vpop.permute.xlu0 %3319
        %3321 = vrot.lane.b32.xlu0 %v3126, 80
        %v3322 = vpop.permute.xlu0 %3321
        %3323 = vrot.lane.b32.xlu0 %v3127, 80
        %v3324 = vpop.permute.xlu0 %3323
        %3325 = vrot.lane.b32.xlu0 %v3128, 80
        %v3326 = vpop.permute.xlu0 %3325
        %3327 = vrot.lane.b32.xlu0 %v3129, 80
        %v3328 = vpop.permute.xlu0 %3327
        %3329 = vrot.lane.b32.xlu0 %v3130, 80
        %v3330 = vpop.permute.xlu0 %3329
        %3331 = vrot.lane.b32.xlu0 %v3131, 80
        %v3332 = vpop.permute.xlu0 %3331
        %3333 = vrot.lane.b32.xlu0 %v3132, 80
        %v3334 = vpop.permute.xlu0 %3333
        %3346 = vrot.lane.b32.xlu0 %v3124, 96
        %v3347 = vpop.permute.xlu0 %3346
        %3348 = vrot.lane.b32.xlu0 %v3125, 96
        %v3349 = vpop.permute.xlu0 %3348
        %3350 = vrot.lane.b32.xlu0 %v3126, 96
        %v3351 = vpop.permute.xlu0 %3350
        %3352 = vrot.lane.b32.xlu0 %v3127, 96
        %v3353 = vpop.permute.xlu0 %3352
        %3354 = vrot.lane.b32.xlu0 %v3128, 96
        %v3355 = vpop.permute.xlu0 %3354
        %3356 = vrot.lane.b32.xlu0 %v3129, 96
        %v3357 = vpop.permute.xlu0 %3356
        %3358 = vrot.lane.b32.xlu0 %v3130, 96
        %v3359 = vpop.permute.xlu0 %3358
        %3360 = vrot.lane.b32.xlu0 %v3131, 96
        %v3361 = vpop.permute.xlu0 %3360
        %3362 = vrot.lane.b32.xlu0 %v3132, 96
        %v3363 = vpop.permute.xlu0 %3362
        %3364 = vrot.lane.b32.xlu0 %v3133, 96
        %v3365 = vpop.permute.xlu0 %3364
        %3386 = vrot.lane.b32.xlu0 %v3134, 112
        %v3387 = vpop.permute.xlu0 %3386
        %3388 = vrot.lane.b32.xlu0 %v3135, 112
        %v3389 = vpop.permute.xlu0 %3388
        %3390 = vrot.lane.b32.xlu0 %v3136, 112
        %v3391 = vpop.permute.xlu0 %3390
        %3392 = vrot.lane.b32.xlu0 %v3137, 112
        %v3393 = vpop.permute.xlu0 %3392
        %3394 = vrot.lane.b32.xlu0 %v3138, 112
        %v3395 = vpop.permute.xlu0 %3394
        %3396 = vrot.lane.b32.xlu0 %v3139, 112
        %v3397 = vpop.permute.xlu0 %3396
        %3398 = vrot.lane.b32.xlu0 %v3140, 112
        %v3399 = vpop.permute.xlu0 %3398
        %3400 = vrot.lane.b32.xlu0 %v3141, 112
        %v3401 = vpop.permute.xlu0 %3400
        %3402 = vrot.lane.b32.xlu0 %v3142, 112
        %v3403 = vpop.permute.xlu0 %3402
        %3404 = vrot.lane.b32.xlu0 %v3143, 112
        %v3405 = vpop.permute.xlu0 %3404
        %v3416 = vsel %vm630, %v3082, %v3165
        %v3417 = vsel %vm630, %v3083, %v3167
        %v3418 = vsel %vm630, %v3084, %v3169
        %v3419 = vsel %vm630, %v3085, %v3171
        %v3420 = vsel %vm630, %v3086, %v3173
        %v3421 = vsel %vm630, %v3087, %v3175
        %v3422 = vsel %vm630, %v3088, %v3177
        %v3423 = vsel %vm630, %v3089, %v3179
        %v3424 = vsel %vm630, %v3090, %v3181
        %v3425 = vsel %vm630, %v3091, %v3183
        %v3426 = vsel %vm1371, %v3416, %v3205
        %v3427 = vsel %vm1371, %v3417, %v3207
        %v3428 = vsel %vm1371, %v3418, %v3209
        %v3429 = vsel %vm1371, %v3419, %v3211
        %v3430 = vsel %vm1371, %v3420, %v3213
        %v3431 = vsel %vm1371, %v3421, %v3215
        %v3432 = vsel %vm1371, %v3422, %v3217
        %v3433 = vsel %vm1371, %v3423, %v3219
        %v3434 = vsel %vm1371, %v3424, %v3221
        %v3435 = vsel %vm1371, %v3425, %v3223
        %v3436 = vsel %vm1382, %v3426, %v3236
        %v3437 = vsel %vm1382, %v3427, %v3238
        %v3438 = vsel %vm1382, %v3428, %v3240
        %v3439 = vsel %vm1382, %v3429, %v3242
        %v3440 = vsel %vm1382, %v3430, %v3244
        %v3441 = vsel %vm1382, %v3431, %v3246
        %v3442 = vsel %vm1382, %v3432, %v3248
        %v3443 = vsel %vm1382, %v3433, %v3250
        %v3444 = vsel %vm1382, %v3434, %v3252
        %v3445 = vsel %vm1382, %v3435, %v3254
        %v3446 = vsel %vm1393, %v3436, %v3276
        %v3447 = vsel %vm1393, %v3437, %v3278
        %v3448 = vsel %vm1393, %v3438, %v3280
        %v3449 = vsel %vm1393, %v3439, %v3282
        %v3450 = vsel %vm1393, %v3440, %v3284
        %v3451 = vsel %vm1393, %v3441, %v3286
        %v3452 = vsel %vm1393, %v3442, %v3288
        %v3453 = vsel %vm1393, %v3443, %v3290
        %v3454 = vsel %vm1393, %v3444, %v3292
        %v3455 = vsel %vm1393, %v3445, %v3294
        %v3456 = vsel %vm1404, %v3446, %v3316
        %v3457 = vsel %vm1404, %v3447, %v3318
        %v3458 = vsel %vm1404, %v3448, %v3320
        %v3459 = vsel %vm1404, %v3449, %v3322
        %v3460 = vsel %vm1404, %v3450, %v3324
        %v3461 = vsel %vm1404, %v3451, %v3326
        %v3462 = vsel %vm1404, %v3452, %v3328
        %v3463 = vsel %vm1404, %v3453, %v3330
        %v3464 = vsel %vm1404, %v3454, %v3332
        %v3465 = vsel %vm1404, %v3455, %v3334
        %v3466 = vsel %vm1415, %v3456, %v3347
        %v3467 = vsel %vm1415, %v3457, %v3349
        %v3468 = vsel %vm1415, %v3458, %v3351
        %v3469 = vsel %vm1415, %v3459, %v3353
        %v3470 = vsel %vm1415, %v3460, %v3355
        %v3471 = vsel %vm1415, %v3461, %v3357
        %v3472 = vsel %vm1415, %v3462, %v3359
        %v3473 = vsel %vm1415, %v3463, %v3361
        %v3474 = vsel %vm1415, %v3464, %v3363
        %v3475 = vsel %vm1415, %v3465, %v3365
        %v3476 = vsel %vm1426, %v3466, %v3387
        %v3477 = vsel %vm1426, %v3467, %v3389
        %v3478 = vsel %vm1426, %v3468, %v3391
        %v3479 = vsel %vm1426, %v3469, %v3393
        %v3480 = vsel %vm1426, %v3470, %v3395
        %v3481 = vsel %vm1426, %v3471, %v3397
        %v3482 = vsel %vm1426, %v3472, %v3399
        %v3483 = vsel %vm1426, %v3473, %v3401
        %v3484 = vsel %vm1426, %v3474, %v3403
        %v3485 = vsel %vm1426, %v3475, %v3405
        %v3487 = vlaneseq
        %v3488 = vshrl.u32 %v3487, 7
        %v3489 = vsub.s32 0, %v3488
        %v3490 = vrot.slane %v3081, %v3489
        %v3493 = vsel %vm630, %v3144, 0
        %v3496 = vsel %vm630, %v3145, 0
        %v3499 = vsel %vm630, %v3146, 0
        %v3502 = vsel %vm630, %v3147, 0
        %v3505 = vsel %vm630, %v3148, 0
        %v3508 = vsel %vm630, %v3149, 0
        %v3511 = vsel %vm630, %v3150, 0
        %v3514 = vsel %vm630, %v3151, 0
        %v3517 = vsel %vm630, %v3152, 0
        %v3520 = vsel %vm630, %v3153, 0
        %3522 = vmatprep.subr.mxu0 0.0
        %3523 = vmatpush1.msra.mxu0 %v3062
        %3524 = vmatprep.subr.mxu0 0.0
        %3525 = vmatpush1.msra.mxu0 %v3063
        %3526 = vmatprep.subr.mxu0 0.0
        %3527 = vmatpush1.msra.mxu0 %v3064
        %3528 = vmatprep.subr.mxu0 0.0
        %3529 = vmatpush1.msra.mxu0 %v3065
        %3530 = vmatprep.subr.mxu0 0.0
        %3531 = vmatpush1.msra.mxu0 %v3066
        %3532 = vmatprep.subr.mxu0 0.0
        %3533 = vmatpush1.msra.mxu0 %v3067
        %3534 = vmatprep.subr.mxu0 0.0
        %3535 = vmatpush1.msra.mxu0 %v3068
        %3536 = vmatprep.subr.mxu0 0.0
        %3537 = vmatpush1.msra.mxu0 %v3069
        %3538 = vmatprep.subr.mxu0 0.0
        %3539 = vmatpush1.msra.mxu0 %v3070
        %3540 = vmatprep.subr.mxu0 0.0
        %3541 = vmatpush1.msra.mxu0 %v3071
        %3542 = vmatprep.subr.mxu0 0.0
        %3543 = vmatpush1.msra.mxu0 %v3072
        %3544 = vmatprep.subr.mxu0 0.0
        %3545 = vmatpush1.msra.mxu0 %v3073
        %3546 = vmatprep.subr.mxu0 0.0
        %3547 = vmatpush1.msra.mxu0 %v3074
        %3548 = vmatprep.subr.mxu0 0.0
        %3549 = vmatpush1.msra.mxu0 %v3075
        %3550 = vmatprep.subr.mxu0 0.0
        %3551 = vmatpush1.msra.mxu0 %v3076
        %3552 = vmatprep.subr.mxu0 0.0
        %3553 = vmatpush1.msra.mxu0 %v3077
        %3554 = vmatprep.subr.mxu0 0.0
        %3555 = vmatpush1.msra.mxu0 %v3078
        %3556 = vmatprep.subr.mxu0 0.0
        %3557 = vmatpush1.msra.mxu0 %v3079
        %3558 = vmatprep.subr.mxu0 0.0
        %3559 = vmatpush1.msra.mxu0 0.0
        %3560 = vmatprep.subr.mxu0 0.0
        %3561 = vmatpush1.msra.mxu0 0.0
        %3562 = vmatprep.subr.mxu0 0.0
        %3563 = vmatpush1.msra.mxu0 0.0
        %3564 = vmatprep.subr.mxu0 0.0
        %3565 = vmatpush1.msra.mxu0 0.0
        %3566 = vmatprep.subr.mxu0 0.0
        %3567 = vmatpush1.msra.mxu0 0.0
        %3568 = vmatprep.subr.mxu0 0.0
        %3569 = vmatpush1.msra.mxu0 0.0
        %3570 = vmatprep.subr.mxu0 0.0
        %3571 = vmatpush1.msra.mxu0 0.0
        %3572 = vmatprep.subr.mxu0 0.0
        %3573 = vmatpush1.msra.mxu0 0.0
        %3574 = vmatprep.subr.mxu0 0.0
        %3575 = vmatpush1.msra.mxu0 0.0
        %3576 = vmatprep.subr.mxu0 0.0
        %3577 = vmatpush1.msra.mxu0 0.0
        %3578 = vmatprep.subr.mxu0 0.0
        %3579 = vmatpush1.msra.mxu0 0.0
        %3580 = vmatprep.subr.mxu0 0.0
        %3581 = vmatpush1.msra.mxu0 0.0
        %3582 = vmatprep.subr.mxu0 0.0
        %3583 = vmatpush1.msra.mxu0 0.0
        %3584 = vmatprep.subr.mxu0 0.0
        %3585 = vmatpush1.msra.mxu0 0.0
        %3586 = vmatprep.mubr.f32.mxu0 %v3493
        %3587 = vmatmul.mubr.f32.gmra.mrb[0].mxu0 %v3476
        %v3588 = vpop.f32.mrb[0].mxu0
        %v3589 = vadd.f32 %v3490, %v3588
        %v3590 = vpop.f32.mrb[0].mxu0
        %3591 = vmatprep.mubr.f32.mxu0 %v3496
        %3592 = vmatmul.mubr.f32.gmra.mrb[0].mxu0 %v3477
        %v3593 = vpop.f32.mrb[0].mxu0
        %v3594 = vadd.f32 %v3490, %v3593
        %v3595 = vpop.f32.mrb[0].mxu0
        %3596 = vmatprep.mubr.f32.mxu0 %v3499
        %3597 = vmatmul.mubr.f32.gmra.mrb[0].mxu0 %v3478
        %v3598 = vpop.f32.mrb[0].mxu0
        %v3599 = vadd.f32 %v3490, %v3598
        %v3600 = vpop.f32.mrb[0].mxu0
        %3601 = vmatprep.mubr.f32.mxu0 %v3502
        %3602 = vmatmul.mubr.f32.gmra.mrb[0].mxu0 %v3479
        %v3603 = vpop.f32.mrb[0].mxu0
        %v3604 = vadd.f32 %v3490, %v3603
        %v3605 = vpop.f32.mrb[0].mxu0
        %3606 = vmatprep.mubr.f32.mxu0 %v3505
        %3607 = vmatmul.mubr.f32.gmra.mrb[0].mxu0 %v3480
        %v3608 = vpop.f32.mrb[0].mxu0
        %v3609 = vadd.f32 %v3490, %v3608
        %v3610 = vpop.f32.mrb[0].mxu0
        %3611 = vmatprep.mubr.f32.mxu0 %v3508
        %3612 = vmatmul.mubr.f32.gmra.mrb[0].mxu0 %v3481
        %v3613 = vpop.f32.mrb[0].mxu0
        %v3614 = vadd.f32 %v3490, %v3613
        %v3615 = vpop.f32.mrb[0].mxu0
        %3616 = vmatprep.mubr.f32.mxu0 %v3511
        %3617 = vmatmul.mubr.f32.gmra.mrb[0].mxu0 %v3482
        %v3618 = vpop.f32.mrb[0].mxu0
        %v3619 = vadd.f32 %v3490, %v3618
        %v3620 = vpop.f32.mrb[0].mxu0
        %3621 = vmatprep.mubr.f32.mxu0 %v3514
        %3622 = vmatmul.mubr.f32.gmra.mrb[0].mxu0 %v3483
        %v3623 = vpop.f32.mrb[0].mxu0
        %v3624 = vadd.f32 %v3490, %v3623
        %v3625 = vpop.f32.mrb[0].mxu0
        %3626 = vmatprep.mubr.f32.mxu0 %v3517
        %3627 = vmatmul.mubr.f32.gmra.mrb[0].mxu0 %v3484
        %v3628 = vpop.f32.mrb[0].mxu0
        %v3629 = vadd.f32 %v3490, %v3628
        %v3630 = vpop.f32.mrb[0].mxu0
        %3631 = vmatprep.mubr.f32.mxu0 %v3520
        %3632 = vmatmul.mubr.f32.gmra.mrb[0].mxu0 %v3485
        %v3633 = vpop.f32.mrb[0].mxu0
        %v3634 = vadd.f32 %v3490, %v3633
        %v3635 = vpop.f32.mrb[0].mxu0
        %3636 = vdwg.mxu0
        %v3637 = vsel %vm1608, %v3589, 0.0
        %v3638 = vsel %vm1609, %v3594, 0.0
        %v3639 = vsel %vm1610, %v3599, 0.0
        %v3640 = vsel %vm1611, %v3604, 0.0
        %v3641 = vsel %vm1612, %v3609, 0.0
        %v3642 = vsel %vm1613, %v3614, 0.0
        %v3643 = vsel %vm1614, %v3619, 0.0
        %v3644 = vsel %vm1615, %v3624, 0.0
        %v3645 = vsel %vm1616, %v3629, 0.0
        %v3646 = vsel %vm1617, %v3634, 0.0
        %v3647 = vsel %vm630, %v3637, 0.0
        %v3648 = vsel %vm630, %v3638, 0.0
        %v3649 = vadd.f32 %v3647, %v3648
        %v3650 = vsel %vm630, %v3639, 0.0
        %v3651 = vadd.f32 %v3649, %v3650
        %v3652 = vsel %vm630, %v3640, 0.0
        %v3653 = vadd.f32 %v3651, %v3652
        %v3654 = vsel %vm630, %v3641, 0.0
        %v3655 = vadd.f32 %v3653, %v3654
        %v3656 = vsel %vm630, %v3642, 0.0
        %v3657 = vadd.f32 %v3655, %v3656
        %v3658 = vsel %vm630, %v3643, 0.0
        %v3659 = vadd.f32 %v3657, %v3658
        %v3660 = vsel %vm630, %v3644, 0.0
        %v3661 = vadd.f32 %v3659, %v3660
        %v3662 = vsel %vm630, %v3645, 0.0
        %v3663 = vadd.f32 %v3661, %v3662
        %v3664 = vsel %vm630, %v3646, 0.0
        %v3665 = vadd.f32 %v3663, %v3664
        %v3666 = vrot.slane %v3665, 4
        %v3667 = vadd.f32 %v3665, %v3666
        %v3668 = vrot.slane %v3667, 2
        %v3669 = vadd.f32 %v3667, %v3668
        %v3670 = vrot.slane %v3669, 1
        %v3671 = vadd.f32 %v3669, %v3670
        %v3672 = vmul.f32 %v3671, 0.015625
        %s3673 = scalar_lea.vmem %s5, 16
        %v3674 = vld [vmem:[%s3673] sm:$0xff]
        %v3675 = vld [vmem:[%s3673 + $0x8] sm:$0xff]
        %s3676 = scalar_lea.vmem %s6, 1
        %v3677 = vld [vmem:[%s3676] sm:$0x1]
        %v3679 = vsel %vm630, %v3672, 0
        %3681 = vmatprep.subr.mxu0 0.0
        %3682 = vmatpush1.msra.mxu0 %v3674
        %3683 = vmatprep.subr.mxu0 0.0
        %3684 = vmatpush1.msra.mxu0 %v3675
        %3685 = vmatprep.subr.mxu0 0.0
        %3686 = vmatpush1.msra.mxu0 0.0
        %3687 = vmatprep.subr.mxu0 0.0
        %3688 = vmatpush1.msra.mxu0 0.0
        %3689 = vmatprep.subr.mxu0 0.0
        %3690 = vmatpush1.msra.mxu0 0.0
        %3691 = vmatprep.subr.mxu0 0.0
        %3692 = vmatpush1.msra.mxu0 0.0
        %3693 = vmatprep.subr.mxu0 0.0
        %3694 = vmatpush1.msra.mxu0 0.0
        %3695 = vmatprep.subr.mxu0 0.0
        %3696 = vmatpush1.msra.mxu0 0.0
        %3697 = vmatprep.subr.mxu0 0.0
        %3698 = vmatpush1.msra.mxu0 0.0
        %3699 = vmatprep.subr.mxu0 0.0
        %3700 = vmatpush1.msra.mxu0 0.0
        %3701 = vmatprep.subr.mxu0 0.0
        %3702 = vmatpush1.msra.mxu0 0.0
        %3703 = vmatprep.subr.mxu0 0.0
        %3704 = vmatpush1.msra.mxu0 0.0
        %3705 = vmatprep.subr.mxu0 0.0
        %3706 = vmatpush1.msra.mxu0 0.0
        %3707 = vmatprep.subr.mxu0 0.0
        %3708 = vmatpush1.msra.mxu0 0.0
        %3709 = vmatprep.subr.mxu0 0.0
        %3710 = vmatpush1.msra.mxu0 0.0
        %3711 = vmatprep.subr.mxu0 0.0
        %3712 = vmatpush1.msra.mxu0 0.0
        %3713 = vmatprep.subr.mxu0 0.0
        %3714 = vmatpush1.msra.mxu0 0.0
        %3715 = vmatprep.subr.mxu0 0.0
        %3716 = vmatpush1.msra.mxu0 0.0
        %3717 = vmatprep.subr.mxu0 0.0
        %3718 = vmatpush1.msra.mxu0 0.0
        %3719 = vmatprep.subr.mxu0 0.0
        %3720 = vmatpush1.msra.mxu0 0.0
        %3721 = vmatprep.subr.mxu0 0.0
        %3722 = vmatpush1.msra.mxu0 0.0
        %3723 = vmatprep.subr.mxu0 0.0
        %3724 = vmatpush1.msra.mxu0 0.0
        %3725 = vmatprep.subr.mxu0 0.0
        %3726 = vmatpush1.msra.mxu0 0.0
        %3727 = vmatprep.subr.mxu0 0.0
        %3728 = vmatpush1.msra.mxu0 0.0
        %3729 = vmatprep.subr.mxu0 0.0
        %3730 = vmatpush1.msra.mxu0 0.0
        %3731 = vmatprep.subr.mxu0 0.0
        %3732 = vmatpush1.msra.mxu0 0.0
        %3733 = vmatprep.subr.mxu0 0.0
        %3734 = vmatpush1.msra.mxu0 0.0
        %3735 = vmatprep.subr.mxu0 0.0
        %3736 = vmatpush1.msra.mxu0 0.0
        %3737 = vmatprep.subr.mxu0 0.0
        %3738 = vmatpush1.msra.mxu0 0.0
        %3739 = vmatprep.subr.mxu0 0.0
        %3740 = vmatpush1.msra.mxu0 0.0
        %3741 = vmatprep.subr.mxu0 0.0
        %3742 = vmatpush1.msra.mxu0 0.0
        %3743 = vmatprep.subr.mxu0 0.0
        %3744 = vmatpush1.msra.mxu0 0.0
        %3745 = vmatprep.mubr.f32.mxu0 0.0
        %3746 = vmatmul.mubr.f32.gmra.mrb[0].mxu0 %v3679
        %v3747 = vpop.f32.mrb[0].mxu0
        %v3748 = vadd.f32 %v3677, %v3747
        %v3749 = vpop.f32.mrb[0].mxu0
        %3750 = vdwg.mxu0
        %v3751 = vmax.f32 %v3748, 0.0
        %s3752 = scalar_lea.vmem %s7, 4
        %v3753 = vld [vmem:[%s3752] sm:$0xf]
        %s3754 = scalar_lea.vmem %s8, 1
        %v3755 = vld [vmem:[%s3754] sm:$0x1]
        %v3757 = vsel %vm2327, %v3751, 0
        %v3760 = vsel %vm2331, %v3753, 0
        %3762 = vmatprep.subr.mxu0 0.0
        %3763 = vmatpush1.msra.mxu0 %v3760
        %3764 = vmatprep.subr.mxu0 0.0
        %3765 = vmatpush1.msra.mxu0 0.0
        %3766 = vmatprep.subr.mxu0 0.0
        %3767 = vmatpush1.msra.mxu0 0.0
        %3768 = vmatprep.subr.mxu0 0.0
        %3769 = vmatpush1.msra.mxu0 0.0
        %3770 = vmatprep.subr.mxu0 0.0
        %3771 = vmatpush1.msra.mxu0 0.0
        %3772 = vmatprep.subr.mxu0 0.0
        %3773 = vmatpush1.msra.mxu0 0.0
        %3774 = vmatprep.subr.mxu0 0.0
        %3775 = vmatpush1.msra.mxu0 0.0
        %3776 = vmatprep.subr.mxu0 0.0
        %3777 = vmatpush1.msra.mxu0 0.0
        %3778 = vmatprep.subr.mxu0 0.0
        %3779 = vmatpush1.msra.mxu0 0.0
        %3780 = vmatprep.subr.mxu0 0.0
        %3781 = vmatpush1.msra.mxu0 0.0
        %3782 = vmatprep.subr.mxu0 0.0
        %3783 = vmatpush1.msra.mxu0 0.0
        %3784 = vmatprep.subr.mxu0 0.0
        %3785 = vmatpush1.msra.mxu0 0.0
        %3786 = vmatprep.subr.mxu0 0.0
        %3787 = vmatpush1.msra.mxu0 0.0
        %3788 = vmatprep.subr.mxu0 0.0
        %3789 = vmatpush1.msra.mxu0 0.0
        %3790 = vmatprep.subr.mxu0 0.0
        %3791 = vmatpush1.msra.mxu0 0.0
        %3792 = vmatprep.subr.mxu0 0.0
        %3793 = vmatpush1.msra.mxu0 0.0
        %3794 = vmatprep.subr.mxu0 0.0
        %3795 = vmatpush1.msra.mxu0 0.0
        %3796 = vmatprep.subr.mxu0 0.0
        %3797 = vmatpush1.msra.mxu0 0.0
        %3798 = vmatprep.subr.mxu0 0.0
        %3799 = vmatpush1.msra.mxu0 0.0
        %3800 = vmatprep.subr.mxu0 0.0
        %3801 = vmatpush1.msra.mxu0 0.0
        %3802 = vmatprep.subr.mxu0 0.0
        %3803 = vmatpush1.msra.mxu0 0.0
        %3804 = vmatprep.subr.mxu0 0.0
        %3805 = vmatpush1.msra.mxu0 0.0
        %3806 = vmatprep.subr.mxu0 0.0
        %3807 = vmatpush1.msra.mxu0 0.0
        %3808 = vmatprep.subr.mxu0 0.0
        %3809 = vmatpush1.msra.mxu0 0.0
        %3810 = vmatprep.subr.mxu0 0.0
        %3811 = vmatpush1.msra.mxu0 0.0
        %3812 = vmatprep.subr.mxu0 0.0
        %3813 = vmatpush1.msra.mxu0 0.0
        %3814 = vmatprep.subr.mxu0 0.0
        %3815 = vmatpush1.msra.mxu0 0.0
        %3816 = vmatprep.subr.mxu0 0.0
        %3817 = vmatpush1.msra.mxu0 0.0
        %3818 = vmatprep.subr.mxu0 0.0
        %3819 = vmatpush1.msra.mxu0 0.0
        %3820 = vmatprep.subr.mxu0 0.0
        %3821 = vmatpush1.msra.mxu0 0.0
        %3822 = vmatprep.subr.mxu0 0.0
        %3823 = vmatpush1.msra.mxu0 0.0
        %3824 = vmatprep.subr.mxu0 0.0
        %3825 = vmatpush1.msra.mxu0 0.0
        %3826 = vmatprep.mubr.f32.mxu0 0.0
        %3827 = vmatmul.mubr.f32.gmra.mrb[0].mxu0 %v3757
        %v3828 = vpop.f32.mrb[0].mxu0
        %v3829 = vadd.f32 %v3755, %v3828
        %v3830 = vpop.f32.mrb[0].mxu0
        %3831 = vdwg.mxu0
        %v3832 = vxor.u32 %v3829, 2147483648
        %v3833 = vmul.f32 %v3832, 1.442695
        %v3834 = vpow.pop %v3833
        %v3835 = vadd.f32 %v3834, 1.0
        %v3836 = vrcp.pop %v3835
        %v3837 = vmul.f32 1.0, %v3836
        %v3838 = vld [vmem:[#allocation2 + $0xb] sm:$0xff]
        %v3839 = vld [vmem:[#allocation2 + $0x13] sm:$0xff]
        %v3840 = vld [vmem:[#allocation2 + $0x1b] sm:$0xff]
        %v3841 = vld [vmem:[#allocation2 + $0x23] sm:$0xff]
        %v3842 = vld [vmem:[#allocation2 + $0x2b] sm:$0xff]
        %v3843 = vld [vmem:[#allocation2 + $0x33] sm:$0xff]
        %v3844 = vld [vmem:[#allocation2 + $0x3b] sm:$0xff]
        %v3845 = vld [vmem:[#allocation2 + $0x43] sm:$0xff]
        %v3846 = vld [vmem:[#allocation2 + $0x4b] sm:$0xff]
        %v3847 = vld [vmem:[#allocation2 + $0x53] sm:$0xff]
        %v3848 = vlaneseq
        %v3849 = vshrl.u32 %v3848, 7
        %v3850 = vsub.s32 0, %v3849
        %v3851 = vrot.slane %v3837, %v3850
        %v3852 = vmul.f32 %v3637, %v3851
        %v3853 = vmul.f32 %v3638, %v3851
        %v3854 = vmul.f32 %v3639, %v3851
        %v3855 = vmul.f32 %v3640, %v3851
        %v3856 = vmul.f32 %v3641, %v3851
        %v3857 = vmul.f32 %v3642, %v3851
        %v3858 = vmul.f32 %v3643, %v3851
        %v3859 = vmul.f32 %v3644, %v3851
        %v3860 = vmul.f32 %v3645, %v3851
        %v3861 = vmul.f32 %v3646, %v3851
        %v3862 = vadd.f32 %v3852, %v3838
        %v3863 = vadd.f32 %v3853, %v3839
        %v3864 = vadd.f32 %v3854, %v3840
        %v3865 = vadd.f32 %v3855, %v3841
        %v3866 = vadd.f32 %v3856, %v3842
        %v3867 = vadd.f32 %v3857, %v3843
        %v3868 = vadd.f32 %v3858, %v3844
        %v3869 = vadd.f32 %v3859, %v3845
        %v3870 = vadd.f32 %v3860, %v3846
        %v3871 = vadd.f32 %v3861, %v3847
        %3872 = vst.msk [vmem:[#allocation2 + $0xb] sm:$0xff] %vm630, %v3862
        %3873 = vst.msk [vmem:[#allocation2 + $0x13] sm:$0xff] %vm630, %v3863
        %3874 = vst.msk [vmem:[#allocation2 + $0x1b] sm:$0xff] %vm630, %v3864
        %3875 = vst.msk [vmem:[#allocation2 + $0x23] sm:$0xff] %vm630, %v3865
        %3876 = vst.msk [vmem:[#allocation2 + $0x2b] sm:$0xff] %vm630, %v3866
        %3877 = vst.msk [vmem:[#allocation2 + $0x33] sm:$0xff] %vm630, %v3867
        %3878 = vst.msk [vmem:[#allocation2 + $0x3b] sm:$0xff] %vm630, %v3868
        %3879 = vst.msk [vmem:[#allocation2 + $0x43] sm:$0xff] %vm630, %v3869
        %3880 = vst.msk [vmem:[#allocation2 + $0x4b] sm:$0xff] %vm630, %v3870
        %3881 = vst.msk [vmem:[#allocation2 + $0x53] sm:$0xff] %vm630, %v3871
        %v3882 = vld [vmem:[#allocation10] sm:$0xff]
        %v3883 = vld [vmem:[#allocation10 + $0x8] sm:$0xff]
        %v3884 = vld [vmem:[#allocation10 + $0x10] sm:$0xff]
        %v3885 = vld [vmem:[#allocation10 + $0x18] sm:$0xff]
        %v3886 = vld [vmem:[#allocation10 + $0x20] sm:$0xff]
        %v3887 = vld [vmem:[#allocation10 + $0x28] sm:$0xff]
        %v3888 = vld [vmem:[#allocation10 + $0x30] sm:$0xff]
        %v3889 = vld [vmem:[#allocation10 + $0x38] sm:$0xff]
        %v3890 = vld [vmem:[#allocation10 + $0x40] sm:$0xff]
        %v3891 = vld [vmem:[#allocation10 + $0x48] sm:$0xff]
        %v3892 = vld [vmem:[#allocation10 + $0x50] sm:$0xff]
        %v3893 = vld [vmem:[#allocation10 + $0x58] sm:$0xff]
        %v3894 = vld [vmem:[#allocation10 + $0x60] sm:$0xff]
        %v3895 = vld [vmem:[#allocation10 + $0x68] sm:$0xff]
        %v3896 = vld [vmem:[#allocation10 + $0x70] sm:$0xff]
        %v3897 = vld [vmem:[#allocation10 + $0x78] sm:$0xff]
        %v3898 = vld [vmem:[#allocation10 + $0x80] sm:$0xff]
        %v3899 = vld [vmem:[#allocation10 + $0x88] sm:$0xff]
        %v3900 = vld [vmem:[%s10] sm:$0x1]
        %v3901 = vld [vmem:[#allocation2] sm:$0xff]
        %v3902 = vld [vmem:[#allocation2 + $0x8] sm:$0xff]
        %v3903 = vld [vmem:[#allocation2 + $0x10] sm:$0xff]
        %v3904 = vld [vmem:[#allocation2 + $0x18] sm:$0xff]
        %v3905 = vld [vmem:[#allocation2 + $0x20] sm:$0xff]
        %v3906 = vld [vmem:[#allocation2 + $0x28] sm:$0xff]
        %v3907 = vld [vmem:[#allocation2 + $0x30] sm:$0xff]
        %v3908 = vld [vmem:[#allocation2 + $0x38] sm:$0xff]
        %v3909 = vld [vmem:[#allocation2 + $0x40] sm:$0xff]
        %v3910 = vld [vmem:[#allocation2 + $0x48] sm:$0xff]
        %v3911 = vld [vmem:[#allocation2 + $0x1] sm:$0xff]
        %v3912 = vld [vmem:[#allocation2 + $0x9] sm:$0xff]
        %v3913 = vld [vmem:[#allocation2 + $0x11] sm:$0xff]
        %v3914 = vld [vmem:[#allocation2 + $0x19] sm:$0xff]
        %v3915 = vld [vmem:[#allocation2 + $0x21] sm:$0xff]
        %v3916 = vld [vmem:[#allocation2 + $0x29] sm:$0xff]
        %v3917 = vld [vmem:[#allocation2 + $0x31] sm:$0xff]
        %v3918 = vld [vmem:[#allocation2 + $0x39] sm:$0xff]
        %v3919 = vld [vmem:[#allocation2 + $0x41] sm:$0xff]
        %v3920 = vld [vmem:[#allocation2 + $0x49] sm:$0xff]
        %v3921 = vld [vmem:[#allocation2 + $0x2] sm:$0xff]
        %v3922 = vld [vmem:[#allocation2 + $0xa] sm:$0xff]
        %v3923 = vld [vmem:[#allocation2 + $0x12] sm:$0xff]
        %v3924 = vld [vmem:[#allocation2 + $0x1a] sm:$0xff]
        %v3925 = vld [vmem:[#allocation2 + $0x22] sm:$0xff]
        %v3926 = vld [vmem:[#allocation2 + $0x2a] sm:$0xff]
        %v3927 = vld [vmem:[#allocation2 + $0x32] sm:$0xff]
        %v3928 = vld [vmem:[#allocation2 + $0x3a] sm:$0xff]
        %v3929 = vld [vmem:[#allocation2 + $0x42] sm:$0xff]
        %v3930 = vld [vmem:[#allocation2 + $0x4a] sm:$0xff]
        %v3931 = vld [vmem:[#allocation2 + $0x52] sm:$0xff]
        %v3932 = vld [vmem:[#allocation2 + $0xb] sm:$0xff]
        %v3933 = vld [vmem:[#allocation2 + $0x13] sm:$0xff]
        %v3934 = vld [vmem:[#allocation2 + $0x1b] sm:$0xff]
        %v3935 = vld [vmem:[#allocation2 + $0x23] sm:$0xff]
        %v3936 = vld [vmem:[#allocation2 + $0x2b] sm:$0xff]
        %v3937 = vld [vmem:[#allocation2 + $0x33] sm:$0xff]
        %v3938 = vld [vmem:[#allocation2 + $0x3b] sm:$0xff]
        %v3939 = vld [vmem:[#allocation2 + $0x43] sm:$0xff]
        %v3940 = vld [vmem:[#allocation2 + $0x4b] sm:$0xff]
        %v3941 = vld [vmem:[#allocation2 + $0x53] sm:$0xff]
        %v3942 = vld [vmem:[#allocation2 + $0xc] sm:$0xff]
        %v3943 = vld [vmem:[#allocation2 + $0x14] sm:$0xff]
        %v3944 = vld [vmem:[#allocation2 + $0x1c] sm:$0xff]
        %v3945 = vld [vmem:[#allocation2 + $0x24] sm:$0xff]
        %v3946 = vld [vmem:[#allocation2 + $0x2c] sm:$0xff]
        %v3947 = vld [vmem:[#allocation2 + $0x34] sm:$0xff]
        %v3948 = vld [vmem:[#allocation2 + $0x3c] sm:$0xff]
        %v3949 = vld [vmem:[#allocation2 + $0x44] sm:$0xff]
        %v3950 = vld [vmem:[#allocation2 + $0x4c] sm:$0xff]
        %v3951 = vld [vmem:[#allocation2 + $0x54] sm:$0xff]
        %v3952 = vld [vmem:[#allocation2 + $0x5c] sm:$0xff]
        %v3953 = vld [vmem:[#allocation2 + $0x15] sm:$0xff]
        %v3954 = vld [vmem:[#allocation2 + $0x1d] sm:$0xff]
        %v3955 = vld [vmem:[#allocation2 + $0x25] sm:$0xff]
        %v3956 = vld [vmem:[#allocation2 + $0x2d] sm:$0xff]
        %v3957 = vld [vmem:[#allocation2 + $0x35] sm:$0xff]
        %v3958 = vld [vmem:[#allocation2 + $0x3d] sm:$0xff]
        %v3959 = vld [vmem:[#allocation2 + $0x45] sm:$0xff]
        %v3960 = vld [vmem:[#allocation2 + $0x4d] sm:$0xff]
        %v3961 = vld [vmem:[#allocation2 + $0x55] sm:$0xff]
        %v3962 = vld [vmem:[#allocation2 + $0x5d] sm:$0xff]
        %v3963 = vld [vmem:[#allocation2 + $0x16] sm:$0xff]
        %v3964 = vld [vmem:[#allocation2 + $0x1e] sm:$0xff]
        %v3965 = vld [vmem:[#allocation2 + $0x26] sm:$0xff]
        %v3966 = vld [vmem:[#allocation2 + $0x2e] sm:$0xff]
        %v3967 = vld [vmem:[#allocation2 + $0x36] sm:$0xff]
        %v3968 = vld [vmem:[#allocation2 + $0x3e] sm:$0xff]
        %v3969 = vld [vmem:[#allocation2 + $0x46] sm:$0xff]
        %v3970 = vld [vmem:[#allocation2 + $0x4e] sm:$0xff]
        %v3971 = vld [vmem:[#allocation2 + $0x56] sm:$0xff]
        %v3972 = vld [vmem:[#allocation2 + $0x5e] sm:$0xff]
        %3983 = vrot.lane.b32.xlu0 %v3911, 16
        %v3984 = vpop.permute.xlu0 %3983
        %3985 = vrot.lane.b32.xlu0 %v3912, 16
        %v3986 = vpop.permute.xlu0 %3985
        %3987 = vrot.lane.b32.xlu0 %v3913, 16
        %v3988 = vpop.permute.xlu0 %3987
        %3989 = vrot.lane.b32.xlu0 %v3914, 16
        %v3990 = vpop.permute.xlu0 %3989
        %3991 = vrot.lane.b32.xlu0 %v3915, 16
        %v3992 = vpop.permute.xlu0 %3991
        %3993 = vrot.lane.b32.xlu0 %v3916, 16
        %v3994 = vpop.permute.xlu0 %3993
        %3995 = vrot.lane.b32.xlu0 %v3917, 16
        %v3996 = vpop.permute.xlu0 %3995
        %3997 = vrot.lane.b32.xlu0 %v3918, 16
        %v3998 = vpop.permute.xlu0 %3997
        %3999 = vrot.lane.b32.xlu0 %v3919, 16
        %v4000 = vpop.permute.xlu0 %3999
        %4001 = vrot.lane.b32.xlu0 %v3920, 16
        %v4002 = vpop.permute.xlu0 %4001
        %4023 = vrot.lane.b32.xlu0 %v3921, 32
        %v4024 = vpop.permute.xlu0 %4023
        %4025 = vrot.lane.b32.xlu0 %v3922, 32
        %v4026 = vpop.permute.xlu0 %4025
        %4027 = vrot.lane.b32.xlu0 %v3923, 32
        %v4028 = vpop.permute.xlu0 %4027
        %4029 = vrot.lane.b32.xlu0 %v3924, 32
        %v4030 = vpop.permute.xlu0 %4029
        %4031 = vrot.lane.b32.xlu0 %v3925, 32
        %v4032 = vpop.permute.xlu0 %4031
        %4033 = vrot.lane.b32.xlu0 %v3926, 32
        %v4034 = vpop.permute.xlu0 %4033
        %4035 = vrot.lane.b32.xlu0 %v3927, 32
        %v4036 = vpop.permute.xlu0 %4035
        %4037 = vrot.lane.b32.xlu0 %v3928, 32
        %v4038 = vpop.permute.xlu0 %4037
        %4039 = vrot.lane.b32.xlu0 %v3929, 32
        %v4040 = vpop.permute.xlu0 %4039
        %4041 = vrot.lane.b32.xlu0 %v3930, 32
        %v4042 = vpop.permute.xlu0 %4041
        %4054 = vrot.lane.b32.xlu0 %v3922, 48
        %v4055 = vpop.permute.xlu0 %4054
        %4056 = vrot.lane.b32.xlu0 %v3923, 48
        %v4057 = vpop.permute.xlu0 %4056
        %4058 = vrot.lane.b32.xlu0 %v3924, 48
        %v4059 = vpop.permute.xlu0 %4058
        %4060 = vrot.lane.b32.xlu0 %v3925, 48
        %v4061 = vpop.permute.xlu0 %4060
        %4062 = vrot.lane.b32.xlu0 %v3926, 48
        %v4063 = vpop.permute.xlu0 %4062
        %4064 = vrot.lane.b32.xlu0 %v3927, 48
        %v4065 = vpop.permute.xlu0 %4064
        %4066 = vrot.lane.b32.xlu0 %v3928, 48
        %v4067 = vpop.permute.xlu0 %4066
        %4068 = vrot.lane.b32.xlu0 %v3929, 48
        %v4069 = vpop.permute.xlu0 %4068
        %4070 = vrot.lane.b32.xlu0 %v3930, 48
        %v4071 = vpop.permute.xlu0 %4070
        %4072 = vrot.lane.b32.xlu0 %v3931, 48
        %v4073 = vpop.permute.xlu0 %4072
        %4094 = vrot.lane.b32.xlu0 %v3932, 64
        %v4095 = vpop.permute.xlu0 %4094
        %4096 = vrot.lane.b32.xlu0 %v3933, 64
        %v4097 = vpop.permute.xlu0 %4096
        %4098 = vrot.lane.b32.xlu0 %v3934, 64
        %v4099 = vpop.permute.xlu0 %4098
        %4100 = vrot.lane.b32.xlu0 %v3935, 64
        %v4101 = vpop.permute.xlu0 %4100
        %4102 = vrot.lane.b32.xlu0 %v3936, 64
        %v4103 = vpop.permute.xlu0 %4102
        %4104 = vrot.lane.b32.xlu0 %v3937, 64
        %v4105 = vpop.permute.xlu0 %4104
        %4106 = vrot.lane.b32.xlu0 %v3938, 64
        %v4107 = vpop.permute.xlu0 %4106
        %4108 = vrot.lane.b32.xlu0 %v3939, 64
        %v4109 = vpop.permute.xlu0 %4108
        %4110 = vrot.lane.b32.xlu0 %v3940, 64
        %v4111 = vpop.permute.xlu0 %4110
        %4112 = vrot.lane.b32.xlu0 %v3941, 64
        %v4113 = vpop.permute.xlu0 %4112
        %4134 = vrot.lane.b32.xlu0 %v3942, 80
        %v4135 = vpop.permute.xlu0 %4134
        %4136 = vrot.lane.b32.xlu0 %v3943, 80
        %v4137 = vpop.permute.xlu0 %4136
        %4138 = vrot.lane.b32.xlu0 %v3944, 80
        %v4139 = vpop.permute.xlu0 %4138
        %4140 = vrot.lane.b32.xlu0 %v3945, 80
        %v4141 = vpop.permute.xlu0 %4140
        %4142 = vrot.lane.b32.xlu0 %v3946, 80
        %v4143 = vpop.permute.xlu0 %4142
        %4144 = vrot.lane.b32.xlu0 %v3947, 80
        %v4145 = vpop.permute.xlu0 %4144
        %4146 = vrot.lane.b32.xlu0 %v3948, 80
        %v4147 = vpop.permute.xlu0 %4146
        %4148 = vrot.lane.b32.xlu0 %v3949, 80
        %v4149 = vpop.permute.xlu0 %4148
        %4150 = vrot.lane.b32.xlu0 %v3950, 80
        %v4151 = vpop.permute.xlu0 %4150
        %4152 = vrot.lane.b32.xlu0 %v3951, 80
        %v4153 = vpop.permute.xlu0 %4152
        %4165 = vrot.lane.b32.xlu0 %v3943, 96
        %v4166 = vpop.permute.xlu0 %4165
        %4167 = vrot.lane.b32.xlu0 %v3944, 96
        %v4168 = vpop.permute.xlu0 %4167
        %4169 = vrot.lane.b32.xlu0 %v3945, 96
        %v4170 = vpop.permute.xlu0 %4169
        %4171 = vrot.lane.b32.xlu0 %v3946, 96
        %v4172 = vpop.permute.xlu0 %4171
        %4173 = vrot.lane.b32.xlu0 %v3947, 96
        %v4174 = vpop.permute.xlu0 %4173
        %4175 = vrot.lane.b32.xlu0 %v3948, 96
        %v4176 = vpop.permute.xlu0 %4175
        %4177 = vrot.lane.b32.xlu0 %v3949, 96
        %v4178 = vpop.permute.xlu0 %4177
        %4179 = vrot.lane.b32.xlu0 %v3950, 96
        %v4180 = vpop.permute.xlu0 %4179
        %4181 = vrot.lane.b32.xlu0 %v3951, 96
        %v4182 = vpop.permute.xlu0 %4181
        %4183 = vrot.lane.b32.xlu0 %v3952, 96
        %v4184 = vpop.permute.xlu0 %4183
        %4205 = vrot.lane.b32.xlu0 %v3953, 112
        %v4206 = vpop.permute.xlu0 %4205
        %4207 = vrot.lane.b32.xlu0 %v3954, 112
        %v4208 = vpop.permute.xlu0 %4207
        %4209 = vrot.lane.b32.xlu0 %v3955, 112
        %v4210 = vpop.permute.xlu0 %4209
        %4211 = vrot.lane.b32.xlu0 %v3956, 112
        %v4212 = vpop.permute.xlu0 %4211
        %4213 = vrot.lane.b32.xlu0 %v3957, 112
        %v4214 = vpop.permute.xlu0 %4213
        %4215 = vrot.lane.b32.xlu0 %v3958, 112
        %v4216 = vpop.permute.xlu0 %4215
        %4217 = vrot.lane.b32.xlu0 %v3959, 112
        %v4218 = vpop.permute.xlu0 %4217
        %4219 = vrot.lane.b32.xlu0 %v3960, 112
        %v4220 = vpop.permute.xlu0 %4219
        %4221 = vrot.lane.b32.xlu0 %v3961, 112
        %v4222 = vpop.permute.xlu0 %4221
        %4223 = vrot.lane.b32.xlu0 %v3962, 112
        %v4224 = vpop.permute.xlu0 %4223
        %v4235 = vsel %vm630, %v3901, %v3984
        %v4236 = vsel %vm630, %v3902, %v3986
        %v4237 = vsel %vm630, %v3903, %v3988
        %v4238 = vsel %vm630, %v3904, %v3990
        %v4239 = vsel %vm630, %v3905, %v3992
        %v4240 = vsel %vm630, %v3906, %v3994
        %v4241 = vsel %vm630, %v3907, %v3996
        %v4242 = vsel %vm630, %v3908, %v3998
        %v4243 = vsel %vm630, %v3909, %v4000
        %v4244 = vsel %vm630, %v3910, %v4002
        %v4245 = vsel %vm1371, %v4235, %v4024
        %v4246 = vsel %vm1371, %v4236, %v4026
        %v4247 = vsel %vm1371, %v4237, %v4028
        %v4248 = vsel %vm1371, %v4238, %v4030
        %v4249 = vsel %vm1371, %v4239, %v4032
        %v4250 = vsel %vm1371, %v4240, %v4034
        %v4251 = vsel %vm1371, %v4241, %v4036
        %v4252 = vsel %vm1371, %v4242, %v4038
        %v4253 = vsel %vm1371, %v4243, %v4040
        %v4254 = vsel %vm1371, %v4244, %v4042
        %v4255 = vsel %vm1382, %v4245, %v4055
        %v4256 = vsel %vm1382, %v4246, %v4057
        %v4257 = vsel %vm1382, %v4247, %v4059
        %v4258 = vsel %vm1382, %v4248, %v4061
        %v4259 = vsel %vm1382, %v4249, %v4063
        %v4260 = vsel %vm1382, %v4250, %v4065
        %v4261 = vsel %vm1382, %v4251, %v4067
        %v4262 = vsel %vm1382, %v4252, %v4069
        %v4263 = vsel %vm1382, %v4253, %v4071
        %v4264 = vsel %vm1382, %v4254, %v4073
        %v4265 = vsel %vm1393, %v4255, %v4095
        %v4266 = vsel %vm1393, %v4256, %v4097
        %v4267 = vsel %vm1393, %v4257, %v4099
        %v4268 = vsel %vm1393, %v4258, %v4101
        %v4269 = vsel %vm1393, %v4259, %v4103
        %v4270 = vsel %vm1393, %v4260, %v4105
        %v4271 = vsel %vm1393, %v4261, %v4107
        %v4272 = vsel %vm1393, %v4262, %v4109
        %v4273 = vsel %vm1393, %v4263, %v4111
        %v4274 = vsel %vm1393, %v4264, %v4113
        %v4275 = vsel %vm1404, %v4265, %v4135
        %v4276 = vsel %vm1404, %v4266, %v4137
        %v4277 = vsel %vm1404, %v4267, %v4139
        %v4278 = vsel %vm1404, %v4268, %v4141
        %v4279 = vsel %vm1404, %v4269, %v4143
        %v4280 = vsel %vm1404, %v4270, %v4145
        %v4281 = vsel %vm1404, %v4271, %v4147
        %v4282 = vsel %vm1404, %v4272, %v4149
        %v4283 = vsel %vm1404, %v4273, %v4151
        %v4284 = vsel %vm1404, %v4274, %v4153
        %v4285 = vsel %vm1415, %v4275, %v4166
        %v4286 = vsel %vm1415, %v4276, %v4168
        %v4287 = vsel %vm1415, %v4277, %v4170
        %v4288 = vsel %vm1415, %v4278, %v4172
        %v4289 = vsel %vm1415, %v4279, %v4174
        %v4290 = vsel %vm1415, %v4280, %v4176
        %v4291 = vsel %vm1415, %v4281, %v4178
        %v4292 = vsel %vm1415, %v4282, %v4180
        %v4293 = vsel %vm1415, %v4283, %v4182
        %v4294 = vsel %vm1415, %v4284, %v4184
        %v4295 = vsel %vm1426, %v4285, %v4206
        %v4296 = vsel %vm1426, %v4286, %v4208
        %v4297 = vsel %vm1426, %v4287, %v4210
        %v4298 = vsel %vm1426, %v4288, %v4212
        %v4299 = vsel %vm1426, %v4289, %v4214
        %v4300 = vsel %vm1426, %v4290, %v4216
        %v4301 = vsel %vm1426, %v4291, %v4218
        %v4302 = vsel %vm1426, %v4292, %v4220
        %v4303 = vsel %vm1426, %v4293, %v4222
        %v4304 = vsel %vm1426, %v4294, %v4224
        %v4306 = vlaneseq
        %v4307 = vshrl.u32 %v4306, 7
        %v4308 = vsub.s32 0, %v4307
        %v4309 = vrot.slane %v3900, %v4308
        %v4312 = vsel %vm630, %v3963, 0
        %v4315 = vsel %vm630, %v3964, 0
        %v4318 = vsel %vm630, %v3965, 0
        %v4321 = vsel %vm630, %v3966, 0
        %v4324 = vsel %vm630, %v3967, 0
        %v4327 = vsel %vm630, %v3968, 0
        %v4330 = vsel %vm630, %v3969, 0
        %v4333 = vsel %vm630, %v3970, 0
        %v4336 = vsel %vm630, %v3971, 0
        %v4339 = vsel %vm630, %v3972, 0
        %4341 = vmatprep.subr.mxu0 0.0
        %4342 = vmatpush1.msra.mxu0 %v3882
        %4343 = vmatprep.subr.mxu0 0.0
        %4344 = vmatpush1.msra.mxu0 %v3883
        %4345 = vmatprep.subr.mxu0 0.0
        %4346 = vmatpush1.msra.mxu0 %v3884
        %4347 = vmatprep.subr.mxu0 0.0
        %4348 = vmatpush1.msra.mxu0 %v3885
        %4349 = vmatprep.subr.mxu0 0.0
        %4350 = vmatpush1.msra.mxu0 %v3886
        %4351 = vmatprep.subr.mxu0 0.0
        %4352 = vmatpush1.msra.mxu0 %v3887
        %4353 = vmatprep.subr.mxu0 0.0
        %4354 = vmatpush1.msra.mxu0 %v3888
        %4355 = vmatprep.subr.mxu0 0.0
        %4356 = vmatpush1.msra.mxu0 %v3889
        %4357 = vmatprep.subr.mxu0 0.0
        %4358 = vmatpush1.msra.mxu0 %v3890
        %4359 = vmatprep.subr.mxu0 0.0
        %4360 = vmatpush1.msra.mxu0 %v3891
        %4361 = vmatprep.subr.mxu0 0.0
        %4362 = vmatpush1.msra.mxu0 %v3892
        %4363 = vmatprep.subr.mxu0 0.0
        %4364 = vmatpush1.msra.mxu0 %v3893
        %4365 = vmatprep.subr.mxu0 0.0
        %4366 = vmatpush1.msra.mxu0 %v3894
        %4367 = vmatprep.subr.mxu0 0.0
        %4368 = vmatpush1.msra.mxu0 %v3895
        %4369 = vmatprep.subr.mxu0 0.0
        %4370 = vmatpush1.msra.mxu0 %v3896
        %4371 = vmatprep.subr.mxu0 0.0
        %4372 = vmatpush1.msra.mxu0 %v3897
        %4373 = vmatprep.subr.mxu0 0.0
        %4374 = vmatpush1.msra.mxu0 %v3898
        %4375 = vmatprep.subr.mxu0 0.0
        %4376 = vmatpush1.msra.mxu0 %v3899
        %4377 = vmatprep.subr.mxu0 0.0
        %4378 = vmatpush1.msra.mxu0 0.0
        %4379 = vmatprep.subr.mxu0 0.0
        %4380 = vmatpush1.msra.mxu0 0.0
        %4381 = vmatprep.subr.mxu0 0.0
        %4382 = vmatpush1.msra.mxu0 0.0
        %4383 = vmatprep.subr.mxu0 0.0
        %4384 = vmatpush1.msra.mxu0 0.0
        %4385 = vmatprep.subr.mxu0 0.0
        %4386 = vmatpush1.msra.mxu0 0.0
        %4387 = vmatprep.subr.mxu0 0.0
        %4388 = vmatpush1.msra.mxu0 0.0
        %4389 = vmatprep.subr.mxu0 0.0
        %4390 = vmatpush1.msra.mxu0 0.0
        %4391 = vmatprep.subr.mxu0 0.0
        %4392 = vmatpush1.msra.mxu0 0.0
        %4393 = vmatprep.subr.mxu0 0.0
        %4394 = vmatpush1.msra.mxu0 0.0
        %4395 = vmatprep.subr.mxu0 0.0
        %4396 = vmatpush1.msra.mxu0 0.0
        %4397 = vmatprep.subr.mxu0 0.0
        %4398 = vmatpush1.msra.mxu0 0.0
        %4399 = vmatprep.subr.mxu0 0.0
        %4400 = vmatpush1.msra.mxu0 0.0
        %4401 = vmatprep.subr.mxu0 0.0
        %4402 = vmatpush1.msra.mxu0 0.0
        %4403 = vmatprep.subr.mxu0 0.0
        %4404 = vmatpush1.msra.mxu0 0.0
        %4405 = vmatprep.mubr.f32.mxu0 %v4312
        %4406 = vmatmul.mubr.f32.gmra.mrb[0].mxu0 %v4295
        %v4407 = vpop.f32.mrb[0].mxu0
        %v4408 = vadd.f32 %v4309, %v4407
        %v4409 = vpop.f32.mrb[0].mxu0
        %4410 = vmatprep.mubr.f32.mxu0 %v4315
        %4411 = vmatmul.mubr.f32.gmra.mrb[0].mxu0 %v4296
        %v4412 = vpop.f32.mrb[0].mxu0
        %v4413 = vadd.f32 %v4309, %v4412
        %v4414 = vpop.f32.mrb[0].mxu0
        %4415 = vmatprep.mubr.f32.mxu0 %v4318
        %4416 = vmatmul.mubr.f32.gmra.mrb[0].mxu0 %v4297
        %v4417 = vpop.f32.mrb[0].mxu0
        %v4418 = vadd.f32 %v4309, %v4417
        %v4419 = vpop.f32.mrb[0].mxu0
        %4420 = vmatprep.mubr.f32.mxu0 %v4321
        %4421 = vmatmul.mubr.f32.gmra.mrb[0].mxu0 %v4298
        %v4422 = vpop.f32.mrb[0].mxu0
        %v4423 = vadd.f32 %v4309, %v4422
        %v4424 = vpop.f32.mrb[0].mxu0
        %4425 = vmatprep.mubr.f32.mxu0 %v4324
        %4426 = vmatmul.mubr.f32.gmra.mrb[0].mxu0 %v4299
        %v4427 = vpop.f32.mrb[0].mxu0
        %v4428 = vadd.f32 %v4309, %v4427
        %v4429 = vpop.f32.mrb[0].mxu0
        %4430 = vmatprep.mubr.f32.mxu0 %v4327
        %4431 = vmatmul.mubr.f32.gmra.mrb[0].mxu0 %v4300
        %v4432 = vpop.f32.mrb[0].mxu0
        %v4433 = vadd.f32 %v4309, %v4432
        %v4434 = vpop.f32.mrb[0].mxu0
        %4435 = vmatprep.mubr.f32.mxu0 %v4330
        %4436 = vmatmul.mubr.f32.gmra.mrb[0].mxu0 %v4301
        %v4437 = vpop.f32.mrb[0].mxu0
        %v4438 = vadd.f32 %v4309, %v4437
        %v4439 = vpop.f32.mrb[0].mxu0
        %4440 = vmatprep.mubr.f32.mxu0 %v4333
        %4441 = vmatmul.mubr.f32.gmra.mrb[0].mxu0 %v4302
        %v4442 = vpop.f32.mrb[0].mxu0
        %v4443 = vadd.f32 %v4309, %v4442
        %v4444 = vpop.f32.mrb[0].mxu0
        %4445 = vmatprep.mubr.f32.mxu0 %v4336
        %4446 = vmatmul.mubr.f32.gmra.mrb[0].mxu0 %v4303
        %v4447 = vpop.f32.mrb[0].mxu0
        %v4448 = vadd.f32 %v4309, %v4447
        %v4449 = vpop.f32.mrb[0].mxu0
        %4450 = vmatprep.mubr.f32.mxu0 %v4339
        %4451 = vmatmul.mubr.f32.gmra.mrb[0].mxu0 %v4304
        %v4452 = vpop.f32.mrb[0].mxu0
        %v4453 = vadd.f32 %v4309, %v4452
        %v4454 = vpop.f32.mrb[0].mxu0
        %4455 = vdwg.mxu0
        %v4466 = vcombine.high %v4408, %v4408
        %v4468 = vunpack.c.l.s4 1983009808
        %v4469 = vunpack.c.0.s8 %v4468
        %v4470 = vlaneseq
        %v4471 = vshrl.u32 %v4470, 7
        %v4472 = vsub.s32 %v4469, %v4471
        %v4473 = vrot.slane %v4408, %v4472
        %v4475 = vunpack.c.l.s4 1983009808
        %v4476 = vunpack.c.0.s8 %v4475
        %v4477 = vlaneseq
        %v4478 = vshrl.u32 %v4477, 7
        %v4479 = vsub.s32 %v4476, %v4478
        %v4480 = vrot.slane %v4466, %v4479
        %v4481 = vcombine.high %v4473, %v4473
        %v4482 = vcombine.high %v4480, %v4480
        %v4483 = vcombine.high %v4413, %v4413
        %v4485 = vunpack.c.l.s4 1983009808
        %v4486 = vunpack.c.0.s8 %v4485
        %v4487 = vlaneseq
        %v4488 = vshrl.u32 %v4487, 7
        %v4489 = vsub.s32 %v4486, %v4488
        %v4490 = vrot.slane %v4413, %v4489
        %v4492 = vunpack.c.l.s4 1983009808
        %v4493 = vunpack.c.0.s8 %v4492
        %v4494 = vlaneseq
        %v4495 = vshrl.u32 %v4494, 7
        %v4496 = vsub.s32 %v4493, %v4495
        %v4497 = vrot.slane %v4483, %v4496
        %v4498 = vcombine.high %v4490, %v4490
        %v4499 = vcombine.high %v4497, %v4497
        %v4500 = vcombine.high %v4418, %v4418
        %v4502 = vunpack.c.l.s4 1983009808
        %v4503 = vunpack.c.0.s8 %v4502
        %v4504 = vlaneseq
        %v4505 = vshrl.u32 %v4504, 7
        %v4506 = vsub.s32 %v4503, %v4505
        %v4507 = vrot.slane %v4418, %v4506
        %v4509 = vunpack.c.l.s4 1983009808
        %v4510 = vunpack.c.0.s8 %v4509
        %v4511 = vlaneseq
        %v4512 = vshrl.u32 %v4511, 7
        %v4513 = vsub.s32 %v4510, %v4512
        %v4514 = vrot.slane %v4500, %v4513
        %v4515 = vcombine.high %v4514, %v4514
        %v4516 = vcombine.high %v4423, %v4423
        %v4518 = vunpack.c.l.s4 1983009808
        %v4519 = vunpack.c.0.s8 %v4518
        %v4520 = vlaneseq
        %v4521 = vshrl.u32 %v4520, 7
        %v4522 = vsub.s32 %v4519, %v4521
        %v4523 = vrot.slane %v4423, %v4522
        %v4525 = vunpack.c.l.s4 1983009808
        %v4526 = vunpack.c.0.s8 %v4525
        %v4527 = vlaneseq
        %v4528 = vshrl.u32 %v4527, 7
        %v4529 = vsub.s32 %v4526, %v4528
        %v4530 = vrot.slane %v4516, %v4529
        %v4531 = vcombine.high %v4523, %v4523
        %v4532 = vcombine.high %v4530, %v4530
        %v4533 = vcombine.high %v4428, %v4428
        %v4535 = vunpack.c.l.s4 1983009808
        %v4536 = vunpack.c.0.s8 %v4535
        %v4537 = vlaneseq
        %v4538 = vshrl.u32 %v4537, 7
        %v4539 = vsub.s32 %v4536, %v4538
        %v4540 = vrot.slane %v4428, %v4539
        %v4542 = vunpack.c.l.s4 1983009808
        %v4543 = vunpack.c.0.s8 %v4542
        %v4544 = vlaneseq
        %v4545 = vshrl.u32 %v4544, 7
        %v4546 = vsub.s32 %v4543, %v4545
        %v4547 = vrot.slane %v4533, %v4546
        %v4548 = vcombine.high %v4540, %v4540
        %v4549 = vcombine.high %v4433, %v4433
        %v4551 = vunpack.c.l.s4 1983009808
        %v4552 = vunpack.c.0.s8 %v4551
        %v4553 = vlaneseq
        %v4554 = vshrl.u32 %v4553, 7
        %v4555 = vsub.s32 %v4552, %v4554
        %v4556 = vrot.slane %v4433, %v4555
        %v4558 = vunpack.c.l.s4 1983009808
        %v4559 = vunpack.c.0.s8 %v4558
        %v4560 = vlaneseq
        %v4561 = vshrl.u32 %v4560, 7
        %v4562 = vsub.s32 %v4559, %v4561
        %v4563 = vrot.slane %v4549, %v4562
        %v4564 = vcombine.high %v4556, %v4556
        %v4565 = vcombine.high %v4563, %v4563
        %v4566 = vcombine.high %v4438, %v4438
        %v4568 = vunpack.c.l.s4 1983009808
        %v4569 = vunpack.c.0.s8 %v4568
        %v4570 = vlaneseq
        %v4571 = vshrl.u32 %v4570, 7
        %v4572 = vsub.s32 %v4569, %v4571
        %v4573 = vrot.slane %v4438, %v4572
        %v4575 = vunpack.c.l.s4 1983009808
        %v4576 = vunpack.c.0.s8 %v4575
        %v4577 = vlaneseq
        %v4578 = vshrl.u32 %v4577, 7
        %v4579 = vsub.s32 %v4576, %v4578
        %v4580 = vrot.slane %v4566, %v4579
        %v4581 = vcombine.high %v4573, %v4573
        %v4582 = vcombine.high %v4580, %v4580
        %v4583 = vcombine.high %v4443, %v4443
        %v4585 = vunpack.c.l.s4 1983009808
        %v4586 = vunpack.c.0.s8 %v4585
        %v4587 = vlaneseq
        %v4588 = vshrl.u32 %v4587, 7
        %v4589 = vsub.s32 %v4586, %v4588
        %v4590 = vrot.slane %v4443, %v4589
        %v4592 = vunpack.c.l.s4 1983009808
        %v4593 = vunpack.c.0.s8 %v4592
        %v4594 = vlaneseq
        %v4595 = vshrl.u32 %v4594, 7
        %v4596 = vsub.s32 %v4593, %v4595
        %v4597 = vrot.slane %v4583, %v4596
        %v4598 = vcombine.high %v4597, %v4597
        %v4599 = vcombine.high %v4448, %v4448
        %v4601 = vunpack.c.l.s4 1983009808
        %v4602 = vunpack.c.0.s8 %v4601
        %v4603 = vlaneseq
        %v4604 = vshrl.u32 %v4603, 7
        %v4605 = vsub.s32 %v4602, %v4604
        %v4606 = vrot.slane %v4448, %v4605
        %v4608 = vunpack.c.l.s4 1983009808
        %v4609 = vunpack.c.0.s8 %v4608
        %v4610 = vlaneseq
        %v4611 = vshrl.u32 %v4610, 7
        %v4612 = vsub.s32 %v4609, %v4611
        %v4613 = vrot.slane %v4599, %v4612
        %v4614 = vcombine.high %v4606, %v4606
        %v4615 = vcombine.high %v4613, %v4613
        %v4616 = vcombine.high %v4453, %v4453
        %v4618 = vunpack.c.l.s4 1983009808
        %v4619 = vunpack.c.0.s8 %v4618
        %v4620 = vlaneseq
        %v4621 = vshrl.u32 %v4620, 7
        %v4622 = vsub.s32 %v4619, %v4621
        %v4623 = vrot.slane %v4453, %v4622
        %v4625 = vunpack.c.l.s4 1983009808
        %v4626 = vunpack.c.0.s8 %v4625
        %v4627 = vlaneseq
        %v4628 = vshrl.u32 %v4627, 7
        %v4629 = vsub.s32 %v4626, %v4628
        %v4630 = vrot.slane %v4616, %v4629
        %v4631 = vcombine.high %v4623, %v4623
        %v4696 = vadd.f32 %v4473, %v682
        %v4697 = vadd.f32 %v4481, %v690
        %v4698 = vadd.f32 %v4480, %v689
        %v4699 = vadd.f32 %v4482, %v691
        %v4700 = vadd.f32 %v4498, %v706
        %v4701 = vadd.f32 %v4497, %v714
        %v4702 = vadd.f32 %v4499, %v713
        %v4703 = vadd.f32 %v4507, %v715
        %v4704 = vadd.f32 %v4514, %v723
        %v4705 = vadd.f32 %v4515, %v731
        %v4706 = vadd.f32 %v4523, %v730
        %v4707 = vadd.f32 %v4531, %v732
        %v4708 = vadd.f32 %v4532, %v740
        %v4709 = vadd.f32 %v4540, %v748
        %v4710 = vadd.f32 %v4548, %v747
        %v4711 = vadd.f32 %v4547, %v749
        %v4712 = vadd.f32 %v4556, %v757
        %v4713 = vadd.f32 %v4564, %v765
        %v4714 = vadd.f32 %v4563, %v764
        %v4715 = vadd.f32 %v4565, %v766
        %v4716 = vadd.f32 %v4581, %v774
        %v4717 = vadd.f32 %v4580, %v782
        %v4718 = vadd.f32 %v4582, %v781
        %v4719 = vadd.f32 %v4590, %v783
        %v4720 = vadd.f32 %v4597, %v791
        %v4721 = vadd.f32 %v4598, %v799
        %v4722 = vadd.f32 %v4606, %v798
        %v4723 = vadd.f32 %v4614, %v800
        %v4724 = vadd.f32 %v4615, %v808
        %v4725 = vadd.f32 %v4623, %v816
        %v4726 = vadd.f32 %v4631, %v815
        %v4727 = vadd.f32 %v4630, %v817
        %v4760 = vcombine.low %v4696, %v4697
        %v4761 = vcombine.low %v4698, %v4699
        %v4763 = vunpack.c.l.s4 1983009808
        %v4764 = vunpack.c.0.s8 %v4763
        %v4765 = vlaneseq
        %v4766 = vshrl.u32 %v4765, 7
        %v4767 = vsub.s32 %v4764, %v4766
        %v4768 = vrot.slane %v4760, %v4767
        %v4770 = vunpack.c.l.s4 1983009808
        %v4771 = vunpack.c.0.s8 %v4770
        %v4772 = vlaneseq
        %v4773 = vshrl.u32 %v4772, 7
        %v4774 = vsub.s32 %v4771, %v4773
        %v4775 = vrot.slane %v4761, %v4774
        %v4776 = vcombine.low %v4768, %v4775
        %v4777 = vcombine.low %v4700, %v4701
        %v4778 = vcombine.low %v4702, %v4703
        %v4780 = vunpack.c.l.s4 1983009808
        %v4781 = vunpack.c.0.s8 %v4780
        %v4782 = vlaneseq
        %v4783 = vshrl.u32 %v4782, 7
        %v4784 = vsub.s32 %v4781, %v4783
        %v4785 = vrot.slane %v4777, %v4784
        %v4787 = vunpack.c.l.s4 1983009808
        %v4788 = vunpack.c.0.s8 %v4787
        %v4789 = vlaneseq
        %v4790 = vshrl.u32 %v4789, 7
        %v4791 = vsub.s32 %v4788, %v4790
        %v4792 = vrot.slane %v4778, %v4791
        %v4793 = vcombine.low %v4785, %v4792
        %v4794 = vcombine.low %v4704, %v4705
        %v4795 = vcombine.low %v4706, %v4707
        %v4797 = vunpack.c.l.s4 1983009808
        %v4798 = vunpack.c.0.s8 %v4797
        %v4799 = vlaneseq
        %v4800 = vshrl.u32 %v4799, 7
        %v4801 = vsub.s32 %v4798, %v4800
        %v4802 = vrot.slane %v4794, %v4801
        %v4804 = vunpack.c.l.s4 1983009808
        %v4805 = vunpack.c.0.s8 %v4804
        %v4806 = vlaneseq
        %v4807 = vshrl.u32 %v4806, 7
        %v4808 = vsub.s32 %v4805, %v4807
        %v4809 = vrot.slane %v4795, %v4808
        %v4810 = vcombine.low %v4802, %v4809
        %v4811 = vcombine.low %v4708, %v4709
        %v4812 = vcombine.low %v4710, %v4711
        %v4814 = vunpack.c.l.s4 1983009808
        %v4815 = vunpack.c.0.s8 %v4814
        %v4816 = vlaneseq
        %v4817 = vshrl.u32 %v4816, 7
        %v4818 = vsub.s32 %v4815, %v4817
        %v4819 = vrot.slane %v4811, %v4818
        %v4821 = vunpack.c.l.s4 1983009808
        %v4822 = vunpack.c.0.s8 %v4821
        %v4823 = vlaneseq
        %v4824 = vshrl.u32 %v4823, 7
        %v4825 = vsub.s32 %v4822, %v4824
        %v4826 = vrot.slane %v4812, %v4825
        %v4827 = vcombine.low %v4819, %v4826
        %v4828 = vcombine.low %v4712, %v4713
        %v4829 = vcombine.low %v4714, %v4715
        %v4831 = vunpack.c.l.s4 1983009808
        %v4832 = vunpack.c.0.s8 %v4831
        %v4833 = vlaneseq
        %v4834 = vshrl.u32 %v4833, 7
        %v4835 = vsub.s32 %v4832, %v4834
        %v4836 = vrot.slane %v4828, %v4835
        %v4838 = vunpack.c.l.s4 1983009808
        %v4839 = vunpack.c.0.s8 %v4838
        %v4840 = vlaneseq
        %v4841 = vshrl.u32 %v4840, 7
        %v4842 = vsub.s32 %v4839, %v4841
        %v4843 = vrot.slane %v4829, %v4842
        %v4844 = vcombine.low %v4836, %v4843
        %v4845 = vcombine.low %v4716, %v4717
        %v4846 = vcombine.low %v4718, %v4719
        %v4848 = vunpack.c.l.s4 1983009808
        %v4849 = vunpack.c.0.s8 %v4848
        %v4850 = vlaneseq
        %v4851 = vshrl.u32 %v4850, 7
        %v4852 = vsub.s32 %v4849, %v4851
        %v4853 = vrot.slane %v4845, %v4852
        %v4855 = vunpack.c.l.s4 1983009808
        %v4856 = vunpack.c.0.s8 %v4855
        %v4857 = vlaneseq
        %v4858 = vshrl.u32 %v4857, 7
        %v4859 = vsub.s32 %v4856, %v4858
        %v4860 = vrot.slane %v4846, %v4859
        %v4861 = vcombine.low %v4853, %v4860
        %v4862 = vcombine.low %v4720, %v4721
        %v4863 = vcombine.low %v4722, %v4723
        %v4865 = vunpack.c.l.s4 1983009808
        %v4866 = vunpack.c.0.s8 %v4865
        %v4867 = vlaneseq
        %v4868 = vshrl.u32 %v4867, 7
        %v4869 = vsub.s32 %v4866, %v4868
        %v4870 = vrot.slane %v4862, %v4869
        %v4872 = vunpack.c.l.s4 1983009808
        %v4873 = vunpack.c.0.s8 %v4872
        %v4874 = vlaneseq
        %v4875 = vshrl.u32 %v4874, 7
        %v4876 = vsub.s32 %v4873, %v4875
        %v4877 = vrot.slane %v4863, %v4876
        %v4878 = vcombine.low %v4870, %v4877
        %v4879 = vcombine.low %v4724, %v4725
        %v4880 = vcombine.low %v4726, %v4727
        %v4882 = vunpack.c.l.s4 1983009808
        %v4883 = vunpack.c.0.s8 %v4882
        %v4884 = vlaneseq
        %v4885 = vshrl.u32 %v4884, 7
        %v4886 = vsub.s32 %v4883, %v4885
        %v4887 = vrot.slane %v4879, %v4886
        %v4889 = vunpack.c.l.s4 1983009808
        %v4890 = vunpack.c.0.s8 %v4889
        %v4891 = vlaneseq
        %v4892 = vshrl.u32 %v4891, 7
        %v4893 = vsub.s32 %v4890, %v4892
        %v4894 = vrot.slane %v4880, %v4893
        %v4895 = vcombine.low %v4887, %v4894
        %4904 = vst.msk [vmem:[%s448] sm:$0xff] %vm630, %v4776
        %4905 = vst.msk [vmem:[%s448 + $0x8] sm:$0xff] %vm630, %v4793
        %4906 = vst.msk [vmem:[%s448 + $0x10] sm:$0xff] %vm630, %v4810
        %4907 = vst.msk [vmem:[%s448 + $0x18] sm:$0xff] %vm630, %v4827
        %4908 = vst.msk [vmem:[%s448 + $0x20] sm:$0xff] %vm630, %v4844
        %4909 = vst.msk [vmem:[%s448 + $0x28] sm:$0xff] %vm630, %v4861
        %4910 = vst.msk [vmem:[%s448 + $0x30] sm:$0xff] %vm630, %v4878
        %4911 = vst.msk [vmem:[%s448 + $0x38] sm:$0xff] %vm630, %v4895
        %s4912 = sand.u32 %s274, 1
        %s4913 = scalar_lea.sflag [#allocation6], %s4912
        %s4914 = sand.u32 %s274, 1
        %s4915 = smul.addr %s4914, 64
        %s4916 = scalar_lea.vmem [#allocation12], %s4915
        // Predicated region
        $region81: #{residual_group_forward.1} parent=63 // pred_check
          %p4917 = pneg %p284
        $region82: #{residual_group_forward.1} parent=63 // pred_check_branch
          %4919 = sbr.rel (%p4917) target = $region84
        $region83: #{residual_group_forward.1} parent=63 // pred_region
          %s4921 = ssub.s32 1024, 1024
          %4922 = vsyncadd %s4913, %s4921
          %s4923 = smul.addr %s30, 8
          %s4924 = smul.addr %s4923, 128
          %s4925 = scalar_lea.hbm %s11, %s4924
          %s4926 = sshll.u32 %s4916, 4
          %s4927 = int_to_ptr.vmem [resolvable:$true] %s4926
          %4932 = dma.vmem_to_hbm [thread:$0]  %s4927, 1024, %s4925, %s4913, 128, 128, 8
        $region84: #{residual_group_forward.1} parent=63 // pred_fallthru
          _
      $region64: #{residual_group_forward.1} parent=5 // pred_fallthru
        _
      %p4933 = scmp.le.s32.totalorder 2, %s25
      // Predicated region
      $region85: #{residual_group_forward.1} parent=5 // pred_check
        %p4934 = pneg %p4933
      $region86: #{residual_group_forward.1} parent=5 // pred_check_branch
        %4936 = sbr.rel (%p4934) target = $region88
      $region87: #{residual_group_forward.1} parent=5 // pred_region
        %s4937 = ssub.s32 %s25, 2
        // Predicated region
        $region89: #{residual_group_forward.1} parent=87 // pred_check
          %p4938 = pneg %p290
        $region90: #{residual_group_forward.1} parent=87 // pred_check_branch
          %4940 = sbr.rel (%p4938) target = $region92
        $region91: #{residual_group_forward.1} parent=87 // pred_region
          %s4941 = sand.u32 %s275, 1
          %s4942 = scalar_lea.sflag [#allocation6], %s4941
          %s4943 = sand.u32 %s275, 1
          %s4944 = smul.addr %s4943, 64
          %s4945 = scalar_lea.vmem [#allocation12], %s4944
          %4946 = dma.done %s4942, 1024
        $region92: #{residual_group_forward.1} parent=87 // pred_fallthru
          _
      $region88: #{residual_group_forward.1} parent=5 // pred_fallthru
        _
    $region6: #{residual_group_forward.1} parent=1 // loop_footer
      %s29 = sadd.s32 1, %s25
    $region7: #{residual_group_forward.1} parent=1 // loop_footer_branch
      %24 = sbr.rel target = $region3
    $region8: #{residual_group_forward.1} parent=1 // loop_exit
      _
    %4947 = vsyncpa [#allocation5], 1
    %s4948 = scalar_lea.sflag [#allocation5], 1
    %4949 = vsyncpa %s4948, 1
    %4950 = vsyncpa [#allocation8], 1
    %4951 = vsyncpa [#allocation11], 1
    %4952 = vsyncpa [#allocation6], 1
    %s4953 = scalar_lea.sflag [#allocation6], 1
    %4954 = vsyncpa %s4953, 1

</llo_original>
